<compile_context>
chip_gen: v7x
topology: tpu7x:2x2x1
jax: 0.10.0
libtpu: 0.0.40
codegen_flags: <defaults>
</compile_context>

<pallas_src>
import functools

import jax
import jax.numpy as jnp
from jax.experimental import pallas as pl
from jax.experimental.pallas import tpu as pltpu

_LANE = 128


def _round_up(x, m):
    return ((x + m - 1) // m) * m


# ----------------------------------------------------------------------------
# Kernels: channels on sublanes, flattened (image, space) columns on lanes.
# Every store is a full-lane (multiple-of-128) store -> no masked vst.msk.
# ----------------------------------------------------------------------------
def _refine_kernel_noup(p_ref, w3_ref, bnb_ref, w1_ref, b1_ref, o_ref, *,
                        ipt, hwp):
    # p_ref: (9*Cin, ipt*HWp)   w3_ref: (Cmid, 9*Cin) with BN scale folded in.
    acc = jnp.dot(w3_ref[...], p_ref[...], preferred_element_type=jnp.float32)
    fm = jnp.maximum(acc + bnb_ref[...], 0.0)                      # (Cmid, ipt*HWp)
    z = jnp.dot(w1_ref[...], fm.astype(w1_ref.dtype),
                preferred_element_type=jnp.float32) + b1_ref[...]  # (Cout, ipt*HWp)
    for j in range(ipt):  # lane-dense (Cout, HWp) stores, 128-aligned slices
        o_ref[j] = z[:, j * hwp:(j + 1) * hwp].astype(o_ref.dtype)


def _refine_kernel_up(p_ref, w3_ref, bnb_ref, w1_ref, b1_ref, m1_ref, m2_ref,
                      o_ref, *, ipt, hwp):
    acc = jnp.dot(w3_ref[...], p_ref[...], preferred_element_type=jnp.float32)
    fm = jnp.maximum(acc + bnb_ref[...], 0.0)                      # (Cmid, ipt*HWp)
    z = jnp.dot(w1_ref[...], fm.astype(w1_ref.dtype),
                preferred_element_type=jnp.float32) + b1_ref[...]  # (Cout, ipt*HWp)
    for j in range(ipt):
        zj = z[:, j * hwp:(j + 1) * hwp]                           # (Cout, HWp)
        # Separable bilinear upsample (align_corners=True) as two lane-dense
        # matmuls on the flat layout; no retile, no per-channel loop.
        a = jnp.dot(zj, m1_ref[...], preferred_element_type=jnp.float32)   # (Cout, HWi_p)
        oj = jnp.dot(a, m2_ref[...], preferred_element_type=jnp.float32)   # (Cout, HoWo_p)
        o_ref[j] = oj.astype(o_ref.dtype)


# ----------------------------------------------------------------------------
# 1-D bilinear interpolation matrix (align_corners=True, as in the module).
# ----------------------------------------------------------------------------
def _bilinear_matrix(n_in, n_out):
    if n_out == n_in:
        return jnp.eye(n_in, dtype=jnp.float32)
    if n_out == 1:
        return jnp.zeros((1, n_in), jnp.float32).at[0, 0].set(1.0)
    src = jnp.arange(n_out, dtype=jnp.float32) * (n_in - 1) / (n_out - 1)
    i0 = jnp.clip(jnp.floor(src).astype(jnp.int32), 0, max(n_in - 2, 0))
    frac = src - i0.astype(jnp.float32)
    rows = jnp.arange(n_out)
    mat = jnp.zeros((n_out, n_in), jnp.float32)
    mat = mat.at[rows, i0].add(1.0 - frac)
    mat = mat.at[rows, jnp.minimum(i0 + 1, n_in - 1)].add(frac)
    return mat


# ----------------------------------------------------------------------------
# Public wrapper: NCHW in -> NCHW out, same semantics as RefineOutput.forward
# (BatchNorm in eval mode: running stats folded into the conv weights).
# ----------------------------------------------------------------------------
def refine_output(x_nchw, params, scale=1, matmul_dtype=jnp.bfloat16,
                  out_dtype=jnp.float32):
    N, Cin, H, W = x_nchw.shape
    w3_oihw = params["conv3_w"]                       # (Cmid, Cin, 3, 3)
    Cmid = w3_oihw.shape[0]
    w1_oihw = params["conv1_w"]                       # (Cout, Cmid, 1, 1)
    Cout = w1_oihw.shape[0]
    Hout, Wout = H * scale, W * scale
    HW, HoWo, K9 = H * W, Hout * Wout, 9 * Cin
    HWp = _round_up(HW, _LANE)                        # padded per-image columns
    HWip = _round_up(H * Wout, _LANE)                 # x-upsampled (intermediate)
    HoWop = _round_up(HoWo, _LANE)                    # fully upsampled columns
    eps = 1e-5
    bpe = jnp.dtype(matmul_dtype).itemsize
    out_bpe = jnp.dtype(out_dtype).itemsize

    # ---- generation-aware VMEM budget (v5e/v6e: 128 MiB, v7x: 64 MiB) ----
    try:
        vmem_cap = int(pltpu.get_tpu_info().vmem_capacity_bytes)
    except Exception:
        vmem_cap = 64 * 1024 * 1024
    vmem_budget = vmem_cap - max(8 * 1024 * 1024, vmem_cap // 8)

    # ---- fold the batch into the lane axis: `ipt` whole images per step ----
    target_cols = 2048
    ipt = max(1, min(N, max(1, target_cols // HWp)))

    def step_vmem(i):
        cols = i * HWp
        v = 2 * K9 * cols * bpe                               # dbl-buffered patches
        v += 2 * ((Cmid * K9 + Cout * Cmid) * bpe + (Cmid + Cout) * 4)
        v += (Cmid + Cout) * cols * 4                         # fm / z intermediates
        if scale > 1:
            v += 2 * (HWp * HWip + HWip * HoWop) * 4          # interp matrices
            v += Cout * (HWip + HoWop) * 4
            v += 2 * i * Cout * HoWop * out_bpe               # dbl-buffered output
        else:
            v += 2 * i * Cout * HWp * out_bpe
        return v + (2 << 20)                                  # headroom

    while ipt > 1 and step_vmem(ipt) > vmem_budget:
        ipt -= 1
    Np = _round_up(N, ipt)
    steps = Np // ipt
    cols = ipt * HWp

    # ---- wrapper-side im2col; K index = (dy*3+dx)*Cin + cin ----
    xf = x_nchw.astype(jnp.float32)
    x_pad = jnp.pad(xf, ((0, 0), (0, 0), (1, 1), (1, 1)))
    taps = [x_pad[:, :, dy:dy + H, dx:dx + W]
            for dy in range(3) for dx in range(3)]
    patches = jnp.stack(taps, axis=1).reshape(N, K9, HW)
    patches = jnp.pad(patches, ((0, Np - N), (0, 0), (0, HWp - HW)))
    patches = jnp.transpose(patches, (1, 0, 2)).reshape(K9, Np * HWp)
    patches = patches.astype(matmul_dtype)                    # (9*Cin, Np*HWp)

    # ---- fold eval-mode BatchNorm into the conv3 weights ----
    bn_scale = params["bn_gamma"] / jnp.sqrt(params["bn_var"] + eps)   # (Cmid,)
    bn_bias = params["bn_beta"] - params["bn_mean"] * bn_scale
    w3m = jnp.transpose(w3_oihw.astype(jnp.float32), (0, 2, 3, 1)).reshape(Cmid, K9)
    w3m = (w3m * bn_scale[:, None]).astype(matmul_dtype)               # (Cmid, 9*Cin)
    bnb = bn_bias.reshape(Cmid, 1).astype(jnp.float32)

    w1 = w1_oihw[:, :, 0, 0].astype(matmul_dtype)                      # (Cout, Cmid)
    b1 = params["conv1_b"].reshape(Cout, 1).astype(jnp.float32)

    # ---- cost estimate + VMEM limit ----
    flops = Np * HWp * (2 * K9 * Cmid + 2 * Cmid * Cout)
    bytes_accessed = (K9 * Np * HWp * bpe
                      + (Cmid * K9 + Cout * Cmid) * bpe + (Cmid + Cout) * 4)
    if scale > 1:
        flops += Np * Cout * 2 * (HWp * HWip + HWip * HoWop)
        bytes_accessed += (HWp * HWip + HWip * HoWop) * 4
        bytes_accessed += Np * Cout * HoWop * out_bpe
    else:
        bytes_accessed += Np * Cout * HWp * out_bpe
    cost = pl.CostEstimate(flops=int(flops), transcendentals=0,
                           bytes_accessed=int(bytes_accessed))

    vmem_limit = int(min(vmem_budget, max(32 * 1024 * 1024, 2 * step_vmem(ipt))))
    cparams = pltpu.CompilerParams(dimension_semantics=("parallel",),
                                   vmem_limit_bytes=vmem_limit)

    base_specs = [
        pl.BlockSpec((K9, cols), lambda i: (0, i)),        # im2col column tile
        pl.BlockSpec((Cmid, K9), lambda i: (0, 0)),        # conv3 weights (BN folded)
        pl.BlockSpec((Cmid, 1), lambda i: (0, 0)),         # BN bias
        pl.BlockSpec((Cout, Cmid), lambda i: (0, 0)),      # conv1x1 weights
        pl.BlockSpec((Cout, 1), lambda i: (0, 0)),         # conv1x1 bias
    ]

    if scale == 1:
        out = pl.pallas_call(
            functools.partial(_refine_kernel_noup, ipt=ipt, hwp=HWp),
            out_shape=jax.ShapeDtypeStruct((Np, Cout, HWp), out_dtype),
            grid_spec=pltpu.PrefetchScalarGridSpec(
                num_scalar_prefetch=0, grid=(steps,),
                in_specs=base_specs,
                out_specs=pl.BlockSpec((ipt, Cout, HWp), lambda i: (i, 0, 0))),
            compiler_params=cparams,
            cost_estimate=cost,
        )(patches, w3m, bnb, w1, b1)
        return out[:N, :, :HW].reshape(N, Cout, H, W)      # free reshape to NCHW

    # Block-structured interpolation matrices (built once at trace time):
    #   M1 = kron(I_H, Wx^T)      : (HW, H*Wout)   x-direction
    #   M2 = kron(Wy, I_Wout)^T   : (H*Wout, Hout*Wout)  y-direction
    wy = _bilinear_matrix(H, Hout)                         # (Hout, H)
    wxt = _bilinear_matrix(W, Wout).T                      # (W, Wout)
    m1 = jnp.kron(jnp.eye(H, dtype=jnp.float32), wxt)
    m1 = jnp.pad(m1, ((0, HWp - HW), (0, HWip - H * Wout)))
    m2 = jnp.kron(wy, jnp.eye(Wout, dtype=jnp.float32)).T
    m2 = jnp.pad(m2, ((0, HWip - H * Wout), (0, HoWop - HoWo)))

    out = pl.pallas_call(
        functools.partial(_refine_kernel_up, ipt=ipt, hwp=HWp),
        out_shape=jax.ShapeDtypeStruct((Np, Cout, HoWop), out_dtype),
        grid_spec=pltpu.PrefetchScalarGridSpec(
            num_scalar_prefetch=0, grid=(steps,),
            in_specs=base_specs + [
                pl.BlockSpec((HWp, HWip), lambda i: (0, 0)),
                pl.BlockSpec((HWip, HoWop), lambda i: (0, 0)),
            ],
            out_specs=pl.BlockSpec((ipt, Cout, HoWop), lambda i: (i, 0, 0))),
        compiler_params=cparams,
        cost_estimate=cost,
    )(patches, w3m, bnb, w1, b1, m1, m2)
    return out[:N, :, :HoWo].reshape(N, Cout, Hout, Wout)  # free reshape to NCHW


# ----------------------------------------------------------------------------
# Pure-JAX reference (independent conv path, full f32) for verification.
# ----------------------------------------------------------------------------
def refine_output_reference(x_nchw, params, scale=1):
    eps = 1e-5
    fm = jax.lax.conv_general_dilated(
        x_nchw.astype(jnp.float32), params["conv3_w"].astype(jnp.float32),
        (1, 1), ((1, 1), (1, 1)), dimension_numbers=("NCHW", "OIHW", "NCHW"))
    s = params["bn_gamma"] / jnp.sqrt(params["bn_var"] + eps)
    b = params["bn_beta"] - params["bn_mean"] * s
    fm = jnp.maximum(fm * s[None, :, None, None] + b[None, :, None, None], 0.0)
    out = jax.lax.conv_general_dilated(
        fm, params["conv1_w"].astype(jnp.float32), (1, 1), ((0, 0), (0, 0)),
        dimension_numbers=("NCHW", "OIHW", "NCHW"))
    out = out + params["conv1_b"][None, :, None, None]
    if scale > 1:
        H, W = out.shape[2], out.shape[3]
        wy = _bilinear_matrix(H, H * scale)
        wx = _bilinear_matrix(W, W * scale)
        out = jnp.einsum("ph,nchw->ncpw", wy, out)
        out = jnp.einsum("qw,ncpw->ncpq", wx, out)
    return out


if __name__ == "__main__":
    N, Cin, H, W = 2, 4, 16, 16
    Cmid, Cout, scale = 64, 5, 2

    key = jax.random.PRNGKey(0)
    ks = jax.random.split(key, 8)
    params = {
        "conv3_w": jax.random.normal(ks[0], (Cmid, Cin, 3, 3), jnp.float32) * 0.1,
        "bn_gamma": 1.0 + 0.1 * jax.random.normal(ks[1], (Cmid,), jnp.float32),
        "bn_beta": 0.1 * jax.random.normal(ks[2], (Cmid,), jnp.float32),
        "bn_mean": 0.1 * jax.random.normal(ks[3], (Cmid,), jnp.float32),
        "bn_var": jax.random.uniform(ks[4], (Cmid,), jnp.float32, 0.5, 1.5),
        "conv1_w": jax.random.normal(ks[5], (Cout, Cmid, 1, 1), jnp.float32) * 0.1,
        "conv1_b": 0.1 * jax.random.normal(ks[6], (Cout,), jnp.float32),
    }
    x = jax.random.normal(ks[7], (N, Cin, H, W), jnp.float32)

    # scale > 1 path (separable bilinear upsample fused in-kernel, lane-dense).
    out = jax.block_until_ready(refine_output(x, params, scale=scale))
    ref = refine_output_reference(x, params, scale=scale)
    assert out.shape == (N, Cout, H * scale, W * scale), out.shape
    # bf16 MXU operands vs. f32 reference -> loosened tolerance.
    assert jnp.allclose(out, ref, atol=2e-2, rtol=2e-2), (
        float(jnp.max(jnp.abs(out - ref))))

    # scale == 1 specialization (upsample path skipped entirely).
    out1 = jax.block_until_ready(refine_output(x, params, scale=1))
    ref1 = refine_output_reference(x, params, scale=1)
    assert out1.shape == (N, Cout, H, W), out1.shape
    assert jnp.allclose(out1, ref1, atol=2e-2, rtol=2e-2), (
        float(jnp.max(jnp.abs(out1 - ref1))))

    print("KERNEL_OK")
</pallas_src>

<mosaic_0001>
module attributes {stable_mosaic.version = 11 : i64} {
  func.func @_refine_kernel_up(%arg0: i32, %arg1: memref<36x512xbf16, #tpu.memory_space<vmem>>, %arg2: memref<64x36xbf16, #tpu.memory_space<vmem>>, %arg3: memref<64x1xf32, #tpu.memory_space<vmem>>, %arg4: memref<5x64xbf16, #tpu.memory_space<vmem>>, %arg5: memref<5x1xf32, #tpu.memory_space<vmem>>, %arg6: memref<256x512xf32, #tpu.memory_space<vmem>>, %arg7: memref<512x1024xf32, #tpu.memory_space<vmem>>, %arg8: memref<2x5x1024xf32, #tpu.memory_space<vmem>>) attributes {dimension_semantics = [#tpu.dimension_semantics<parallel>], iteration_bounds = array<i64: 1>, scalar_prefetch = 0 : i64, scratch_operands = 0 : i64, tpu.core_type = #tpu.core_type<tc>, window_params = [{transform_indices = @transform_0, window_bounds = array<i64: 36, 512>}, {pipeline_mode = #tpu.pipeline_mode<synchronous>, transform_indices = @transform_1, window_bounds = array<i64: 64, 36>}, {pipeline_mode = #tpu.pipeline_mode<synchronous>, transform_indices = @transform_2, window_bounds = array<i64: 64, 1>}, {pipeline_mode = #tpu.pipeline_mode<synchronous>, transform_indices = @transform_3, window_bounds = array<i64: 5, 64>}, {pipeline_mode = #tpu.pipeline_mode<synchronous>, transform_indices = @transform_4, window_bounds = array<i64: 5, 1>}, {pipeline_mode = #tpu.pipeline_mode<synchronous>, transform_indices = @transform_5, window_bounds = array<i64: 256, 512>}, {pipeline_mode = #tpu.pipeline_mode<synchronous>, transform_indices = @transform_6, window_bounds = array<i64: 512, 1024>}, {transform_indices = @transform_7, window_bounds = array<i64: 2, 5, 1024>}]} {
    %c0 = arith.constant 0 : index
    %c0_0 = arith.constant 0 : index
    %0 = vector.load %arg2[%c0, %c0_0] : memref<64x36xbf16, #tpu.memory_space<vmem>>, vector<64x36xbf16>
    %c0_1 = arith.constant 0 : index
    %c0_2 = arith.constant 0 : index
    %1 = vector.load %arg1[%c0_1, %c0_2] : memref<36x512xbf16, #tpu.memory_space<vmem>>, vector<36x512xbf16>
    %cst = arith.constant dense<0.000000e+00> : vector<64x512xf32>
    %2 = tpu.matmul %0, %1, %cst {dimension_numbers = #tpu.dot_dimension_numbers<[1], [0], [0], [1], [0, 0, 1, 1], [], []>} : vector<64x36xbf16>, vector<36x512xbf16>, vector<64x512xf32> -> vector<64x512xf32>
    %c0_3 = arith.constant 0 : index
    %c0_4 = arith.constant 0 : index
    %3 = vector.load %arg3[%c0_3, %c0_4] : memref<64x1xf32, #tpu.memory_space<vmem>>, vector<64x1xf32>
    %4 = vector.broadcast %3 : vector<64x1xf32> to vector<64x512xf32>
    %5 = arith.addf %2, %4 : vector<64x512xf32>
    %cst_5 = arith.constant 0.000000e+00 : f32
    %6 = vector.broadcast %cst_5 : f32 to vector<64x512xf32>
    %7 = arith.maximumf %5, %6 : vector<64x512xf32>
    %c0_6 = arith.constant 0 : index
    %c0_7 = arith.constant 0 : index
    %8 = vector.load %arg4[%c0_6, %c0_7] : memref<5x64xbf16, #tpu.memory_space<vmem>>, vector<5x64xbf16>
    %9 = arith.truncf %7 : vector<64x512xf32> to vector<64x512xbf16>
    %cst_8 = arith.constant dense<0.000000e+00> : vector<5x512xf32>
    %10 = tpu.matmul %8, %9, %cst_8 {dimension_numbers = #tpu.dot_dimension_numbers<[1], [0], [0], [1], [0, 0, 1, 1], [], []>} : vector<5x64xbf16>, vector<64x512xbf16>, vector<5x512xf32> -> vector<5x512xf32>
    %c0_9 = arith.constant 0 : index
    %c0_10 = arith.constant 0 : index
    %11 = vector.load %arg5[%c0_9, %c0_10] : memref<5x1xf32, #tpu.memory_space<vmem>>, vector<5x1xf32>
    %12 = vector.broadcast %11 : vector<5x1xf32> to vector<5x512xf32>
    %13 = arith.addf %10, %12 : vector<5x512xf32>
    %14 = vector.extract_strided_slice %13 {offsets = [0, 0], sizes = [5, 256], strides = [1, 1]} : vector<5x512xf32> to vector<5x256xf32>
    %c0_11 = arith.constant 0 : index
    %c0_12 = arith.constant 0 : index
    %15 = vector.load %arg6[%c0_11, %c0_12] : memref<256x512xf32, #tpu.memory_space<vmem>>, vector<256x512xf32>
    %cst_13 = arith.constant dense<0.000000e+00> : vector<5x512xf32>
    %16 = tpu.matmul %14, %15, %cst_13 {dimension_numbers = #tpu.dot_dimension_numbers<[1], [0], [0], [1], [0, 0, 1, 1], [], []>} : vector<5x256xf32>, vector<256x512xf32>, vector<5x512xf32> -> vector<5x512xf32>
    %c0_14 = arith.constant 0 : index
    %c0_15 = arith.constant 0 : index
    %17 = vector.load %arg7[%c0_14, %c0_15] : memref<512x1024xf32, #tpu.memory_space<vmem>>, vector<512x1024xf32>
    %cst_16 = arith.constant dense<0.000000e+00> : vector<5x1024xf32>
    %18 = tpu.matmul %16, %17, %cst_16 {dimension_numbers = #tpu.dot_dimension_numbers<[1], [0], [0], [1], [0, 0, 1, 1], [], []>} : vector<5x512xf32>, vector<512x1024xf32>, vector<5x1024xf32> -> vector<5x1024xf32>
    %c0_17 = arith.constant 0 : index
    %c0_18 = arith.constant 0 : index
    %c0_19 = arith.constant 0 : index
    %19 = vector.load %arg8[%c0_17, %c0_18, %c0_19] : memref<2x5x1024xf32, #tpu.memory_space<vmem>>, vector<1x5x1024xf32>
    %20 = vector.shape_cast %19 : vector<1x5x1024xf32> to vector<5x1024xf32>
    %21 = vector.shape_cast %18 : vector<5x1024xf32> to vector<1x5x1024xf32>
    tpu.vector_store %arg8[%c0_17, %c0_18, %c0_19], %21 {strides = array<i32>} : memref<2x5x1024xf32, #tpu.memory_space<vmem>>, vector<1x5x1024xf32>,
    %22 = vector.extract_strided_slice %13 {offsets = [0, 256], sizes = [5, 256], strides = [1, 1]} : vector<5x512xf32> to vector<5x256xf32>
    %c0_20 = arith.constant 0 : index
    %c0_21 = arith.constant 0 : index
    %23 = vector.load %arg6[%c0_20, %c0_21] : memref<256x512xf32, #tpu.memory_space<vmem>>, vector<256x512xf32>
    %cst_22 = arith.constant dense<0.000000e+00> : vector<5x512xf32>
    %24 = tpu.matmul %22, %23, %cst_22 {dimension_numbers = #tpu.dot_dimension_numbers<[1], [0], [0], [1], [0, 0, 1, 1], [], []>} : vector<5x256xf32>, vector<256x512xf32>, vector<5x512xf32> -> vector<5x512xf32>
    %c0_23 = arith.constant 0 : index
    %c0_24 = arith.constant 0 : index
    %25 = vector.load %arg7[%c0_23, %c0_24] : memref<512x1024xf32, #tpu.memory_space<vmem>>, vector<512x1024xf32>
    %cst_25 = arith.constant dense<0.000000e+00> : vector<5x1024xf32>
    %26 = tpu.matmul %24, %25, %cst_25 {dimension_numbers = #tpu.dot_dimension_numbers<[1], [0], [0], [1], [0, 0, 1, 1], [], []>} : vector<5x512xf32>, vector<512x1024xf32>, vector<5x1024xf32> -> vector<5x1024xf32>
    %c1 = arith.constant 1 : index
    %c0_26 = arith.constant 0 : index
    %c0_27 = arith.constant 0 : index
    %27 = vector.load %arg8[%c1, %c0_26, %c0_27] : memref<2x5x1024xf32, #tpu.memory_space<vmem>>, vector<1x5x1024xf32>
    %28 = vector.shape_cast %27 : vector<1x5x1024xf32> to vector<5x1024xf32>
    %29 = vector.shape_cast %26 : vector<5x1024xf32> to vector<1x5x1024xf32>
    tpu.vector_store %arg8[%c1, %c0_26, %c0_27], %29 {strides = array<i32>} : memref<2x5x1024xf32, #tpu.memory_space<vmem>>, vector<1x5x1024xf32>,
    return
  }
  func.func @transform_0(%arg0: i32) -> (i32, i32) {
    %c0_i32 = arith.constant 0 : i32
    %c0_i32_0 = arith.constant 0 : i32
    return %c0_i32, %arg0 : i32, i32
  }
  func.func @transform_1(%arg0: i32) -> (i32, i32) {
    %c0_i32 = arith.constant 0 : i32
    %c0_i32_0 = arith.constant 0 : i32
    %c0_i32_1 = arith.constant 0 : i32
    return %c0_i32, %c0_i32_0 : i32, i32
  }
  func.func @transform_2(%arg0: i32) -> (i32, i32) {
    %c0_i32 = arith.constant 0 : i32
    %c0_i32_0 = arith.constant 0 : i32
    %c0_i32_1 = arith.constant 0 : i32
    return %c0_i32, %c0_i32_0 : i32, i32
  }
  func.func @transform_3(%arg0: i32) -> (i32, i32) {
    %c0_i32 = arith.constant 0 : i32
    %c0_i32_0 = arith.constant 0 : i32
    %c0_i32_1 = arith.constant 0 : i32
    return %c0_i32, %c0_i32_0 : i32, i32
  }
  func.func @transform_4(%arg0: i32) -> (i32, i32) {
    %c0_i32 = arith.constant 0 : i32
    %c0_i32_0 = arith.constant 0 : i32
    %c0_i32_1 = arith.constant 0 : i32
    return %c0_i32, %c0_i32_0 : i32, i32
  }
  func.func @transform_5(%arg0: i32) -> (i32, i32) {
    %c0_i32 = arith.constant 0 : i32
    %c0_i32_0 = arith.constant 0 : i32
    %c0_i32_1 = arith.constant 0 : i32
    return %c0_i32, %c0_i32_0 : i32, i32
  }
  func.func @transform_6(%arg0: i32) -> (i32, i32) {
    %c0_i32 = arith.constant 0 : i32
    %c0_i32_0 = arith.constant 0 : i32
    %c0_i32_1 = arith.constant 0 : i32
    return %c0_i32, %c0_i32_0 : i32, i32
  }
  func.func @transform_7(%arg0: i32) -> (i32, i32, i32) {
    %c0_i32 = arith.constant 0 : i32
    %c0_i32_0 = arith.constant 0 : i32
    %c0_i32_1 = arith.constant 0 : i32
    return %arg0, %c0_i32, %c0_i32_0 : i32, i32, i32
  }
}

</mosaic_0001>

<llo_original>
// kernel: tpu_custom_call.1
$region0: #{tpu_custom_call.1}
  #allocation0 [shape = 'u32[]', space=smem, size = 0x4, offset = 0x4, fixed_abs, tag = 'smem constant byte address 0x4 - core index']
  #allocation1 [shape = 'u32[144,128]{1,0:T(1,128)}', space=vmem, size = 0x12000, scoped, tag = 'internal scratch']
  %s0 = inlined_call_operand.hbm [shape: bf16[36,512], index: 0, kind: input, shape index: {}]
  %s1 = inlined_call_operand.vmem [shape: bf16[64,36], index: 1, kind: input, shape index: {}]
  %s2 = inlined_call_operand.vmem [shape: f32[64,1], index: 2, kind: input, shape index: {}]
  %s3 = inlined_call_operand.hbm [shape: bf16[5,64], index: 3, kind: input, shape index: {}]
  %s4 = inlined_call_operand.vmem [shape: f32[5,1], index: 4, kind: input, shape index: {}]
  %s5 = inlined_call_operand.hbm [shape: f32[256,512], index: 5, kind: input, shape index: {}]
  %s6 = inlined_call_operand.hbm [shape: f32[512,1024], index: 6, kind: input, shape index: {}]
  %s7 = inlined_call_operand.vmem [shape: f32[2,5,1024], index: 7, kind: output, shape index: {}]
  %s8 = sld [smem:[#allocation0]]
  $region54: #{tpu_custom_call.1} parent=0
    _
  %s10 = ssub.s32 1, %s8
  %s11 = scalar_select 0, %s10, %s8
  $region1: #{tpu_custom_call.1} parent=0
    #allocation2 [shape = 'u8[40960]{0}', space=vmem, size = 0xa000, scoped, tag = 'input window, operand 0, single buffered']
    #allocation3 [shape = 's32[1]{0}', space=sflag, size = 0x4, scoped, tag = 'scoped memory for tpu_custom_call.1']
    #allocation4 [shape = 'u8[2048]{0}', space=vmem, size = 0x800, scoped, tag = 'input window, operand 3, single buffered']
    #allocation5 [shape = 's32[1]{0}', space=sflag, size = 0x4, scoped, tag = 'scoped memory for tpu_custom_call.1']
    #allocation6 [shape = 'u8[524288]{0}', space=vmem, size = 0x80000, scoped, tag = 'input window, operand 5, single buffered']
    #allocation7 [shape = 'u8[2097152]{0}', space=vmem, size = 0x200000, scoped, tag = 'input window, operand 6, single buffered']
    #allocation8 [shape = 's32[1]{0}', space=sflag, size = 0x4, scoped, tag = 'scoped memory for tpu_custom_call.1']
    %12 = vsyncpa [#allocation3], 0
    %13 = vsyncpa [#allocation5], 0
    %14 = vsyncpa [#allocation8], 0
    // Predicated region
    $region2: #{tpu_custom_call.1} parent=1 // pred_check
      _
    $region3: #{tpu_custom_call.1} parent=1 // pred_check_branch
      %16 = sbr.rel (0) target = $region5
    $region4: #{tpu_custom_call.1} parent=1 // pred_region
      %s18 = ssub.s32 1280, 1280
      %19 = vsyncadd [#allocation3], %s18
      %s20 = sshll.u32 [#allocation2], 4
      %s21 = int_to_ptr.vmem [resolvable:$true] %s20
      %26 = dma.hbm_to_vmem [thread:$0]  %s0, 1280, %s21, [#allocation3], 256, 256, 16
    $region5: #{tpu_custom_call.1} parent=1 // pred_fallthru
      _
    // Predicated region
    $region6: #{tpu_custom_call.1} parent=1 // pred_check
      _
    $region7: #{tpu_custom_call.1} parent=1 // pred_check_branch
      %28 = sbr.rel (0) target = $region9
    $region8: #{tpu_custom_call.1} parent=1 // pred_region
      _
    $region9: #{tpu_custom_call.1} parent=1 // pred_fallthru
      _
    // Predicated region
    $region10: #{tpu_custom_call.1} parent=1 // pred_check
      _
    $region11: #{tpu_custom_call.1} parent=1 // pred_check_branch
      %30 = sbr.rel (0) target = $region13
    $region12: #{tpu_custom_call.1} parent=1 // pred_region
      _
    $region13: #{tpu_custom_call.1} parent=1 // pred_fallthru
      _
    // Predicated region
    $region14: #{tpu_custom_call.1} parent=1 // pred_check
      _
    $region15: #{tpu_custom_call.1} parent=1 // pred_check_branch
      %32 = sbr.rel (0) target = $region17
    $region16: #{tpu_custom_call.1} parent=1 // pred_region
      %s34 = ssub.s32 64, 64
      %35 = vsyncadd [#allocation5], %s34
      %s37 = sshll.u32 [#allocation4], 4
      %s38 = int_to_ptr.vmem [resolvable:$true] %s37
      %40 = dma.hbm_to_vmem [thread:$0]  %s3, 64, %s38, [#allocation5]
    $region17: #{tpu_custom_call.1} parent=1 // pred_fallthru
      _
    // Predicated region
    $region18: #{tpu_custom_call.1} parent=1 // pred_check
      _
    $region19: #{tpu_custom_call.1} parent=1 // pred_check_branch
      %42 = sbr.rel (0) target = $region21
    $region20: #{tpu_custom_call.1} parent=1 // pred_region
      _
    $region21: #{tpu_custom_call.1} parent=1 // pred_fallthru
      _
    // Predicated region
    $region22: #{tpu_custom_call.1} parent=1 // pred_check
      _
    $region23: #{tpu_custom_call.1} parent=1 // pred_check_branch
      %44 = sbr.rel (0) target = $region25
    $region24: #{tpu_custom_call.1} parent=1 // pred_region
      %s46 = ssub.s32 16384, 16384
      %47 = vsyncadd [#allocation5], %s46
      %s48 = sshll.u32 [#allocation6], 4
      %s49 = int_to_ptr.vmem [resolvable:$true] %s48
      %54 = dma.hbm_to_vmem [thread:$0]  %s5, 16384, %s49, [#allocation5], 512, 512, 32
    $region25: #{tpu_custom_call.1} parent=1 // pred_fallthru
      _
    // Predicated region
    $region26: #{tpu_custom_call.1} parent=1 // pred_check
      _
    $region27: #{tpu_custom_call.1} parent=1 // pred_check_branch
      %56 = sbr.rel (0) target = $region29
    $region28: #{tpu_custom_call.1} parent=1 // pred_region
      %s58 = ssub.s32 65536, 65536
      %59 = vsyncadd [#allocation8], %s58
      %s60 = sshll.u32 [#allocation7], 4
      %s61 = int_to_ptr.vmem [resolvable:$true] %s60
      %66 = dma.hbm_to_vmem [thread:$0]  %s6, 65536, %s61, [#allocation8], 1024, 1024, 64
    $region29: #{tpu_custom_call.1} parent=1 // pred_fallthru
      _
    // Predicated region
    $region30: #{tpu_custom_call.1} parent=1 // pred_check
      _
    $region31: #{tpu_custom_call.1} parent=1 // pred_check_branch
      %68 = sbr.rel (0) target = $region33
    $region32: #{tpu_custom_call.1} parent=1 // pred_region
      %69 = dma.done [#allocation3], 1280
    $region33: #{tpu_custom_call.1} parent=1 // pred_fallthru
      _
    // Predicated region
    $region34: #{tpu_custom_call.1} parent=1 // pred_check
      _
    $region35: #{tpu_custom_call.1} parent=1 // pred_check_branch
      %71 = sbr.rel (0) target = $region37
    $region36: #{tpu_custom_call.1} parent=1 // pred_region
      %72 = dma.done [#allocation5], 64
    $region37: #{tpu_custom_call.1} parent=1 // pred_fallthru
      _
    // Predicated region
    $region38: #{tpu_custom_call.1} parent=1 // pred_check
      _
    $region39: #{tpu_custom_call.1} parent=1 // pred_check_branch
      %74 = sbr.rel (0) target = $region41
    $region40: #{tpu_custom_call.1} parent=1 // pred_region
      %75 = dma.done [#allocation5], 16384
    $region41: #{tpu_custom_call.1} parent=1 // pred_fallthru
      _
    // Predicated region
    $region42: #{tpu_custom_call.1} parent=1 // pred_check
      _
    $region43: #{tpu_custom_call.1} parent=1 // pred_check_branch
      %77 = sbr.rel (0) target = $region45
    $region44: #{tpu_custom_call.1} parent=1 // pred_region
      %78 = dma.done [#allocation8], 65536
    $region45: #{tpu_custom_call.1} parent=1 // pred_fallthru
      _
    %v80 = vld [vmem:[%s1] sm:$0xf]
    %v81 = vld [vmem:[%s1 + $0x4] sm:$0xf]
    %v82 = vld [vmem:[%s1 + $0x8] sm:$0xf]
    %v83 = vld [vmem:[%s1 + $0xc] sm:$0xf]
    %v84 = vld [vmem:[%s1 + $0x10] sm:$0xf]
    %v85 = vld [vmem:[%s1 + $0x14] sm:$0xf]
    %v86 = vld [vmem:[%s1 + $0x18] sm:$0xf]
    %v87 = vld [vmem:[%s1 + $0x1c] sm:$0xf]
    %v88 = vld [vmem:[#allocation2] sm:$0xff]
    %v89 = vld [vmem:[#allocation2 + $0x8] sm:$0xff]
    %v90 = vld [vmem:[#allocation2 + $0x10] sm:$0xff]
    %v91 = vld [vmem:[#allocation2 + $0x18] sm:$0xff]
    %v92 = vld [vmem:[#allocation2 + $0x20] sm:$0xff]
    %v93 = vld [vmem:[#allocation2 + $0x28] sm:$0xff]
    %v94 = vld [vmem:[#allocation2 + $0x30] sm:$0xff]
    %v95 = vld [vmem:[#allocation2 + $0x38] sm:$0xff]
    %v96 = vld [vmem:[#allocation2 + $0x40] sm:$0x33]
    %v97 = vld [vmem:[#allocation2 + $0x48] sm:$0x33]
    %v98 = vld [vmem:[%s2] sm:$0xff]
    %v99 = vld [vmem:[%s2 + $0x8] sm:$0xff]
    %v100 = vld [vmem:[%s2 + $0x10] sm:$0xff]
    %v101 = vld [vmem:[%s2 + $0x18] sm:$0xff]
    %v102 = vld [vmem:[%s2 + $0x20] sm:$0xff]
    %v103 = vld [vmem:[%s2 + $0x28] sm:$0xff]
    %v104 = vld [vmem:[%s2 + $0x30] sm:$0xff]
    %v105 = vld [vmem:[%s2 + $0x38] sm:$0xff]
    %107 = vset.pattern.permute.xlu0 0
    %108 = vperm.xlu0 %107, %v98
    %v109 = vpop.permute.xlu0 %108
    %112 = vset.pattern.permute.xlu0 0
    %113 = vperm.xlu0 %112, %v99
    %v114 = vpop.permute.xlu0 %113
    %117 = vset.pattern.permute.xlu0 0
    %118 = vperm.xlu0 %117, %v100
    %v119 = vpop.permute.xlu0 %118
    %122 = vset.pattern.permute.xlu0 0
    %123 = vperm.xlu0 %122, %v101
    %v124 = vpop.permute.xlu0 %123
    %127 = vset.pattern.permute.xlu0 0
    %128 = vperm.xlu0 %127, %v102
    %v129 = vpop.permute.xlu0 %128
    %132 = vset.pattern.permute.xlu0 0
    %133 = vperm.xlu0 %132, %v103
    %v134 = vpop.permute.xlu0 %133
    %137 = vset.pattern.permute.xlu0 0
    %138 = vperm.xlu0 %137, %v104
    %v139 = vpop.permute.xlu0 %138
    %142 = vset.pattern.permute.xlu0 0
    %143 = vperm.xlu0 %142, %v105
    %v144 = vpop.permute.xlu0 %143
    %v154 = vunpack.c.l.b16 %v80
    %v155 = vunpack.c.l.b16 %v81
    %v156 = vunpack.c.l.b16 %v82
    %v157 = vunpack.c.l.b16 %v83
    %v158 = vunpack.c.l.b16 %v84
    %v159 = vunpack.c.l.b16 %v85
    %v160 = vunpack.c.l.b16 %v86
    %v161 = vunpack.c.l.b16 %v87
    %v162 = vpack.c.b16 %v155, %v154
    %v163 = vpack.c.b16 %v157, %v156
    %v164 = vpack.c.b16 %v159, %v158
    %v165 = vpack.c.b16 %v161, %v160
    %v176 = vunpack.c.l.b16 %v88
    %v177 = vunpack.c.h.b16 %v88
    %v178 = vunpack.c.l.b16 %v89
    %v179 = vunpack.c.h.b16 %v89
    %v180 = vunpack.c.l.b16 %v90
    %v181 = vunpack.c.h.b16 %v90
    %v182 = vunpack.c.l.b16 %v91
    %v183 = vunpack.c.h.b16 %v91
    %v184 = vunpack.c.l.b16 %v92
    %v185 = vunpack.c.h.b16 %v92
    %v186 = vunpack.c.l.b16 %v93
    %v187 = vunpack.c.h.b16 %v93
    %v188 = vunpack.c.l.b16 %v94
    %v189 = vunpack.c.h.b16 %v94
    %v190 = vunpack.c.l.b16 %v95
    %v191 = vunpack.c.h.b16 %v95
    %v192 = vunpack.c.l.b16 %v96
    %v193 = vunpack.c.h.b16 %v96
    %v194 = vunpack.c.l.b16 %v97
    %v195 = vunpack.c.h.b16 %v97
    %v196 = vpack.c.b16 %v180, %v176
    %v197 = vpack.c.b16 %v181, %v177
    %v198 = vpack.c.b16 %v182, %v178
    %v199 = vpack.c.b16 %v183, %v179
    %v200 = vpack.c.b16 %v188, %v184
    %v201 = vpack.c.b16 %v189, %v185
    %v202 = vpack.c.b16 %v190, %v186
    %v203 = vpack.c.b16 %v191, %v187
    %v204 = vpack.c.b16 %v192, %v192
    %v205 = vpack.c.b16 %v193, %v193
    %v206 = vpack.c.b16 %v194, %v194
    %v207 = vpack.c.b16 %v195, %v195
    %vm216 = vcmask 293888
    %v218 = vsel %vm216, %v162, 0
    %v221 = vsel %vm216, %v163, 0
    %v224 = vsel %vm216, %v164, 0
    %v227 = vsel %vm216, %v165, 0
    %vm229 = vcmask 1041408
    %v231 = vsel %vm229, %v204, 0
    %v234 = vsel %vm229, %v205, 0
    %v237 = vsel %vm229, %v206, 0
    %v240 = vsel %vm229, %v207, 0
    %242 = vmatprep.subr.bf16.mxu0 %v197
    %243 = vmatpush1.bf16.msra.mxu0 %v196
    %244 = vmatprep.subr.bf16.mxu0 %v201
    %245 = vmatpush1.bf16.msra.mxu0 %v200
    %246 = vmatprep.subr.bf16.mxu0 %v234
    %247 = vmatpush1.bf16.msra.mxu0 %v231
    %248 = vmatprep.subr.bf16.mxu0 0
    %249 = vmatpush1.bf16.msra.mxu0 0
    %250 = vmatprep.subr.bf16.mxu0 0
    %251 = vmatpush1.bf16.msra.mxu0 0
    %252 = vmatprep.subr.bf16.mxu0 0
    %253 = vmatpush1.bf16.msra.mxu0 0
    %254 = vmatprep.subr.bf16.mxu0 0
    %255 = vmatpush1.bf16.msra.mxu0 0
    %256 = vmatprep.subr.bf16.mxu0 0
    %257 = vmatpush1.bf16.msra.mxu0 0
    %258 = vmatprep.subr.bf16.mxu0 0
    %259 = vmatpush1.bf16.msra.mxu0 0
    %260 = vmatprep.subr.bf16.mxu0 0
    %261 = vmatpush1.bf16.msra.mxu0 0
    %262 = vmatprep.subr.bf16.mxu0 0
    %263 = vmatpush1.bf16.msra.mxu0 0
    %264 = vmatprep.subr.bf16.mxu0 0
    %265 = vmatpush1.bf16.msra.mxu0 0
    %266 = vmatprep.subr.bf16.mxu0 0
    %267 = vmatpush1.bf16.msra.mxu0 0
    %268 = vmatprep.subr.bf16.mxu0 0
    %269 = vmatpush1.bf16.msra.mxu0 0
    %270 = vmatprep.subr.bf16.mxu0 0
    %271 = vmatpush1.bf16.msra.mxu0 0
    %272 = vmatprep.subr.bf16.mxu0 0
    %273 = vmatpush1.bf16.msra.mxu0 0
    %274 = vmatprep.mubr.bf16.mxu0 0
    %275 = vmatmul.mubr.bf16.gmra.mrb[0].mxu0 %v218
    %v276 = vpop.f32.mrb[0].mxu0
    %v277 = vadd.f32 %v109, %v276
    %v278 = vpop.f32.mrb[0].mxu0
    %v279 = vadd.f32 %v109, %v278
    %v280 = vpop.f32.mrb[0].mxu0
    %v281 = vadd.f32 %v114, %v280
    %v282 = vpop.f32.mrb[0].mxu0
    %v283 = vadd.f32 %v114, %v282
    %284 = vmatprep.mubr.bf16.mxu0 0
    %285 = vmatmul.mubr.bf16.gmra.mrb[0].mxu0 %v221
    %v286 = vpop.f32.mrb[0].mxu0
    %v287 = vadd.f32 %v119, %v286
    %v288 = vpop.f32.mrb[0].mxu0
    %v289 = vadd.f32 %v119, %v288
    %v290 = vpop.f32.mrb[0].mxu0
    %v291 = vadd.f32 %v124, %v290
    %v292 = vpop.f32.mrb[0].mxu0
    %v293 = vadd.f32 %v124, %v292
    %294 = vmatprep.mubr.bf16.mxu0 0
    %295 = vmatmul.mubr.bf16.gmra.mrb[0].mxu0 %v224
    %v296 = vpop.f32.mrb[0].mxu0
    %v297 = vadd.f32 %v129, %v296
    %v298 = vpop.f32.mrb[0].mxu0
    %v299 = vadd.f32 %v129, %v298
    %v300 = vpop.f32.mrb[0].mxu0
    %v301 = vadd.f32 %v134, %v300
    %v302 = vpop.f32.mrb[0].mxu0
    %v303 = vadd.f32 %v134, %v302
    %304 = vmatprep.mubr.bf16.mxu0 0
    %305 = vmatmul.mubr.bf16.gmra.mrb[0].mxu0 %v227
    %v306 = vpop.f32.mrb[0].mxu0
    %v307 = vadd.f32 %v139, %v306
    %v308 = vpop.f32.mrb[0].mxu0
    %v309 = vadd.f32 %v139, %v308
    %v310 = vpop.f32.mrb[0].mxu0
    %v311 = vadd.f32 %v144, %v310
    %v312 = vpop.f32.mrb[0].mxu0
    %v313 = vadd.f32 %v144, %v312
    %314 = vdwg.mxu0
    %315 = vmatprep.subr.bf16.mxu0 %v199
    %316 = vmatpush1.bf16.msra.mxu0 %v198
    %317 = vmatprep.subr.bf16.mxu0 %v203
    %318 = vmatpush1.bf16.msra.mxu0 %v202
    %319 = vmatprep.subr.bf16.mxu0 %v240
    %320 = vmatpush1.bf16.msra.mxu0 %v237
    %321 = vmatprep.subr.bf16.mxu0 0
    %322 = vmatpush1.bf16.msra.mxu0 0
    %323 = vmatprep.subr.bf16.mxu0 0
    %324 = vmatpush1.bf16.msra.mxu0 0
    %325 = vmatprep.subr.bf16.mxu0 0
    %326 = vmatpush1.bf16.msra.mxu0 0
    %327 = vmatprep.subr.bf16.mxu0 0
    %328 = vmatpush1.bf16.msra.mxu0 0
    %329 = vmatprep.subr.bf16.mxu0 0
    %330 = vmatpush1.bf16.msra.mxu0 0
    %331 = vmatprep.subr.bf16.mxu0 0
    %332 = vmatpush1.bf16.msra.mxu0 0
    %333 = vmatprep.subr.bf16.mxu0 0
    %334 = vmatpush1.bf16.msra.mxu0 0
    %335 = vmatprep.subr.bf16.mxu0 0
    %336 = vmatpush1.bf16.msra.mxu0 0
    %337 = vmatprep.subr.bf16.mxu0 0
    %338 = vmatpush1.bf16.msra.mxu0 0
    %339 = vmatprep.subr.bf16.mxu0 0
    %340 = vmatpush1.bf16.msra.mxu0 0
    %341 = vmatprep.subr.bf16.mxu0 0
    %342 = vmatpush1.bf16.msra.mxu0 0
    %343 = vmatprep.subr.bf16.mxu0 0
    %344 = vmatpush1.bf16.msra.mxu0 0
    %345 = vmatprep.subr.bf16.mxu0 0
    %346 = vmatpush1.bf16.msra.mxu0 0
    %347 = vmatprep.mubr.bf16.mxu0 0
    %348 = vmatmul.mubr.bf16.gmra.mrb[0].mxu0 %v218
    %v349 = vpop.f32.mrb[0].mxu0
    %v350 = vadd.f32 %v109, %v349
    %v351 = vpop.f32.mrb[0].mxu0
    %v352 = vadd.f32 %v109, %v351
    %v353 = vpop.f32.mrb[0].mxu0
    %v354 = vadd.f32 %v114, %v353
    %v355 = vpop.f32.mrb[0].mxu0
    %v356 = vadd.f32 %v114, %v355
    %357 = vmatprep.mubr.bf16.mxu0 0
    %358 = vmatmul.mubr.bf16.gmra.mrb[0].mxu0 %v221
    %v359 = vpop.f32.mrb[0].mxu0
    %v360 = vadd.f32 %v119, %v359
    %v361 = vpop.f32.mrb[0].mxu0
    %v362 = vadd.f32 %v119, %v361
    %v363 = vpop.f32.mrb[0].mxu0
    %v364 = vadd.f32 %v124, %v363
    %v365 = vpop.f32.mrb[0].mxu0
    %v366 = vadd.f32 %v124, %v365
    %367 = vmatprep.mubr.bf16.mxu0 0
    %368 = vmatmul.mubr.bf16.gmra.mrb[0].mxu0 %v224
    %v369 = vpop.f32.mrb[0].mxu0
    %v370 = vadd.f32 %v129, %v369
    %v371 = vpop.f32.mrb[0].mxu0
    %v372 = vadd.f32 %v129, %v371
    %v373 = vpop.f32.mrb[0].mxu0
    %v374 = vadd.f32 %v134, %v373
    %v375 = vpop.f32.mrb[0].mxu0
    %v376 = vadd.f32 %v134, %v375
    %377 = vmatprep.mubr.bf16.mxu0 0
    %378 = vmatmul.mubr.bf16.gmra.mrb[0].mxu0 %v227
    %v379 = vpop.f32.mrb[0].mxu0
    %v380 = vadd.f32 %v139, %v379
    %v381 = vpop.f32.mrb[0].mxu0
    %v382 = vadd.f32 %v139, %v381
    %v383 = vpop.f32.mrb[0].mxu0
    %v384 = vadd.f32 %v144, %v383
    %v385 = vpop.f32.mrb[0].mxu0
    %v386 = vadd.f32 %v144, %v385
    %387 = vdwg.mxu0
    %v388 = vmax.f32 %v277, 0.0
    %v389 = vmax.f32 %v279, 0.0
    %v390 = vmax.f32 %v350, 0.0
    %v391 = vmax.f32 %v352, 0.0
    %v392 = vmax.f32 %v281, 0.0
    %v393 = vmax.f32 %v283, 0.0
    %v394 = vmax.f32 %v354, 0.0
    %v395 = vmax.f32 %v356, 0.0
    %v396 = vmax.f32 %v287, 0.0
    %v397 = vmax.f32 %v289, 0.0
    %v398 = vmax.f32 %v360, 0.0
    %v399 = vmax.f32 %v362, 0.0
    %v400 = vmax.f32 %v291, 0.0
    %v401 = vmax.f32 %v293, 0.0
    %v402 = vmax.f32 %v364, 0.0
    %v403 = vmax.f32 %v366, 0.0
    %v404 = vmax.f32 %v297, 0.0
    %v405 = vmax.f32 %v299, 0.0
    %v406 = vmax.f32 %v370, 0.0
    %v407 = vmax.f32 %v372, 0.0
    %v408 = vmax.f32 %v301, 0.0
    %v409 = vmax.f32 %v303, 0.0
    %v410 = vmax.f32 %v374, 0.0
    %v411 = vmax.f32 %v376, 0.0
    %v412 = vmax.f32 %v307, 0.0
    %v413 = vmax.f32 %v309, 0.0
    %v414 = vmax.f32 %v380, 0.0
    %v415 = vmax.f32 %v382, 0.0
    %v416 = vmax.f32 %v311, 0.0
    %v417 = vmax.f32 %v313, 0.0
    %v418 = vmax.f32 %v384, 0.0
    %v419 = vmax.f32 %v386, 0.0
    %v420 = vld [vmem:[#allocation4] sm:$0x7]
    %v421 = vpack.c.bf16 %v392, %v388
    %v422 = vpack.c.bf16 %v393, %v389
    %v423 = vpack.c.bf16 %v394, %v390
    %v424 = vpack.c.bf16 %v395, %v391
    %v425 = vpack.c.bf16 %v400, %v396
    %v426 = vpack.c.bf16 %v401, %v397
    %v427 = vpack.c.bf16 %v402, %v398
    %v428 = vpack.c.bf16 %v403, %v399
    %v429 = vpack.c.bf16 %v408, %v404
    %v430 = vpack.c.bf16 %v409, %v405
    %v431 = vpack.c.bf16 %v410, %v406
    %v432 = vpack.c.bf16 %v411, %v407
    %v433 = vpack.c.bf16 %v416, %v412
    %v434 = vpack.c.bf16 %v417, %v413
    %v435 = vpack.c.bf16 %v418, %v414
    %v436 = vpack.c.bf16 %v419, %v415
    %v437 = vld [vmem:[%s4] sm:$0x1f]
    %439 = vset.pattern.permute.xlu0 0
    %440 = vperm.xlu0 %439, %v437
    %v441 = vpop.permute.xlu0 %440
    %vm443 = vcmask 523264
    %v445 = vsel %vm443, %v420, 0
    %447 = vmatprep.subr.bf16.mxu0 %v422
    %448 = vmatpush1.bf16.msra.mxu0 %v421
    %449 = vmatprep.subr.bf16.mxu0 %v426
    %450 = vmatpush1.bf16.msra.mxu0 %v425
    %451 = vmatprep.subr.bf16.mxu0 %v430
    %452 = vmatpush1.bf16.msra.mxu0 %v429
    %453 = vmatprep.subr.bf16.mxu0 %v434
    %454 = vmatpush1.bf16.msra.mxu0 %v433
    %455 = vmatprep.subr.bf16.mxu0 0
    %456 = vmatpush1.bf16.msra.mxu0 0
    %457 = vmatprep.subr.bf16.mxu0 0
    %458 = vmatpush1.bf16.msra.mxu0 0
    %459 = vmatprep.subr.bf16.mxu0 0
    %460 = vmatpush1.bf16.msra.mxu0 0
    %461 = vmatprep.subr.bf16.mxu0 0
    %462 = vmatpush1.bf16.msra.mxu0 0
    %463 = vmatprep.subr.bf16.mxu0 0
    %464 = vmatpush1.bf16.msra.mxu0 0
    %465 = vmatprep.subr.bf16.mxu0 0
    %466 = vmatpush1.bf16.msra.mxu0 0
    %467 = vmatprep.subr.bf16.mxu0 0
    %468 = vmatpush1.bf16.msra.mxu0 0
    %469 = vmatprep.subr.bf16.mxu0 0
    %470 = vmatpush1.bf16.msra.mxu0 0
    %471 = vmatprep.subr.bf16.mxu0 0
    %472 = vmatpush1.bf16.msra.mxu0 0
    %473 = vmatprep.subr.bf16.mxu0 0
    %474 = vmatpush1.bf16.msra.mxu0 0
    %475 = vmatprep.subr.bf16.mxu0 0
    %476 = vmatpush1.bf16.msra.mxu0 0
    %477 = vmatprep.subr.bf16.mxu0 0
    %478 = vmatpush1.bf16.msra.mxu0 0
    %479 = vmatprep.mubr.bf16.mxu0 0
    %480 = vmatmul.mubr.bf16.gmra.mrb[0].mxu0 %v445
    %v481 = vpop.f32.mrb[0].mxu0
    %v482 = vadd.f32 %v441, %v481
    %v483 = vpop.f32.mrb[0].mxu0
    %v484 = vadd.f32 %v441, %v483
    %v485 = vpop.f32.mrb[0].mxu0
    %v486 = vpop.f32.mrb[0].mxu0
    %487 = vdwg.mxu0
    %488 = vmatprep.subr.bf16.mxu0 %v424
    %489 = vmatpush1.bf16.msra.mxu0 %v423
    %490 = vmatprep.subr.bf16.mxu0 %v428
    %491 = vmatpush1.bf16.msra.mxu0 %v427
    %492 = vmatprep.subr.bf16.mxu0 %v432
    %493 = vmatpush1.bf16.msra.mxu0 %v431
    %494 = vmatprep.subr.bf16.mxu0 %v436
    %495 = vmatpush1.bf16.msra.mxu0 %v435
    %496 = vmatprep.subr.bf16.mxu0 0
    %497 = vmatpush1.bf16.msra.mxu0 0
    %498 = vmatprep.subr.bf16.mxu0 0
    %499 = vmatpush1.bf16.msra.mxu0 0
    %500 = vmatprep.subr.bf16.mxu0 0
    %501 = vmatpush1.bf16.msra.mxu0 0
    %502 = vmatprep.subr.bf16.mxu0 0
    %503 = vmatpush1.bf16.msra.mxu0 0
    %504 = vmatprep.subr.bf16.mxu0 0
    %505 = vmatpush1.bf16.msra.mxu0 0
    %506 = vmatprep.subr.bf16.mxu0 0
    %507 = vmatpush1.bf16.msra.mxu0 0
    %508 = vmatprep.subr.bf16.mxu0 0
    %509 = vmatpush1.bf16.msra.mxu0 0
    %510 = vmatprep.subr.bf16.mxu0 0
    %511 = vmatpush1.bf16.msra.mxu0 0
    %512 = vmatprep.subr.bf16.mxu0 0
    %513 = vmatpush1.bf16.msra.mxu0 0
    %514 = vmatprep.subr.bf16.mxu0 0
    %515 = vmatpush1.bf16.msra.mxu0 0
    %516 = vmatprep.subr.bf16.mxu0 0
    %517 = vmatpush1.bf16.msra.mxu0 0
    %518 = vmatprep.subr.bf16.mxu0 0
    %519 = vmatpush1.bf16.msra.mxu0 0
    %520 = vmatprep.mubr.bf16.mxu0 0
    %521 = vmatmul.mubr.bf16.gmra.mrb[0].mxu0 %v445
    %v522 = vpop.f32.mrb[0].mxu0
    %v523 = vadd.f32 %v441, %v522
    %v524 = vpop.f32.mrb[0].mxu0
    %v525 = vadd.f32 %v441, %v524
    %v526 = vpop.f32.mrb[0].mxu0
    %v527 = vpop.f32.mrb[0].mxu0
    %528 = vdwg.mxu0
    %v529 = vld [vmem:[#allocation6] sm:$0xff]
    %v530 = vld [vmem:[#allocation6 + $0x8] sm:$0xff]
    %v531 = vld [vmem:[#allocation6 + $0x10] sm:$0xff]
    %v532 = vld [vmem:[#allocation6 + $0x18] sm:$0xff]
    %v533 = vld [vmem:[#allocation6 + $0x20] sm:$0xff]
    %v534 = vld [vmem:[#allocation6 + $0x28] sm:$0xff]
    %v535 = vld [vmem:[#allocation6 + $0x30] sm:$0xff]
    %v536 = vld [vmem:[#allocation6 + $0x38] sm:$0xff]
    %v537 = vld [vmem:[#allocation6 + $0x40] sm:$0xff]
    %v538 = vld [vmem:[#allocation6 + $0x48] sm:$0xff]
    %v539 = vld [vmem:[#allocation6 + $0x50] sm:$0xff]
    %v540 = vld [vmem:[#allocation6 + $0x58] sm:$0xff]
    %v541 = vld [vmem:[#allocation6 + $0x60] sm:$0xff]
    %v542 = vld [vmem:[#allocation6 + $0x68] sm:$0xff]
    %v543 = vld [vmem:[#allocation6 + $0x70] sm:$0xff]
    %v544 = vld [vmem:[#allocation6 + $0x78] sm:$0xff]
    %v545 = vld [vmem:[#allocation6 + $0x80] sm:$0xff]
    %v546 = vld [vmem:[#allocation6 + $0x88] sm:$0xff]
    %v547 = vld [vmem:[#allocation6 + $0x90] sm:$0xff]
    %v548 = vld [vmem:[#allocation6 + $0x98] sm:$0xff]
    %v549 = vld [vmem:[#allocation6 + $0xa0] sm:$0xff]
    %v550 = vld [vmem:[#allocation6 + $0xa8] sm:$0xff]
    %v551 = vld [vmem:[#allocation6 + $0xb0] sm:$0xff]
    %v552 = vld [vmem:[#allocation6 + $0xb8] sm:$0xff]
    %v553 = vld [vmem:[#allocation6 + $0xc0] sm:$0xff]
    %v554 = vld [vmem:[#allocation6 + $0xc8] sm:$0xff]
    %v555 = vld [vmem:[#allocation6 + $0xd0] sm:$0xff]
    %v556 = vld [vmem:[#allocation6 + $0xd8] sm:$0xff]
    %v557 = vld [vmem:[#allocation6 + $0xe0] sm:$0xff]
    %v558 = vld [vmem:[#allocation6 + $0xe8] sm:$0xff]
    %v559 = vld [vmem:[#allocation6 + $0xf0] sm:$0xff]
    %v560 = vld [vmem:[#allocation6 + $0xf8] sm:$0xff]
    %v561 = vld [vmem:[#allocation6 + $0x100] sm:$0xff]
    %v562 = vld [vmem:[#allocation6 + $0x108] sm:$0xff]
    %v563 = vld [vmem:[#allocation6 + $0x110] sm:$0xff]
    %v564 = vld [vmem:[#allocation6 + $0x118] sm:$0xff]
    %v565 = vld [vmem:[#allocation6 + $0x120] sm:$0xff]
    %v566 = vld [vmem:[#allocation6 + $0x128] sm:$0xff]
    %v567 = vld [vmem:[#allocation6 + $0x130] sm:$0xff]
    %v568 = vld [vmem:[#allocation6 + $0x138] sm:$0xff]
    %v569 = vld [vmem:[#allocation6 + $0x140] sm:$0xff]
    %v570 = vld [vmem:[#allocation6 + $0x148] sm:$0xff]
    %v571 = vld [vmem:[#allocation6 + $0x150] sm:$0xff]
    %v572 = vld [vmem:[#allocation6 + $0x158] sm:$0xff]
    %v573 = vld [vmem:[#allocation6 + $0x160] sm:$0xff]
    %v574 = vld [vmem:[#allocation6 + $0x168] sm:$0xff]
    %v575 = vld [vmem:[#allocation6 + $0x170] sm:$0xff]
    %v576 = vld [vmem:[#allocation6 + $0x178] sm:$0xff]
    %v577 = vld [vmem:[#allocation6 + $0x180] sm:$0xff]
    %v578 = vld [vmem:[#allocation6 + $0x188] sm:$0xff]
    %v579 = vld [vmem:[#allocation6 + $0x190] sm:$0xff]
    %v580 = vld [vmem:[#allocation6 + $0x198] sm:$0xff]
    %v581 = vld [vmem:[#allocation6 + $0x1a0] sm:$0xff]
    %v582 = vld [vmem:[#allocation6 + $0x1a8] sm:$0xff]
    %v583 = vld [vmem:[#allocation6 + $0x1b0] sm:$0xff]
    %v584 = vld [vmem:[#allocation6 + $0x1b8] sm:$0xff]
    %v585 = vld [vmem:[#allocation6 + $0x1c0] sm:$0xff]
    %v586 = vld [vmem:[#allocation6 + $0x1c8] sm:$0xff]
    %v587 = vld [vmem:[#allocation6 + $0x1d0] sm:$0xff]
    %v588 = vld [vmem:[#allocation6 + $0x1d8] sm:$0xff]
    %v589 = vld [vmem:[#allocation6 + $0x1e0] sm:$0xff]
    %v590 = vld [vmem:[#allocation6 + $0x1e8] sm:$0xff]
    %v591 = vld [vmem:[#allocation6 + $0x1f0] sm:$0xff]
    %v592 = vld [vmem:[#allocation6 + $0x1f8] sm:$0xff]
    %v593 = vld [vmem:[#allocation6 + $0x200] sm:$0xff]
    %v594 = vld [vmem:[#allocation6 + $0x208] sm:$0xff]
    %v595 = vld [vmem:[#allocation6 + $0x210] sm:$0xff]
    %v596 = vld [vmem:[#allocation6 + $0x218] sm:$0xff]
    %v597 = vld [vmem:[#allocation6 + $0x220] sm:$0xff]
    %v598 = vld [vmem:[#allocation6 + $0x228] sm:$0xff]
    %v599 = vld [vmem:[#allocation6 + $0x230] sm:$0xff]
    %v600 = vld [vmem:[#allocation6 + $0x238] sm:$0xff]
    %v601 = vld [vmem:[#allocation6 + $0x240] sm:$0xff]
    %v602 = vld [vmem:[#allocation6 + $0x248] sm:$0xff]
    %v603 = vld [vmem:[#allocation6 + $0x250] sm:$0xff]
    %v604 = vld [vmem:[#allocation6 + $0x258] sm:$0xff]
    %v605 = vld [vmem:[#allocation6 + $0x260] sm:$0xff]
    %v606 = vld [vmem:[#allocation6 + $0x268] sm:$0xff]
    %v607 = vld [vmem:[#allocation6 + $0x270] sm:$0xff]
    %v608 = vld [vmem:[#allocation6 + $0x278] sm:$0xff]
    %v609 = vld [vmem:[#allocation6 + $0x280] sm:$0xff]
    %v610 = vld [vmem:[#allocation6 + $0x288] sm:$0xff]
    %v611 = vld [vmem:[#allocation6 + $0x290] sm:$0xff]
    %v612 = vld [vmem:[#allocation6 + $0x298] sm:$0xff]
    %v613 = vld [vmem:[#allocation6 + $0x2a0] sm:$0xff]
    %v614 = vld [vmem:[#allocation6 + $0x2a8] sm:$0xff]
    %v615 = vld [vmem:[#allocation6 + $0x2b0] sm:$0xff]
    %v616 = vld [vmem:[#allocation6 + $0x2b8] sm:$0xff]
    %v617 = vld [vmem:[#allocation6 + $0x2c0] sm:$0xff]
    %v618 = vld [vmem:[#allocation6 + $0x2c8] sm:$0xff]
    %v619 = vld [vmem:[#allocation6 + $0x2d0] sm:$0xff]
    %v620 = vld [vmem:[#allocation6 + $0x2d8] sm:$0xff]
    %v621 = vld [vmem:[#allocation6 + $0x2e0] sm:$0xff]
    %v622 = vld [vmem:[#allocation6 + $0x2e8] sm:$0xff]
    %v623 = vld [vmem:[#allocation6 + $0x2f0] sm:$0xff]
    %v624 = vld [vmem:[#allocation6 + $0x2f8] sm:$0xff]
    %v625 = vld [vmem:[#allocation6 + $0x300] sm:$0xff]
    %v626 = vld [vmem:[#allocation6 + $0x308] sm:$0xff]
    %v627 = vld [vmem:[#allocation6 + $0x310] sm:$0xff]
    %v628 = vld [vmem:[#allocation6 + $0x318] sm:$0xff]
    %v629 = vld [vmem:[#allocation6 + $0x320] sm:$0xff]
    %v630 = vld [vmem:[#allocation6 + $0x328] sm:$0xff]
    %v631 = vld [vmem:[#allocation6 + $0x330] sm:$0xff]
    %v632 = vld [vmem:[#allocation6 + $0x338] sm:$0xff]
    %v633 = vld [vmem:[#allocation6 + $0x340] sm:$0xff]
    %v634 = vld [vmem:[#allocation6 + $0x348] sm:$0xff]
    %v635 = vld [vmem:[#allocation6 + $0x350] sm:$0xff]
    %v636 = vld [vmem:[#allocation6 + $0x358] sm:$0xff]
    %v637 = vld [vmem:[#allocation6 + $0x360] sm:$0xff]
    %v638 = vld [vmem:[#allocation6 + $0x368] sm:$0xff]
    %v639 = vld [vmem:[#allocation6 + $0x370] sm:$0xff]
    %v640 = vld [vmem:[#allocation6 + $0x378] sm:$0xff]
    %v641 = vld [vmem:[#allocation6 + $0x380] sm:$0xff]
    %v642 = vld [vmem:[#allocation6 + $0x388] sm:$0xff]
    %v643 = vld [vmem:[#allocation6 + $0x390] sm:$0xff]
    %v644 = vld [vmem:[#allocation6 + $0x398] sm:$0xff]
    %v645 = vld [vmem:[#allocation6 + $0x3a0] sm:$0xff]
    %v646 = vld [vmem:[#allocation6 + $0x3a8] sm:$0xff]
    %v647 = vld [vmem:[#allocation6 + $0x3b0] sm:$0xff]
    %v648 = vld [vmem:[#allocation6 + $0x3b8] sm:$0xff]
    %v649 = vld [vmem:[#allocation6 + $0x3c0] sm:$0xff]
    %v650 = vld [vmem:[#allocation6 + $0x3c8] sm:$0xff]
    %v651 = vld [vmem:[#allocation6 + $0x3d0] sm:$0xff]
    %v652 = vld [vmem:[#allocation6 + $0x3d8] sm:$0xff]
    %v653 = vld [vmem:[#allocation6 + $0x3e0] sm:$0xff]
    %v654 = vld [vmem:[#allocation6 + $0x3e8] sm:$0xff]
    %v655 = vld [vmem:[#allocation6 + $0x3f0] sm:$0xff]
    %v656 = vld [vmem:[#allocation6 + $0x3f8] sm:$0xff]
    %657 = vmatprep.subr.mxu0 %v530
    %658 = vmatpush1.msra.mxu0 %v529
    %659 = vmatprep.subr.mxu0 %v534
    %660 = vmatpush1.msra.mxu0 %v533
    %661 = vmatprep.subr.mxu0 %v538
    %662 = vmatpush1.msra.mxu0 %v537
    %663 = vmatprep.subr.mxu0 %v542
    %664 = vmatpush1.msra.mxu0 %v541
    %665 = vmatprep.subr.mxu0 %v546
    %666 = vmatpush1.msra.mxu0 %v545
    %667 = vmatprep.subr.mxu0 %v550
    %668 = vmatpush1.msra.mxu0 %v549
    %669 = vmatprep.subr.mxu0 %v554
    %670 = vmatpush1.msra.mxu0 %v553
    %671 = vmatprep.subr.mxu0 %v558
    %672 = vmatpush1.msra.mxu0 %v557
    %673 = vmatprep.subr.mxu0 %v562
    %674 = vmatpush1.msra.mxu0 %v561
    %675 = vmatprep.subr.mxu0 %v566
    %676 = vmatpush1.msra.mxu0 %v565
    %677 = vmatprep.subr.mxu0 %v570
    %678 = vmatpush1.msra.mxu0 %v569
    %679 = vmatprep.subr.mxu0 %v574
    %680 = vmatpush1.msra.mxu0 %v573
    %681 = vmatprep.subr.mxu0 %v578
    %682 = vmatpush1.msra.mxu0 %v577
    %683 = vmatprep.subr.mxu0 %v582
    %684 = vmatpush1.msra.mxu0 %v581
    %685 = vmatprep.subr.mxu0 %v586
    %686 = vmatpush1.msra.mxu0 %v585
    %687 = vmatprep.subr.mxu0 %v590
    %688 = vmatpush1.msra.mxu0 %v589
    %689 = vmatprep.subr.mxu0 %v594
    %690 = vmatpush1.msra.mxu0 %v593
    %691 = vmatprep.subr.mxu0 %v598
    %692 = vmatpush1.msra.mxu0 %v597
    %693 = vmatprep.subr.mxu0 %v602
    %694 = vmatpush1.msra.mxu0 %v601
    %695 = vmatprep.subr.mxu0 %v606
    %696 = vmatpush1.msra.mxu0 %v605
    %697 = vmatprep.subr.mxu0 %v610
    %698 = vmatpush1.msra.mxu0 %v609
    %699 = vmatprep.subr.mxu0 %v614
    %700 = vmatpush1.msra.mxu0 %v613
    %701 = vmatprep.subr.mxu0 %v618
    %702 = vmatpush1.msra.mxu0 %v617
    %703 = vmatprep.subr.mxu0 %v622
    %704 = vmatpush1.msra.mxu0 %v621
    %705 = vmatprep.subr.mxu0 %v626
    %706 = vmatpush1.msra.mxu0 %v625
    %707 = vmatprep.subr.mxu0 %v630
    %708 = vmatpush1.msra.mxu0 %v629
    %709 = vmatprep.subr.mxu0 %v634
    %710 = vmatpush1.msra.mxu0 %v633
    %711 = vmatprep.subr.mxu0 %v638
    %712 = vmatpush1.msra.mxu0 %v637
    %713 = vmatprep.subr.mxu0 %v642
    %714 = vmatpush1.msra.mxu0 %v641
    %715 = vmatprep.subr.mxu0 %v646
    %716 = vmatpush1.msra.mxu0 %v645
    %717 = vmatprep.subr.mxu0 %v650
    %718 = vmatpush1.msra.mxu0 %v649
    %719 = vmatprep.subr.mxu0 %v654
    %720 = vmatpush1.msra.mxu0 %v653
    %721 = vmatprep.mubr.f32.mxu0 %v484
    %722 = vmatmul.mubr.f32.gmra.mrb[0].mxu0 %v482
    %v723 = vpop.f32.mrb[0].mxu0
    %v724 = vadd.f32 0.0, %v723
    %v725 = vpop.f32.mrb[0].mxu0
    %v726 = vadd.f32 0.0, %v725
    %727 = vdwg.mxu0
    %728 = vmatprep.subr.mxu0 %v532
    %729 = vmatpush1.msra.mxu0 %v531
    %730 = vmatprep.subr.mxu0 %v536
    %731 = vmatpush1.msra.mxu0 %v535
    %732 = vmatprep.subr.mxu0 %v540
    %733 = vmatpush1.msra.mxu0 %v539
    %734 = vmatprep.subr.mxu0 %v544
    %735 = vmatpush1.msra.mxu0 %v543
    %736 = vmatprep.subr.mxu0 %v548
    %737 = vmatpush1.msra.mxu0 %v547
    %738 = vmatprep.subr.mxu0 %v552
    %739 = vmatpush1.msra.mxu0 %v551
    %740 = vmatprep.subr.mxu0 %v556
    %741 = vmatpush1.msra.mxu0 %v555
    %742 = vmatprep.subr.mxu0 %v560
    %743 = vmatpush1.msra.mxu0 %v559
    %744 = vmatprep.subr.mxu0 %v564
    %745 = vmatpush1.msra.mxu0 %v563
    %746 = vmatprep.subr.mxu0 %v568
    %747 = vmatpush1.msra.mxu0 %v567
    %748 = vmatprep.subr.mxu0 %v572
    %749 = vmatpush1.msra.mxu0 %v571
    %750 = vmatprep.subr.mxu0 %v576
    %751 = vmatpush1.msra.mxu0 %v575
    %752 = vmatprep.subr.mxu0 %v580
    %753 = vmatpush1.msra.mxu0 %v579
    %754 = vmatprep.subr.mxu0 %v584
    %755 = vmatpush1.msra.mxu0 %v583
    %756 = vmatprep.subr.mxu0 %v588
    %757 = vmatpush1.msra.mxu0 %v587
    %758 = vmatprep.subr.mxu0 %v592
    %759 = vmatpush1.msra.mxu0 %v591
    %760 = vmatprep.subr.mxu0 %v596
    %761 = vmatpush1.msra.mxu0 %v595
    %762 = vmatprep.subr.mxu0 %v600
    %763 = vmatpush1.msra.mxu0 %v599
    %764 = vmatprep.subr.mxu0 %v604
    %765 = vmatpush1.msra.mxu0 %v603
    %766 = vmatprep.subr.mxu0 %v608
    %767 = vmatpush1.msra.mxu0 %v607
    %768 = vmatprep.subr.mxu0 %v612
    %769 = vmatpush1.msra.mxu0 %v611
    %770 = vmatprep.subr.mxu0 %v616
    %771 = vmatpush1.msra.mxu0 %v615
    %772 = vmatprep.subr.mxu0 %v620
    %773 = vmatpush1.msra.mxu0 %v619
    %774 = vmatprep.subr.mxu0 %v624
    %775 = vmatpush1.msra.mxu0 %v623
    %776 = vmatprep.subr.mxu0 %v628
    %777 = vmatpush1.msra.mxu0 %v627
    %778 = vmatprep.subr.mxu0 %v632
    %779 = vmatpush1.msra.mxu0 %v631
    %780 = vmatprep.subr.mxu0 %v636
    %781 = vmatpush1.msra.mxu0 %v635
    %782 = vmatprep.subr.mxu0 %v640
    %783 = vmatpush1.msra.mxu0 %v639
    %784 = vmatprep.subr.mxu0 %v644
    %785 = vmatpush1.msra.mxu0 %v643
    %786 = vmatprep.subr.mxu0 %v648
    %787 = vmatpush1.msra.mxu0 %v647
    %788 = vmatprep.subr.mxu0 %v652
    %789 = vmatpush1.msra.mxu0 %v651
    %790 = vmatprep.subr.mxu0 %v656
    %791 = vmatpush1.msra.mxu0 %v655
    %792 = vmatprep.mubr.f32.mxu0 %v484
    %793 = vmatmul.mubr.f32.gmra.mrb[0].mxu0 %v482
    %v794 = vpop.f32.mrb[0].mxu0
    %v795 = vadd.f32 0.0, %v794
    %v796 = vpop.f32.mrb[0].mxu0
    %v797 = vadd.f32 0.0, %v796
    %798 = vdwg.mxu0
    %v799 = vld [vmem:[#allocation7] sm:$0xff]
    %v800 = vld [vmem:[#allocation7 + $0x8] sm:$0xff]
    %v801 = vld [vmem:[#allocation7 + $0x10] sm:$0xff]
    %v802 = vld [vmem:[#allocation7 + $0x18] sm:$0xff]
    %v803 = vld [vmem:[#allocation7 + $0x20] sm:$0xff]
    %v804 = vld [vmem:[#allocation7 + $0x28] sm:$0xff]
    %v805 = vld [vmem:[#allocation7 + $0x30] sm:$0xff]
    %v806 = vld [vmem:[#allocation7 + $0x38] sm:$0xff]
    %v807 = vld [vmem:[#allocation7 + $0x40] sm:$0xff]
    %v808 = vld [vmem:[#allocation7 + $0x48] sm:$0xff]
    %v809 = vld [vmem:[#allocation7 + $0x50] sm:$0xff]
    %v810 = vld [vmem:[#allocation7 + $0x58] sm:$0xff]
    %v811 = vld [vmem:[#allocation7 + $0x60] sm:$0xff]
    %v812 = vld [vmem:[#allocation7 + $0x68] sm:$0xff]
    %v813 = vld [vmem:[#allocation7 + $0x70] sm:$0xff]
    %v814 = vld [vmem:[#allocation7 + $0x78] sm:$0xff]
    %v815 = vld [vmem:[#allocation7 + $0x80] sm:$0xff]
    %v816 = vld [vmem:[#allocation7 + $0x88] sm:$0xff]
    %v817 = vld [vmem:[#allocation7 + $0x90] sm:$0xff]
    %v818 = vld [vmem:[#allocation7 + $0x98] sm:$0xff]
    %v819 = vld [vmem:[#allocation7 + $0xa0] sm:$0xff]
    %v820 = vld [vmem:[#allocation7 + $0xa8] sm:$0xff]
    %v821 = vld [vmem:[#allocation7 + $0xb0] sm:$0xff]
    %v822 = vld [vmem:[#allocation7 + $0xb8] sm:$0xff]
    %v823 = vld [vmem:[#allocation7 + $0xc0] sm:$0xff]
    %v824 = vld [vmem:[#allocation7 + $0xc8] sm:$0xff]
    %v825 = vld [vmem:[#allocation7 + $0xd0] sm:$0xff]
    %v826 = vld [vmem:[#allocation7 + $0xd8] sm:$0xff]
    %v827 = vld [vmem:[#allocation7 + $0xe0] sm:$0xff]
    %v828 = vld [vmem:[#allocation7 + $0xe8] sm:$0xff]
    %v829 = vld [vmem:[#allocation7 + $0xf0] sm:$0xff]
    %v830 = vld [vmem:[#allocation7 + $0xf8] sm:$0xff]
    %v831 = vld [vmem:[#allocation7 + $0x100] sm:$0xff]
    %v832 = vld [vmem:[#allocation7 + $0x108] sm:$0xff]
    %v833 = vld [vmem:[#allocation7 + $0x110] sm:$0xff]
    %v834 = vld [vmem:[#allocation7 + $0x118] sm:$0xff]
    %v835 = vld [vmem:[#allocation7 + $0x120] sm:$0xff]
    %v836 = vld [vmem:[#allocation7 + $0x128] sm:$0xff]
    %v837 = vld [vmem:[#allocation7 + $0x130] sm:$0xff]
    %v838 = vld [vmem:[#allocation7 + $0x138] sm:$0xff]
    %v839 = vld [vmem:[#allocation7 + $0x140] sm:$0xff]
    %v840 = vld [vmem:[#allocation7 + $0x148] sm:$0xff]
    %v841 = vld [vmem:[#allocation7 + $0x150] sm:$0xff]
    %v842 = vld [vmem:[#allocation7 + $0x158] sm:$0xff]
    %v843 = vld [vmem:[#allocation7 + $0x160] sm:$0xff]
    %v844 = vld [vmem:[#allocation7 + $0x168] sm:$0xff]
    %v845 = vld [vmem:[#allocation7 + $0x170] sm:$0xff]
    %v846 = vld [vmem:[#allocation7 + $0x178] sm:$0xff]
    %v847 = vld [vmem:[#allocation7 + $0x180] sm:$0xff]
    %v848 = vld [vmem:[#allocation7 + $0x188] sm:$0xff]
    %v849 = vld [vmem:[#allocation7 + $0x190] sm:$0xff]
    %v850 = vld [vmem:[#allocation7 + $0x198] sm:$0xff]
    %v851 = vld [vmem:[#allocation7 + $0x1a0] sm:$0xff]
    %v852 = vld [vmem:[#allocation7 + $0x1a8] sm:$0xff]
    %v853 = vld [vmem:[#allocation7 + $0x1b0] sm:$0xff]
    %v854 = vld [vmem:[#allocation7 + $0x1b8] sm:$0xff]
    %v855 = vld [vmem:[#allocation7 + $0x1c0] sm:$0xff]
    %v856 = vld [vmem:[#allocation7 + $0x1c8] sm:$0xff]
    %v857 = vld [vmem:[#allocation7 + $0x1d0] sm:$0xff]
    %v858 = vld [vmem:[#allocation7 + $0x1d8] sm:$0xff]
    %v859 = vld [vmem:[#allocation7 + $0x1e0] sm:$0xff]
    %v860 = vld [vmem:[#allocation7 + $0x1e8] sm:$0xff]
    %v861 = vld [vmem:[#allocation7 + $0x1f0] sm:$0xff]
    %v862 = vld [vmem:[#allocation7 + $0x1f8] sm:$0xff]
    %v863 = vld [vmem:[#allocation7 + $0x200] sm:$0xff]
    %v864 = vld [vmem:[#allocation7 + $0x208] sm:$0xff]
    %v865 = vld [vmem:[#allocation7 + $0x210] sm:$0xff]
    %v866 = vld [vmem:[#allocation7 + $0x218] sm:$0xff]
    %v867 = vld [vmem:[#allocation7 + $0x220] sm:$0xff]
    %v868 = vld [vmem:[#allocation7 + $0x228] sm:$0xff]
    %v869 = vld [vmem:[#allocation7 + $0x230] sm:$0xff]
    %v870 = vld [vmem:[#allocation7 + $0x238] sm:$0xff]
    %v871 = vld [vmem:[#allocation7 + $0x240] sm:$0xff]
    %v872 = vld [vmem:[#allocation7 + $0x248] sm:$0xff]
    %v873 = vld [vmem:[#allocation7 + $0x250] sm:$0xff]
    %v874 = vld [vmem:[#allocation7 + $0x258] sm:$0xff]
    %v875 = vld [vmem:[#allocation7 + $0x260] sm:$0xff]
    %v876 = vld [vmem:[#allocation7 + $0x268] sm:$0xff]
    %v877 = vld [vmem:[#allocation7 + $0x270] sm:$0xff]
    %v878 = vld [vmem:[#allocation7 + $0x278] sm:$0xff]
    %v879 = vld [vmem:[#allocation7 + $0x280] sm:$0xff]
    %v880 = vld [vmem:[#allocation7 + $0x288] sm:$0xff]
    %v881 = vld [vmem:[#allocation7 + $0x290] sm:$0xff]
    %v882 = vld [vmem:[#allocation7 + $0x298] sm:$0xff]
    %v883 = vld [vmem:[#allocation7 + $0x2a0] sm:$0xff]
    %v884 = vld [vmem:[#allocation7 + $0x2a8] sm:$0xff]
    %v885 = vld [vmem:[#allocation7 + $0x2b0] sm:$0xff]
    %v886 = vld [vmem:[#allocation7 + $0x2b8] sm:$0xff]
    %v887 = vld [vmem:[#allocation7 + $0x2c0] sm:$0xff]
    %v888 = vld [vmem:[#allocation7 + $0x2c8] sm:$0xff]
    %v889 = vld [vmem:[#allocation7 + $0x2d0] sm:$0xff]
    %v890 = vld [vmem:[#allocation7 + $0x2d8] sm:$0xff]
    %v891 = vld [vmem:[#allocation7 + $0x2e0] sm:$0xff]
    %v892 = vld [vmem:[#allocation7 + $0x2e8] sm:$0xff]
    %v893 = vld [vmem:[#allocation7 + $0x2f0] sm:$0xff]
    %v894 = vld [vmem:[#allocation7 + $0x2f8] sm:$0xff]
    %v895 = vld [vmem:[#allocation7 + $0x300] sm:$0xff]
    %v896 = vld [vmem:[#allocation7 + $0x308] sm:$0xff]
    %v897 = vld [vmem:[#allocation7 + $0x310] sm:$0xff]
    %v898 = vld [vmem:[#allocation7 + $0x318] sm:$0xff]
    %v899 = vld [vmem:[#allocation7 + $0x320] sm:$0xff]
    %v900 = vld [vmem:[#allocation7 + $0x328] sm:$0xff]
    %v901 = vld [vmem:[#allocation7 + $0x330] sm:$0xff]
    %v902 = vld [vmem:[#allocation7 + $0x338] sm:$0xff]
    %v903 = vld [vmem:[#allocation7 + $0x340] sm:$0xff]
    %v904 = vld [vmem:[#allocation7 + $0x348] sm:$0xff]
    %v905 = vld [vmem:[#allocation7 + $0x350] sm:$0xff]
    %v906 = vld [vmem:[#allocation7 + $0x358] sm:$0xff]
    %v907 = vld [vmem:[#allocation7 + $0x360] sm:$0xff]
    %v908 = vld [vmem:[#allocation7 + $0x368] sm:$0xff]
    %v909 = vld [vmem:[#allocation7 + $0x370] sm:$0xff]
    %v910 = vld [vmem:[#allocation7 + $0x378] sm:$0xff]
    %v911 = vld [vmem:[#allocation7 + $0x380] sm:$0xff]
    %v912 = vld [vmem:[#allocation7 + $0x388] sm:$0xff]
    %v913 = vld [vmem:[#allocation7 + $0x390] sm:$0xff]
    %v914 = vld [vmem:[#allocation7 + $0x398] sm:$0xff]
    %v915 = vld [vmem:[#allocation7 + $0x3a0] sm:$0xff]
    %v916 = vld [vmem:[#allocation7 + $0x3a8] sm:$0xff]
    %v917 = vld [vmem:[#allocation7 + $0x3b0] sm:$0xff]
    %v918 = vld [vmem:[#allocation7 + $0x3b8] sm:$0xff]
    %v919 = vld [vmem:[#allocation7 + $0x3c0] sm:$0xff]
    %v920 = vld [vmem:[#allocation7 + $0x3c8] sm:$0xff]
    %v921 = vld [vmem:[#allocation7 + $0x3d0] sm:$0xff]
    %v922 = vld [vmem:[#allocation7 + $0x3d8] sm:$0xff]
    %v923 = vld [vmem:[#allocation7 + $0x3e0] sm:$0xff]
    %v924 = vld [vmem:[#allocation7 + $0x3e8] sm:$0xff]
    %v925 = vld [vmem:[#allocation7 + $0x3f0] sm:$0xff]
    %v926 = vld [vmem:[#allocation7 + $0x3f8] sm:$0xff]
    %v927 = vld [vmem:[#allocation7 + $0x400] sm:$0xff]
    %v928 = vld [vmem:[#allocation7 + $0x408] sm:$0xff]
    %v929 = vld [vmem:[#allocation7 + $0x410] sm:$0xff]
    %v930 = vld [vmem:[#allocation7 + $0x418] sm:$0xff]
    %v931 = vld [vmem:[#allocation7 + $0x420] sm:$0xff]
    %v932 = vld [vmem:[#allocation7 + $0x428] sm:$0xff]
    %v933 = vld [vmem:[#allocation7 + $0x430] sm:$0xff]
    %v934 = vld [vmem:[#allocation7 + $0x438] sm:$0xff]
    %v935 = vld [vmem:[#allocation7 + $0x440] sm:$0xff]
    %v936 = vld [vmem:[#allocation7 + $0x448] sm:$0xff]
    %v937 = vld [vmem:[#allocation7 + $0x450] sm:$0xff]
    %v938 = vld [vmem:[#allocation7 + $0x458] sm:$0xff]
    %v939 = vld [vmem:[#allocation7 + $0x460] sm:$0xff]
    %v940 = vld [vmem:[#allocation7 + $0x468] sm:$0xff]
    %v941 = vld [vmem:[#allocation7 + $0x470] sm:$0xff]
    %v942 = vld [vmem:[#allocation7 + $0x478] sm:$0xff]
    %v943 = vld [vmem:[#allocation7 + $0x480] sm:$0xff]
    %v944 = vld [vmem:[#allocation7 + $0x488] sm:$0xff]
    %v945 = vld [vmem:[#allocation7 + $0x490] sm:$0xff]
    %v946 = vld [vmem:[#allocation7 + $0x498] sm:$0xff]
    %v947 = vld [vmem:[#allocation7 + $0x4a0] sm:$0xff]
    %v948 = vld [vmem:[#allocation7 + $0x4a8] sm:$0xff]
    %v949 = vld [vmem:[#allocation7 + $0x4b0] sm:$0xff]
    %v950 = vld [vmem:[#allocation7 + $0x4b8] sm:$0xff]
    %v951 = vld [vmem:[#allocation7 + $0x4c0] sm:$0xff]
    %v952 = vld [vmem:[#allocation7 + $0x4c8] sm:$0xff]
    %v953 = vld [vmem:[#allocation7 + $0x4d0] sm:$0xff]
    %v954 = vld [vmem:[#allocation7 + $0x4d8] sm:$0xff]
    %v955 = vld [vmem:[#allocation7 + $0x4e0] sm:$0xff]
    %v956 = vld [vmem:[#allocation7 + $0x4e8] sm:$0xff]
    %v957 = vld [vmem:[#allocation7 + $0x4f0] sm:$0xff]
    %v958 = vld [vmem:[#allocation7 + $0x4f8] sm:$0xff]
    %v959 = vld [vmem:[#allocation7 + $0x500] sm:$0xff]
    %v960 = vld [vmem:[#allocation7 + $0x508] sm:$0xff]
    %v961 = vld [vmem:[#allocation7 + $0x510] sm:$0xff]
    %v962 = vld [vmem:[#allocation7 + $0x518] sm:$0xff]
    %v963 = vld [vmem:[#allocation7 + $0x520] sm:$0xff]
    %v964 = vld [vmem:[#allocation7 + $0x528] sm:$0xff]
    %v965 = vld [vmem:[#allocation7 + $0x530] sm:$0xff]
    %v966 = vld [vmem:[#allocation7 + $0x538] sm:$0xff]
    %v967 = vld [vmem:[#allocation7 + $0x540] sm:$0xff]
    %v968 = vld [vmem:[#allocation7 + $0x548] sm:$0xff]
    %v969 = vld [vmem:[#allocation7 + $0x550] sm:$0xff]
    %v970 = vld [vmem:[#allocation7 + $0x558] sm:$0xff]
    %v971 = vld [vmem:[#allocation7 + $0x560] sm:$0xff]
    %v972 = vld [vmem:[#allocation7 + $0x568] sm:$0xff]
    %v973 = vld [vmem:[#allocation7 + $0x570] sm:$0xff]
    %v974 = vld [vmem:[#allocation7 + $0x578] sm:$0xff]
    %v975 = vld [vmem:[#allocation7 + $0x580] sm:$0xff]
    %v976 = vld [vmem:[#allocation7 + $0x588] sm:$0xff]
    %v977 = vld [vmem:[#allocation7 + $0x590] sm:$0xff]
    %v978 = vld [vmem:[#allocation7 + $0x598] sm:$0xff]
    %v979 = vld [vmem:[#allocation7 + $0x5a0] sm:$0xff]
    %v980 = vld [vmem:[#allocation7 + $0x5a8] sm:$0xff]
    %v981 = vld [vmem:[#allocation7 + $0x5b0] sm:$0xff]
    %v982 = vld [vmem:[#allocation7 + $0x5b8] sm:$0xff]
    %v983 = vld [vmem:[#allocation7 + $0x5c0] sm:$0xff]
    %v984 = vld [vmem:[#allocation7 + $0x5c8] sm:$0xff]
    %v985 = vld [vmem:[#allocation7 + $0x5d0] sm:$0xff]
    %v986 = vld [vmem:[#allocation7 + $0x5d8] sm:$0xff]
    %v987 = vld [vmem:[#allocation7 + $0x5e0] sm:$0xff]
    %v988 = vld [vmem:[#allocation7 + $0x5e8] sm:$0xff]
    %v989 = vld [vmem:[#allocation7 + $0x5f0] sm:$0xff]
    %v990 = vld [vmem:[#allocation7 + $0x5f8] sm:$0xff]
    %v991 = vld [vmem:[#allocation7 + $0x600] sm:$0xff]
    %v992 = vld [vmem:[#allocation7 + $0x608] sm:$0xff]
    %v993 = vld [vmem:[#allocation7 + $0x610] sm:$0xff]
    %v994 = vld [vmem:[#allocation7 + $0x618] sm:$0xff]
    %v995 = vld [vmem:[#allocation7 + $0x620] sm:$0xff]
    %v996 = vld [vmem:[#allocation7 + $0x628] sm:$0xff]
    %v997 = vld [vmem:[#allocation7 + $0x630] sm:$0xff]
    %v998 = vld [vmem:[#allocation7 + $0x638] sm:$0xff]
    %v999 = vld [vmem:[#allocation7 + $0x640] sm:$0xff]
    %v1000 = vld [vmem:[#allocation7 + $0x648] sm:$0xff]
    %v1001 = vld [vmem:[#allocation7 + $0x650] sm:$0xff]
    %v1002 = vld [vmem:[#allocation7 + $0x658] sm:$0xff]
    %v1003 = vld [vmem:[#allocation7 + $0x660] sm:$0xff]
    %v1004 = vld [vmem:[#allocation7 + $0x668] sm:$0xff]
    %v1005 = vld [vmem:[#allocation7 + $0x670] sm:$0xff]
    %v1006 = vld [vmem:[#allocation7 + $0x678] sm:$0xff]
    %v1007 = vld [vmem:[#allocation7 + $0x680] sm:$0xff]
    %v1008 = vld [vmem:[#allocation7 + $0x688] sm:$0xff]
    %v1009 = vld [vmem:[#allocation7 + $0x690] sm:$0xff]
    %v1010 = vld [vmem:[#allocation7 + $0x698] sm:$0xff]
    %v1011 = vld [vmem:[#allocation7 + $0x6a0] sm:$0xff]
    %v1012 = vld [vmem:[#allocation7 + $0x6a8] sm:$0xff]
    %v1013 = vld [vmem:[#allocation7 + $0x6b0] sm:$0xff]
    %v1014 = vld [vmem:[#allocation7 + $0x6b8] sm:$0xff]
    %v1015 = vld [vmem:[#allocation7 + $0x6c0] sm:$0xff]
    %v1016 = vld [vmem:[#allocation7 + $0x6c8] sm:$0xff]
    %v1017 = vld [vmem:[#allocation7 + $0x6d0] sm:$0xff]
    %v1018 = vld [vmem:[#allocation7 + $0x6d8] sm:$0xff]
    %v1019 = vld [vmem:[#allocation7 + $0x6e0] sm:$0xff]
    %v1020 = vld [vmem:[#allocation7 + $0x6e8] sm:$0xff]
    %v1021 = vld [vmem:[#allocation7 + $0x6f0] sm:$0xff]
    %v1022 = vld [vmem:[#allocation7 + $0x6f8] sm:$0xff]
    %v1023 = vld [vmem:[#allocation7 + $0x700] sm:$0xff]
    %v1024 = vld [vmem:[#allocation7 + $0x708] sm:$0xff]
    %v1025 = vld [vmem:[#allocation7 + $0x710] sm:$0xff]
    %v1026 = vld [vmem:[#allocation7 + $0x718] sm:$0xff]
    %v1027 = vld [vmem:[#allocation7 + $0x720] sm:$0xff]
    %v1028 = vld [vmem:[#allocation7 + $0x728] sm:$0xff]
    %v1029 = vld [vmem:[#allocation7 + $0x730] sm:$0xff]
    %v1030 = vld [vmem:[#allocation7 + $0x738] sm:$0xff]
    %v1031 = vld [vmem:[#allocation7 + $0x740] sm:$0xff]
    %v1032 = vld [vmem:[#allocation7 + $0x748] sm:$0xff]
    %v1033 = vld [vmem:[#allocation7 + $0x750] sm:$0xff]
    %v1034 = vld [vmem:[#allocation7 + $0x758] sm:$0xff]
    %v1035 = vld [vmem:[#allocation7 + $0x760] sm:$0xff]
    %v1036 = vld [vmem:[#allocation7 + $0x768] sm:$0xff]
    %v1037 = vld [vmem:[#allocation7 + $0x770] sm:$0xff]
    %v1038 = vld [vmem:[#allocation7 + $0x778] sm:$0xff]
    %v1039 = vld [vmem:[#allocation7 + $0x780] sm:$0xff]
    %v1040 = vld [vmem:[#allocation7 + $0x788] sm:$0xff]
    %v1041 = vld [vmem:[#allocation7 + $0x790] sm:$0xff]
    %v1042 = vld [vmem:[#allocation7 + $0x798] sm:$0xff]
    %v1043 = vld [vmem:[#allocation7 + $0x7a0] sm:$0xff]
    %v1044 = vld [vmem:[#allocation7 + $0x7a8] sm:$0xff]
    %v1045 = vld [vmem:[#allocation7 + $0x7b0] sm:$0xff]
    %v1046 = vld [vmem:[#allocation7 + $0x7b8] sm:$0xff]
    %v1047 = vld [vmem:[#allocation7 + $0x7c0] sm:$0xff]
    %v1048 = vld [vmem:[#allocation7 + $0x7c8] sm:$0xff]
    %v1049 = vld [vmem:[#allocation7 + $0x7d0] sm:$0xff]
    %v1050 = vld [vmem:[#allocation7 + $0x7d8] sm:$0xff]
    %v1051 = vld [vmem:[#allocation7 + $0x7e0] sm:$0xff]
    %v1052 = vld [vmem:[#allocation7 + $0x7e8] sm:$0xff]
    %v1053 = vld [vmem:[#allocation7 + $0x7f0] sm:$0xff]
    %v1054 = vld [vmem:[#allocation7 + $0x7f8] sm:$0xff]
    %v1055 = vld [vmem:[#allocation7 + $0x800] sm:$0xff]
    %v1056 = vld [vmem:[#allocation7 + $0x808] sm:$0xff]
    %v1057 = vld [vmem:[#allocation7 + $0x810] sm:$0xff]
    %v1058 = vld [vmem:[#allocation7 + $0x818] sm:$0xff]
    %v1059 = vld [vmem:[#allocation7 + $0x820] sm:$0xff]
    %v1060 = vld [vmem:[#allocation7 + $0x828] sm:$0xff]
    %v1061 = vld [vmem:[#allocation7 + $0x830] sm:$0xff]
    %v1062 = vld [vmem:[#allocation7 + $0x838] sm:$0xff]
    %v1063 = vld [vmem:[#allocation7 + $0x840] sm:$0xff]
    %v1064 = vld [vmem:[#allocation7 + $0x848] sm:$0xff]
    %v1065 = vld [vmem:[#allocation7 + $0x850] sm:$0xff]
    %v1066 = vld [vmem:[#allocation7 + $0x858] sm:$0xff]
    %v1067 = vld [vmem:[#allocation7 + $0x860] sm:$0xff]
    %v1068 = vld [vmem:[#allocation7 + $0x868] sm:$0xff]
    %v1069 = vld [vmem:[#allocation7 + $0x870] sm:$0xff]
    %v1070 = vld [vmem:[#allocation7 + $0x878] sm:$0xff]
    %v1071 = vld [vmem:[#allocation7 + $0x880] sm:$0xff]
    %v1072 = vld [vmem:[#allocation7 + $0x888] sm:$0xff]
    %v1073 = vld [vmem:[#allocation7 + $0x890] sm:$0xff]
    %v1074 = vld [vmem:[#allocation7 + $0x898] sm:$0xff]
    %v1075 = vld [vmem:[#allocation7 + $0x8a0] sm:$0xff]
    %v1076 = vld [vmem:[#allocation7 + $0x8a8] sm:$0xff]
    %v1077 = vld [vmem:[#allocation7 + $0x8b0] sm:$0xff]
    %v1078 = vld [vmem:[#allocation7 + $0x8b8] sm:$0xff]
    %v1079 = vld [vmem:[#allocation7 + $0x8c0] sm:$0xff]
    %v1080 = vld [vmem:[#allocation7 + $0x8c8] sm:$0xff]
    %v1081 = vld [vmem:[#allocation7 + $0x8d0] sm:$0xff]
    %v1082 = vld [vmem:[#allocation7 + $0x8d8] sm:$0xff]
    %v1083 = vld [vmem:[#allocation7 + $0x8e0] sm:$0xff]
    %v1084 = vld [vmem:[#allocation7 + $0x8e8] sm:$0xff]
    %v1085 = vld [vmem:[#allocation7 + $0x8f0] sm:$0xff]
    %v1086 = vld [vmem:[#allocation7 + $0x8f8] sm:$0xff]
    %v1087 = vld [vmem:[#allocation7 + $0x900] sm:$0xff]
    %v1088 = vld [vmem:[#allocation7 + $0x908] sm:$0xff]
    %v1089 = vld [vmem:[#allocation7 + $0x910] sm:$0xff]
    %v1090 = vld [vmem:[#allocation7 + $0x918] sm:$0xff]
    %v1091 = vld [vmem:[#allocation7 + $0x920] sm:$0xff]
    %v1092 = vld [vmem:[#allocation7 + $0x928] sm:$0xff]
    %v1093 = vld [vmem:[#allocation7 + $0x930] sm:$0xff]
    %v1094 = vld [vmem:[#allocation7 + $0x938] sm:$0xff]
    %v1095 = vld [vmem:[#allocation7 + $0x940] sm:$0xff]
    %v1096 = vld [vmem:[#allocation7 + $0x948] sm:$0xff]
    %v1097 = vld [vmem:[#allocation7 + $0x950] sm:$0xff]
    %v1098 = vld [vmem:[#allocation7 + $0x958] sm:$0xff]
    %v1099 = vld [vmem:[#allocation7 + $0x960] sm:$0xff]
    %v1100 = vld [vmem:[#allocation7 + $0x968] sm:$0xff]
    %v1101 = vld [vmem:[#allocation7 + $0x970] sm:$0xff]
    %v1102 = vld [vmem:[#allocation7 + $0x978] sm:$0xff]
    %v1103 = vld [vmem:[#allocation7 + $0x980] sm:$0xff]
    %v1104 = vld [vmem:[#allocation7 + $0x988] sm:$0xff]
    %v1105 = vld [vmem:[#allocation7 + $0x990] sm:$0xff]
    %v1106 = vld [vmem:[#allocation7 + $0x998] sm:$0xff]
    %v1107 = vld [vmem:[#allocation7 + $0x9a0] sm:$0xff]
    %v1108 = vld [vmem:[#allocation7 + $0x9a8] sm:$0xff]
    %v1109 = vld [vmem:[#allocation7 + $0x9b0] sm:$0xff]
    %v1110 = vld [vmem:[#allocation7 + $0x9b8] sm:$0xff]
    %v1111 = vld [vmem:[#allocation7 + $0x9c0] sm:$0xff]
    %v1112 = vld [vmem:[#allocation7 + $0x9c8] sm:$0xff]
    %v1113 = vld [vmem:[#allocation7 + $0x9d0] sm:$0xff]
    %v1114 = vld [vmem:[#allocation7 + $0x9d8] sm:$0xff]
    %v1115 = vld [vmem:[#allocation7 + $0x9e0] sm:$0xff]
    %v1116 = vld [vmem:[#allocation7 + $0x9e8] sm:$0xff]
    %v1117 = vld [vmem:[#allocation7 + $0x9f0] sm:$0xff]
    %v1118 = vld [vmem:[#allocation7 + $0x9f8] sm:$0xff]
    %v1119 = vld [vmem:[#allocation7 + $0xa00] sm:$0xff]
    %v1120 = vld [vmem:[#allocation7 + $0xa08] sm:$0xff]
    %v1121 = vld [vmem:[#allocation7 + $0xa10] sm:$0xff]
    %v1122 = vld [vmem:[#allocation7 + $0xa18] sm:$0xff]
    %v1123 = vld [vmem:[#allocation7 + $0xa20] sm:$0xff]
    %v1124 = vld [vmem:[#allocation7 + $0xa28] sm:$0xff]
    %v1125 = vld [vmem:[#allocation7 + $0xa30] sm:$0xff]
    %v1126 = vld [vmem:[#allocation7 + $0xa38] sm:$0xff]
    %v1127 = vld [vmem:[#allocation7 + $0xa40] sm:$0xff]
    %v1128 = vld [vmem:[#allocation7 + $0xa48] sm:$0xff]
    %v1129 = vld [vmem:[#allocation7 + $0xa50] sm:$0xff]
    %v1130 = vld [vmem:[#allocation7 + $0xa58] sm:$0xff]
    %v1131 = vld [vmem:[#allocation7 + $0xa60] sm:$0xff]
    %v1132 = vld [vmem:[#allocation7 + $0xa68] sm:$0xff]
    %v1133 = vld [vmem:[#allocation7 + $0xa70] sm:$0xff]
    %v1134 = vld [vmem:[#allocation7 + $0xa78] sm:$0xff]
    %v1135 = vld [vmem:[#allocation7 + $0xa80] sm:$0xff]
    %v1136 = vld [vmem:[#allocation7 + $0xa88] sm:$0xff]
    %v1137 = vld [vmem:[#allocation7 + $0xa90] sm:$0xff]
    %v1138 = vld [vmem:[#allocation7 + $0xa98] sm:$0xff]
    %v1139 = vld [vmem:[#allocation7 + $0xaa0] sm:$0xff]
    %v1140 = vld [vmem:[#allocation7 + $0xaa8] sm:$0xff]
    %v1141 = vld [vmem:[#allocation7 + $0xab0] sm:$0xff]
    %v1142 = vld [vmem:[#allocation7 + $0xab8] sm:$0xff]
    %v1143 = vld [vmem:[#allocation7 + $0xac0] sm:$0xff]
    %v1144 = vld [vmem:[#allocation7 + $0xac8] sm:$0xff]
    %v1145 = vld [vmem:[#allocation7 + $0xad0] sm:$0xff]
    %v1146 = vld [vmem:[#allocation7 + $0xad8] sm:$0xff]
    %v1147 = vld [vmem:[#allocation7 + $0xae0] sm:$0xff]
    %v1148 = vld [vmem:[#allocation7 + $0xae8] sm:$0xff]
    %v1149 = vld [vmem:[#allocation7 + $0xaf0] sm:$0xff]
    %v1150 = vld [vmem:[#allocation7 + $0xaf8] sm:$0xff]
    %v1151 = vld [vmem:[#allocation7 + $0xb00] sm:$0xff]
    %v1152 = vld [vmem:[#allocation7 + $0xb08] sm:$0xff]
    %v1153 = vld [vmem:[#allocation7 + $0xb10] sm:$0xff]
    %v1154 = vld [vmem:[#allocation7 + $0xb18] sm:$0xff]
    %v1155 = vld [vmem:[#allocation7 + $0xb20] sm:$0xff]
    %v1156 = vld [vmem:[#allocation7 + $0xb28] sm:$0xff]
    %v1157 = vld [vmem:[#allocation7 + $0xb30] sm:$0xff]
    %v1158 = vld [vmem:[#allocation7 + $0xb38] sm:$0xff]
    %v1159 = vld [vmem:[#allocation7 + $0xb40] sm:$0xff]
    %v1160 = vld [vmem:[#allocation7 + $0xb48] sm:$0xff]
    %v1161 = vld [vmem:[#allocation7 + $0xb50] sm:$0xff]
    %v1162 = vld [vmem:[#allocation7 + $0xb58] sm:$0xff]
    %v1163 = vld [vmem:[#allocation7 + $0xb60] sm:$0xff]
    %v1164 = vld [vmem:[#allocation7 + $0xb68] sm:$0xff]
    %v1165 = vld [vmem:[#allocation7 + $0xb70] sm:$0xff]
    %v1166 = vld [vmem:[#allocation7 + $0xb78] sm:$0xff]
    %v1167 = vld [vmem:[#allocation7 + $0xb80] sm:$0xff]
    %v1168 = vld [vmem:[#allocation7 + $0xb88] sm:$0xff]
    %v1169 = vld [vmem:[#allocation7 + $0xb90] sm:$0xff]
    %v1170 = vld [vmem:[#allocation7 + $0xb98] sm:$0xff]
    %v1171 = vld [vmem:[#allocation7 + $0xba0] sm:$0xff]
    %v1172 = vld [vmem:[#allocation7 + $0xba8] sm:$0xff]
    %v1173 = vld [vmem:[#allocation7 + $0xbb0] sm:$0xff]
    %v1174 = vld [vmem:[#allocation7 + $0xbb8] sm:$0xff]
    %v1175 = vld [vmem:[#allocation7 + $0xbc0] sm:$0xff]
    %v1176 = vld [vmem:[#allocation7 + $0xbc8] sm:$0xff]
    %v1177 = vld [vmem:[#allocation7 + $0xbd0] sm:$0xff]
    %v1178 = vld [vmem:[#allocation7 + $0xbd8] sm:$0xff]
    %v1179 = vld [vmem:[#allocation7 + $0xbe0] sm:$0xff]
    %v1180 = vld [vmem:[#allocation7 + $0xbe8] sm:$0xff]
    %v1181 = vld [vmem:[#allocation7 + $0xbf0] sm:$0xff]
    %v1182 = vld [vmem:[#allocation7 + $0xbf8] sm:$0xff]
    %v1183 = vld [vmem:[#allocation7 + $0xc00] sm:$0xff]
    %v1184 = vld [vmem:[#allocation7 + $0xc08] sm:$0xff]
    %v1185 = vld [vmem:[#allocation7 + $0xc10] sm:$0xff]
    %v1186 = vld [vmem:[#allocation7 + $0xc18] sm:$0xff]
    %v1187 = vld [vmem:[#allocation7 + $0xc20] sm:$0xff]
    %v1188 = vld [vmem:[#allocation7 + $0xc28] sm:$0xff]
    %v1189 = vld [vmem:[#allocation7 + $0xc30] sm:$0xff]
    %v1190 = vld [vmem:[#allocation7 + $0xc38] sm:$0xff]
    %v1191 = vld [vmem:[#allocation7 + $0xc40] sm:$0xff]
    %v1192 = vld [vmem:[#allocation7 + $0xc48] sm:$0xff]
    %v1193 = vld [vmem:[#allocation7 + $0xc50] sm:$0xff]
    %v1194 = vld [vmem:[#allocation7 + $0xc58] sm:$0xff]
    %v1195 = vld [vmem:[#allocation7 + $0xc60] sm:$0xff]
    %v1196 = vld [vmem:[#allocation7 + $0xc68] sm:$0xff]
    %v1197 = vld [vmem:[#allocation7 + $0xc70] sm:$0xff]
    %v1198 = vld [vmem:[#allocation7 + $0xc78] sm:$0xff]
    %v1199 = vld [vmem:[#allocation7 + $0xc80] sm:$0xff]
    %v1200 = vld [vmem:[#allocation7 + $0xc88] sm:$0xff]
    %v1201 = vld [vmem:[#allocation7 + $0xc90] sm:$0xff]
    %v1202 = vld [vmem:[#allocation7 + $0xc98] sm:$0xff]
    %v1203 = vld [vmem:[#allocation7 + $0xca0] sm:$0xff]
    %v1204 = vld [vmem:[#allocation7 + $0xca8] sm:$0xff]
    %v1205 = vld [vmem:[#allocation7 + $0xcb0] sm:$0xff]
    %v1206 = vld [vmem:[#allocation7 + $0xcb8] sm:$0xff]
    %v1207 = vld [vmem:[#allocation7 + $0xcc0] sm:$0xff]
    %v1208 = vld [vmem:[#allocation7 + $0xcc8] sm:$0xff]
    %v1209 = vld [vmem:[#allocation7 + $0xcd0] sm:$0xff]
    %v1210 = vld [vmem:[#allocation7 + $0xcd8] sm:$0xff]
    %v1211 = vld [vmem:[#allocation7 + $0xce0] sm:$0xff]
    %v1212 = vld [vmem:[#allocation7 + $0xce8] sm:$0xff]
    %v1213 = vld [vmem:[#allocation7 + $0xcf0] sm:$0xff]
    %v1214 = vld [vmem:[#allocation7 + $0xcf8] sm:$0xff]
    %v1215 = vld [vmem:[#allocation7 + $0xd00] sm:$0xff]
    %v1216 = vld [vmem:[#allocation7 + $0xd08] sm:$0xff]
    %v1217 = vld [vmem:[#allocation7 + $0xd10] sm:$0xff]
    %v1218 = vld [vmem:[#allocation7 + $0xd18] sm:$0xff]
    %v1219 = vld [vmem:[#allocation7 + $0xd20] sm:$0xff]
    %v1220 = vld [vmem:[#allocation7 + $0xd28] sm:$0xff]
    %v1221 = vld [vmem:[#allocation7 + $0xd30] sm:$0xff]
    %v1222 = vld [vmem:[#allocation7 + $0xd38] sm:$0xff]
    %v1223 = vld [vmem:[#allocation7 + $0xd40] sm:$0xff]
    %v1224 = vld [vmem:[#allocation7 + $0xd48] sm:$0xff]
    %v1225 = vld [vmem:[#allocation7 + $0xd50] sm:$0xff]
    %v1226 = vld [vmem:[#allocation7 + $0xd58] sm:$0xff]
    %v1227 = vld [vmem:[#allocation7 + $0xd60] sm:$0xff]
    %v1228 = vld [vmem:[#allocation7 + $0xd68] sm:$0xff]
    %v1229 = vld [vmem:[#allocation7 + $0xd70] sm:$0xff]
    %v1230 = vld [vmem:[#allocation7 + $0xd78] sm:$0xff]
    %v1231 = vld [vmem:[#allocation7 + $0xd80] sm:$0xff]
    %v1232 = vld [vmem:[#allocation7 + $0xd88] sm:$0xff]
    %v1233 = vld [vmem:[#allocation7 + $0xd90] sm:$0xff]
    %v1234 = vld [vmem:[#allocation7 + $0xd98] sm:$0xff]
    %v1235 = vld [vmem:[#allocation7 + $0xda0] sm:$0xff]
    %v1236 = vld [vmem:[#allocation7 + $0xda8] sm:$0xff]
    %v1237 = vld [vmem:[#allocation7 + $0xdb0] sm:$0xff]
    %v1238 = vld [vmem:[#allocation7 + $0xdb8] sm:$0xff]
    %v1239 = vld [vmem:[#allocation7 + $0xdc0] sm:$0xff]
    %v1240 = vld [vmem:[#allocation7 + $0xdc8] sm:$0xff]
    %v1241 = vld [vmem:[#allocation7 + $0xdd0] sm:$0xff]
    %v1242 = vld [vmem:[#allocation7 + $0xdd8] sm:$0xff]
    %v1243 = vld [vmem:[#allocation7 + $0xde0] sm:$0xff]
    %v1244 = vld [vmem:[#allocation7 + $0xde8] sm:$0xff]
    %v1245 = vld [vmem:[#allocation7 + $0xdf0] sm:$0xff]
    %v1246 = vld [vmem:[#allocation7 + $0xdf8] sm:$0xff]
    %v1247 = vld [vmem:[#allocation7 + $0xe00] sm:$0xff]
    %v1248 = vld [vmem:[#allocation7 + $0xe08] sm:$0xff]
    %v1249 = vld [vmem:[#allocation7 + $0xe10] sm:$0xff]
    %v1250 = vld [vmem:[#allocation7 + $0xe18] sm:$0xff]
    %v1251 = vld [vmem:[#allocation7 + $0xe20] sm:$0xff]
    %v1252 = vld [vmem:[#allocation7 + $0xe28] sm:$0xff]
    %v1253 = vld [vmem:[#allocation7 + $0xe30] sm:$0xff]
    %v1254 = vld [vmem:[#allocation7 + $0xe38] sm:$0xff]
    %v1255 = vld [vmem:[#allocation7 + $0xe40] sm:$0xff]
    %v1256 = vld [vmem:[#allocation7 + $0xe48] sm:$0xff]
    %v1257 = vld [vmem:[#allocation7 + $0xe50] sm:$0xff]
    %v1258 = vld [vmem:[#allocation7 + $0xe58] sm:$0xff]
    %v1259 = vld [vmem:[#allocation7 + $0xe60] sm:$0xff]
    %v1260 = vld [vmem:[#allocation7 + $0xe68] sm:$0xff]
    %v1261 = vld [vmem:[#allocation7 + $0xe70] sm:$0xff]
    %v1262 = vld [vmem:[#allocation7 + $0xe78] sm:$0xff]
    %v1263 = vld [vmem:[#allocation7 + $0xe80] sm:$0xff]
    %v1264 = vld [vmem:[#allocation7 + $0xe88] sm:$0xff]
    %v1265 = vld [vmem:[#allocation7 + $0xe90] sm:$0xff]
    %v1266 = vld [vmem:[#allocation7 + $0xe98] sm:$0xff]
    %v1267 = vld [vmem:[#allocation7 + $0xea0] sm:$0xff]
    %v1268 = vld [vmem:[#allocation7 + $0xea8] sm:$0xff]
    %v1269 = vld [vmem:[#allocation7 + $0xeb0] sm:$0xff]
    %v1270 = vld [vmem:[#allocation7 + $0xeb8] sm:$0xff]
    %v1271 = vld [vmem:[#allocation7 + $0xec0] sm:$0xff]
    %v1272 = vld [vmem:[#allocation7 + $0xec8] sm:$0xff]
    %v1273 = vld [vmem:[#allocation7 + $0xed0] sm:$0xff]
    %v1274 = vld [vmem:[#allocation7 + $0xed8] sm:$0xff]
    %v1275 = vld [vmem:[#allocation7 + $0xee0] sm:$0xff]
    %v1276 = vld [vmem:[#allocation7 + $0xee8] sm:$0xff]
    %v1277 = vld [vmem:[#allocation7 + $0xef0] sm:$0xff]
    %v1278 = vld [vmem:[#allocation7 + $0xef8] sm:$0xff]
    %v1279 = vld [vmem:[#allocation7 + $0xf00] sm:$0xff]
    %v1280 = vld [vmem:[#allocation7 + $0xf08] sm:$0xff]
    %v1281 = vld [vmem:[#allocation7 + $0xf10] sm:$0xff]
    %v1282 = vld [vmem:[#allocation7 + $0xf18] sm:$0xff]
    %v1283 = vld [vmem:[#allocation7 + $0xf20] sm:$0xff]
    %v1284 = vld [vmem:[#allocation7 + $0xf28] sm:$0xff]
    %v1285 = vld [vmem:[#allocation7 + $0xf30] sm:$0xff]
    %v1286 = vld [vmem:[#allocation7 + $0xf38] sm:$0xff]
    %v1287 = vld [vmem:[#allocation7 + $0xf40] sm:$0xff]
    %v1288 = vld [vmem:[#allocation7 + $0xf48] sm:$0xff]
    %v1289 = vld [vmem:[#allocation7 + $0xf50] sm:$0xff]
    %v1290 = vld [vmem:[#allocation7 + $0xf58] sm:$0xff]
    %v1291 = vld [vmem:[#allocation7 + $0xf60] sm:$0xff]
    %v1292 = vld [vmem:[#allocation7 + $0xf68] sm:$0xff]
    %v1293 = vld [vmem:[#allocation7 + $0xf70] sm:$0xff]
    %v1294 = vld [vmem:[#allocation7 + $0xf78] sm:$0xff]
    %v1295 = vld [vmem:[#allocation7 + $0xf80] sm:$0xff]
    %v1296 = vld [vmem:[#allocation7 + $0xf88] sm:$0xff]
    %v1297 = vld [vmem:[#allocation7 + $0xf90] sm:$0xff]
    %v1298 = vld [vmem:[#allocation7 + $0xf98] sm:$0xff]
    %v1299 = vld [vmem:[#allocation7 + $0xfa0] sm:$0xff]
    %v1300 = vld [vmem:[#allocation7 + $0xfa8] sm:$0xff]
    %v1301 = vld [vmem:[#allocation7 + $0xfb0] sm:$0xff]
    %v1302 = vld [vmem:[#allocation7 + $0xfb8] sm:$0xff]
    %v1303 = vld [vmem:[#allocation7 + $0xfc0] sm:$0xff]
    %v1304 = vld [vmem:[#allocation7 + $0xfc8] sm:$0xff]
    %v1305 = vld [vmem:[#allocation7 + $0xfd0] sm:$0xff]
    %v1306 = vld [vmem:[#allocation7 + $0xfd8] sm:$0xff]
    %v1307 = vld [vmem:[#allocation7 + $0xfe0] sm:$0xff]
    %v1308 = vld [vmem:[#allocation7 + $0xfe8] sm:$0xff]
    %v1309 = vld [vmem:[#allocation7 + $0xff0] sm:$0xff]
    %v1310 = vld [vmem:[#allocation7 + $0xff8] sm:$0xff]
    %1311 = vmatprep.subr.mxu0 %v800
    %1312 = vmatpush1.msra.mxu0 %v799
    %1313 = vmatprep.subr.mxu0 %v808
    %1314 = vmatpush1.msra.mxu0 %v807
    %1315 = vmatprep.subr.mxu0 %v816
    %1316 = vmatpush1.msra.mxu0 %v815
    %1317 = vmatprep.subr.mxu0 %v824
    %1318 = vmatpush1.msra.mxu0 %v823
    %1319 = vmatprep.subr.mxu0 %v832
    %1320 = vmatpush1.msra.mxu0 %v831
    %1321 = vmatprep.subr.mxu0 %v840
    %1322 = vmatpush1.msra.mxu0 %v839
    %1323 = vmatprep.subr.mxu0 %v848
    %1324 = vmatpush1.msra.mxu0 %v847
    %1325 = vmatprep.subr.mxu0 %v856
    %1326 = vmatpush1.msra.mxu0 %v855
    %1327 = vmatprep.subr.mxu0 %v864
    %1328 = vmatpush1.msra.mxu0 %v863
    %1329 = vmatprep.subr.mxu0 %v872
    %1330 = vmatpush1.msra.mxu0 %v871
    %1331 = vmatprep.subr.mxu0 %v880
    %1332 = vmatpush1.msra.mxu0 %v879
    %1333 = vmatprep.subr.mxu0 %v888
    %1334 = vmatpush1.msra.mxu0 %v887
    %1335 = vmatprep.subr.mxu0 %v896
    %1336 = vmatpush1.msra.mxu0 %v895
    %1337 = vmatprep.subr.mxu0 %v904
    %1338 = vmatpush1.msra.mxu0 %v903
    %1339 = vmatprep.subr.mxu0 %v912
    %1340 = vmatpush1.msra.mxu0 %v911
    %1341 = vmatprep.subr.mxu0 %v920
    %1342 = vmatpush1.msra.mxu0 %v919
    %1343 = vmatprep.subr.mxu0 %v928
    %1344 = vmatpush1.msra.mxu0 %v927
    %1345 = vmatprep.subr.mxu0 %v936
    %1346 = vmatpush1.msra.mxu0 %v935
    %1347 = vmatprep.subr.mxu0 %v944
    %1348 = vmatpush1.msra.mxu0 %v943
    %1349 = vmatprep.subr.mxu0 %v952
    %1350 = vmatpush1.msra.mxu0 %v951
    %1351 = vmatprep.subr.mxu0 %v960
    %1352 = vmatpush1.msra.mxu0 %v959
    %1353 = vmatprep.subr.mxu0 %v968
    %1354 = vmatpush1.msra.mxu0 %v967
    %1355 = vmatprep.subr.mxu0 %v976
    %1356 = vmatpush1.msra.mxu0 %v975
    %1357 = vmatprep.subr.mxu0 %v984
    %1358 = vmatpush1.msra.mxu0 %v983
    %1359 = vmatprep.subr.mxu0 %v992
    %1360 = vmatpush1.msra.mxu0 %v991
    %1361 = vmatprep.subr.mxu0 %v1000
    %1362 = vmatpush1.msra.mxu0 %v999
    %1363 = vmatprep.subr.mxu0 %v1008
    %1364 = vmatpush1.msra.mxu0 %v1007
    %1365 = vmatprep.subr.mxu0 %v1016
    %1366 = vmatpush1.msra.mxu0 %v1015
    %1367 = vmatprep.subr.mxu0 %v1024
    %1368 = vmatpush1.msra.mxu0 %v1023
    %1369 = vmatprep.subr.mxu0 %v1032
    %1370 = vmatpush1.msra.mxu0 %v1031
    %1371 = vmatprep.subr.mxu0 %v1040
    %1372 = vmatpush1.msra.mxu0 %v1039
    %1373 = vmatprep.subr.mxu0 %v1048
    %1374 = vmatpush1.msra.mxu0 %v1047
    %1375 = vmatprep.mubr.f32.mxu0 %v726
    %1376 = vmatmul.mubr.f32.gmra.mrb[0].mxu0 %v724
    %v1377 = vpop.f32.mrb[0].mxu0
    %v1378 = vadd.f32 0.0, %v1377
    %v1379 = vpop.f32.mrb[0].mxu0
    %v1380 = vadd.f32 0.0, %v1379
    %1381 = vdwg.mxu0
    %1382 = vmatprep.subr.mxu0 %v1056
    %1383 = vmatpush1.msra.mxu0 %v1055
    %1384 = vmatprep.subr.mxu0 %v1064
    %1385 = vmatpush1.msra.mxu0 %v1063
    %1386 = vmatprep.subr.mxu0 %v1072
    %1387 = vmatpush1.msra.mxu0 %v1071
    %1388 = vmatprep.subr.mxu0 %v1080
    %1389 = vmatpush1.msra.mxu0 %v1079
    %1390 = vmatprep.subr.mxu0 %v1088
    %1391 = vmatpush1.msra.mxu0 %v1087
    %1392 = vmatprep.subr.mxu0 %v1096
    %1393 = vmatpush1.msra.mxu0 %v1095
    %1394 = vmatprep.subr.mxu0 %v1104
    %1395 = vmatpush1.msra.mxu0 %v1103
    %1396 = vmatprep.subr.mxu0 %v1112
    %1397 = vmatpush1.msra.mxu0 %v1111
    %1398 = vmatprep.subr.mxu0 %v1120
    %1399 = vmatpush1.msra.mxu0 %v1119
    %1400 = vmatprep.subr.mxu0 %v1128
    %1401 = vmatpush1.msra.mxu0 %v1127
    %1402 = vmatprep.subr.mxu0 %v1136
    %1403 = vmatpush1.msra.mxu0 %v1135
    %1404 = vmatprep.subr.mxu0 %v1144
    %1405 = vmatpush1.msra.mxu0 %v1143
    %1406 = vmatprep.subr.mxu0 %v1152
    %1407 = vmatpush1.msra.mxu0 %v1151
    %1408 = vmatprep.subr.mxu0 %v1160
    %1409 = vmatpush1.msra.mxu0 %v1159
    %1410 = vmatprep.subr.mxu0 %v1168
    %1411 = vmatpush1.msra.mxu0 %v1167
    %1412 = vmatprep.subr.mxu0 %v1176
    %1413 = vmatpush1.msra.mxu0 %v1175
    %1414 = vmatprep.subr.mxu0 %v1184
    %1415 = vmatpush1.msra.mxu0 %v1183
    %1416 = vmatprep.subr.mxu0 %v1192
    %1417 = vmatpush1.msra.mxu0 %v1191
    %1418 = vmatprep.subr.mxu0 %v1200
    %1419 = vmatpush1.msra.mxu0 %v1199
    %1420 = vmatprep.subr.mxu0 %v1208
    %1421 = vmatpush1.msra.mxu0 %v1207
    %1422 = vmatprep.subr.mxu0 %v1216
    %1423 = vmatpush1.msra.mxu0 %v1215
    %1424 = vmatprep.subr.mxu0 %v1224
    %1425 = vmatpush1.msra.mxu0 %v1223
    %1426 = vmatprep.subr.mxu0 %v1232
    %1427 = vmatpush1.msra.mxu0 %v1231
    %1428 = vmatprep.subr.mxu0 %v1240
    %1429 = vmatpush1.msra.mxu0 %v1239
    %1430 = vmatprep.subr.mxu0 %v1248
    %1431 = vmatpush1.msra.mxu0 %v1247
    %1432 = vmatprep.subr.mxu0 %v1256
    %1433 = vmatpush1.msra.mxu0 %v1255
    %1434 = vmatprep.subr.mxu0 %v1264
    %1435 = vmatpush1.msra.mxu0 %v1263
    %1436 = vmatprep.subr.mxu0 %v1272
    %1437 = vmatpush1.msra.mxu0 %v1271
    %1438 = vmatprep.subr.mxu0 %v1280
    %1439 = vmatpush1.msra.mxu0 %v1279
    %1440 = vmatprep.subr.mxu0 %v1288
    %1441 = vmatpush1.msra.mxu0 %v1287
    %1442 = vmatprep.subr.mxu0 %v1296
    %1443 = vmatpush1.msra.mxu0 %v1295
    %1444 = vmatprep.subr.mxu0 %v1304
    %1445 = vmatpush1.msra.mxu0 %v1303
    %1446 = vmatprep.mubr.f32.mxu0 %v797
    %1447 = vmatmul.mubr.f32.gmra.mrb[0].mxu0 %v795
    %v1448 = vpop.f32.mrb[0].mxu0
    %v1449 = vadd.f32 %v1378, %v1448
    %v1450 = vpop.f32.mrb[0].mxu0
    %v1451 = vadd.f32 %v1380, %v1450
    %1452 = vdwg.mxu0
    %1453 = vmatprep.subr.mxu0 %v802
    %1454 = vmatpush1.msra.mxu0 %v801
    %1455 = vmatprep.subr.mxu0 %v810
    %1456 = vmatpush1.msra.mxu0 %v809
    %1457 = vmatprep.subr.mxu0 %v818
    %1458 = vmatpush1.msra.mxu0 %v817
    %1459 = vmatprep.subr.mxu0 %v826
    %1460 = vmatpush1.msra.mxu0 %v825
    %1461 = vmatprep.subr.mxu0 %v834
    %1462 = vmatpush1.msra.mxu0 %v833
    %1463 = vmatprep.subr.mxu0 %v842
    %1464 = vmatpush1.msra.mxu0 %v841
    %1465 = vmatprep.subr.mxu0 %v850
    %1466 = vmatpush1.msra.mxu0 %v849
    %1467 = vmatprep.subr.mxu0 %v858
    %1468 = vmatpush1.msra.mxu0 %v857
    %1469 = vmatprep.subr.mxu0 %v866
    %1470 = vmatpush1.msra.mxu0 %v865
    %1471 = vmatprep.subr.mxu0 %v874
    %1472 = vmatpush1.msra.mxu0 %v873
    %1473 = vmatprep.subr.mxu0 %v882
    %1474 = vmatpush1.msra.mxu0 %v881
    %1475 = vmatprep.subr.mxu0 %v890
    %1476 = vmatpush1.msra.mxu0 %v889
    %1477 = vmatprep.subr.mxu0 %v898
    %1478 = vmatpush1.msra.mxu0 %v897
    %1479 = vmatprep.subr.mxu0 %v906
    %1480 = vmatpush1.msra.mxu0 %v905
    %1481 = vmatprep.subr.mxu0 %v914
    %1482 = vmatpush1.msra.mxu0 %v913
    %1483 = vmatprep.subr.mxu0 %v922
    %1484 = vmatpush1.msra.mxu0 %v921
    %1485 = vmatprep.subr.mxu0 %v930
    %1486 = vmatpush1.msra.mxu0 %v929
    %1487 = vmatprep.subr.mxu0 %v938
    %1488 = vmatpush1.msra.mxu0 %v937
    %1489 = vmatprep.subr.mxu0 %v946
    %1490 = vmatpush1.msra.mxu0 %v945
    %1491 = vmatprep.subr.mxu0 %v954
    %1492 = vmatpush1.msra.mxu0 %v953
    %1493 = vmatprep.subr.mxu0 %v962
    %1494 = vmatpush1.msra.mxu0 %v961
    %1495 = vmatprep.subr.mxu0 %v970
    %1496 = vmatpush1.msra.mxu0 %v969
    %1497 = vmatprep.subr.mxu0 %v978
    %1498 = vmatpush1.msra.mxu0 %v977
    %1499 = vmatprep.subr.mxu0 %v986
    %1500 = vmatpush1.msra.mxu0 %v985
    %1501 = vmatprep.subr.mxu0 %v994
    %1502 = vmatpush1.msra.mxu0 %v993
    %1503 = vmatprep.subr.mxu0 %v1002
    %1504 = vmatpush1.msra.mxu0 %v1001
    %1505 = vmatprep.subr.mxu0 %v1010
    %1506 = vmatpush1.msra.mxu0 %v1009
    %1507 = vmatprep.subr.mxu0 %v1018
    %1508 = vmatpush1.msra.mxu0 %v1017
    %1509 = vmatprep.subr.mxu0 %v1026
    %1510 = vmatpush1.msra.mxu0 %v1025
    %1511 = vmatprep.subr.mxu0 %v1034
    %1512 = vmatpush1.msra.mxu0 %v1033
    %1513 = vmatprep.subr.mxu0 %v1042
    %1514 = vmatpush1.msra.mxu0 %v1041
    %1515 = vmatprep.subr.mxu0 %v1050
    %1516 = vmatpush1.msra.mxu0 %v1049
    %1517 = vmatprep.mubr.f32.mxu0 %v726
    %1518 = vmatmul.mubr.f32.gmra.mrb[0].mxu0 %v724
    %v1519 = vpop.f32.mrb[0].mxu0
    %v1520 = vadd.f32 0.0, %v1519
    %v1521 = vpop.f32.mrb[0].mxu0
    %v1522 = vadd.f32 0.0, %v1521
    %1523 = vdwg.mxu0
    %1524 = vmatprep.subr.mxu0 %v1058
    %1525 = vmatpush1.msra.mxu0 %v1057
    %1526 = vmatprep.subr.mxu0 %v1066
    %1527 = vmatpush1.msra.mxu0 %v1065
    %1528 = vmatprep.subr.mxu0 %v1074
    %1529 = vmatpush1.msra.mxu0 %v1073
    %1530 = vmatprep.subr.mxu0 %v1082
    %1531 = vmatpush1.msra.mxu0 %v1081
    %1532 = vmatprep.subr.mxu0 %v1090
    %1533 = vmatpush1.msra.mxu0 %v1089
    %1534 = vmatprep.subr.mxu0 %v1098
    %1535 = vmatpush1.msra.mxu0 %v1097
    %1536 = vmatprep.subr.mxu0 %v1106
    %1537 = vmatpush1.msra.mxu0 %v1105
    %1538 = vmatprep.subr.mxu0 %v1114
    %1539 = vmatpush1.msra.mxu0 %v1113
    %1540 = vmatprep.subr.mxu0 %v1122
    %1541 = vmatpush1.msra.mxu0 %v1121
    %1542 = vmatprep.subr.mxu0 %v1130
    %1543 = vmatpush1.msra.mxu0 %v1129
    %1544 = vmatprep.subr.mxu0 %v1138
    %1545 = vmatpush1.msra.mxu0 %v1137
    %1546 = vmatprep.subr.mxu0 %v1146
    %1547 = vmatpush1.msra.mxu0 %v1145
    %1548 = vmatprep.subr.mxu0 %v1154
    %1549 = vmatpush1.msra.mxu0 %v1153
    %1550 = vmatprep.subr.mxu0 %v1162
    %1551 = vmatpush1.msra.mxu0 %v1161
    %1552 = vmatprep.subr.mxu0 %v1170
    %1553 = vmatpush1.msra.mxu0 %v1169
    %1554 = vmatprep.subr.mxu0 %v1178
    %1555 = vmatpush1.msra.mxu0 %v1177
    %1556 = vmatprep.subr.mxu0 %v1186
    %1557 = vmatpush1.msra.mxu0 %v1185
    %1558 = vmatprep.subr.mxu0 %v1194
    %1559 = vmatpush1.msra.mxu0 %v1193
    %1560 = vmatprep.subr.mxu0 %v1202
    %1561 = vmatpush1.msra.mxu0 %v1201
    %1562 = vmatprep.subr.mxu0 %v1210
    %1563 = vmatpush1.msra.mxu0 %v1209
    %1564 = vmatprep.subr.mxu0 %v1218
    %1565 = vmatpush1.msra.mxu0 %v1217
    %1566 = vmatprep.subr.mxu0 %v1226
    %1567 = vmatpush1.msra.mxu0 %v1225
    %1568 = vmatprep.subr.mxu0 %v1234
    %1569 = vmatpush1.msra.mxu0 %v1233
    %1570 = vmatprep.subr.mxu0 %v1242
    %1571 = vmatpush1.msra.mxu0 %v1241
    %1572 = vmatprep.subr.mxu0 %v1250
    %1573 = vmatpush1.msra.mxu0 %v1249
    %1574 = vmatprep.subr.mxu0 %v1258
    %1575 = vmatpush1.msra.mxu0 %v1257
    %1576 = vmatprep.subr.mxu0 %v1266
    %1577 = vmatpush1.msra.mxu0 %v1265
    %1578 = vmatprep.subr.mxu0 %v1274
    %1579 = vmatpush1.msra.mxu0 %v1273
    %1580 = vmatprep.subr.mxu0 %v1282
    %1581 = vmatpush1.msra.mxu0 %v1281
    %1582 = vmatprep.subr.mxu0 %v1290
    %1583 = vmatpush1.msra.mxu0 %v1289
    %1584 = vmatprep.subr.mxu0 %v1298
    %1585 = vmatpush1.msra.mxu0 %v1297
    %1586 = vmatprep.subr.mxu0 %v1306
    %1587 = vmatpush1.msra.mxu0 %v1305
    %1588 = vmatprep.mubr.f32.mxu0 %v797
    %1589 = vmatmul.mubr.f32.gmra.mrb[0].mxu0 %v795
    %v1590 = vpop.f32.mrb[0].mxu0
    %v1591 = vadd.f32 %v1520, %v1590
    %v1592 = vpop.f32.mrb[0].mxu0
    %v1593 = vadd.f32 %v1522, %v1592
    %1594 = vdwg.mxu0
    %1595 = vmatprep.subr.mxu0 %v804
    %1596 = vmatpush1.msra.mxu0 %v803
    %1597 = vmatprep.subr.mxu0 %v812
    %1598 = vmatpush1.msra.mxu0 %v811
    %1599 = vmatprep.subr.mxu0 %v820
    %1600 = vmatpush1.msra.mxu0 %v819
    %1601 = vmatprep.subr.mxu0 %v828
    %1602 = vmatpush1.msra.mxu0 %v827
    %1603 = vmatprep.subr.mxu0 %v836
    %1604 = vmatpush1.msra.mxu0 %v835
    %1605 = vmatprep.subr.mxu0 %v844
    %1606 = vmatpush1.msra.mxu0 %v843
    %1607 = vmatprep.subr.mxu0 %v852
    %1608 = vmatpush1.msra.mxu0 %v851
    %1609 = vmatprep.subr.mxu0 %v860
    %1610 = vmatpush1.msra.mxu0 %v859
    %1611 = vmatprep.subr.mxu0 %v868
    %1612 = vmatpush1.msra.mxu0 %v867
    %1613 = vmatprep.subr.mxu0 %v876
    %1614 = vmatpush1.msra.mxu0 %v875
    %1615 = vmatprep.subr.mxu0 %v884
    %1616 = vmatpush1.msra.mxu0 %v883
    %1617 = vmatprep.subr.mxu0 %v892
    %1618 = vmatpush1.msra.mxu0 %v891
    %1619 = vmatprep.subr.mxu0 %v900
    %1620 = vmatpush1.msra.mxu0 %v899
    %1621 = vmatprep.subr.mxu0 %v908
    %1622 = vmatpush1.msra.mxu0 %v907
    %1623 = vmatprep.subr.mxu0 %v916
    %1624 = vmatpush1.msra.mxu0 %v915
    %1625 = vmatprep.subr.mxu0 %v924
    %1626 = vmatpush1.msra.mxu0 %v923
    %1627 = vmatprep.subr.mxu0 %v932
    %1628 = vmatpush1.msra.mxu0 %v931
    %1629 = vmatprep.subr.mxu0 %v940
    %1630 = vmatpush1.msra.mxu0 %v939
    %1631 = vmatprep.subr.mxu0 %v948
    %1632 = vmatpush1.msra.mxu0 %v947
    %1633 = vmatprep.subr.mxu0 %v956
    %1634 = vmatpush1.msra.mxu0 %v955
    %1635 = vmatprep.subr.mxu0 %v964
    %1636 = vmatpush1.msra.mxu0 %v963
    %1637 = vmatprep.subr.mxu0 %v972
    %1638 = vmatpush1.msra.mxu0 %v971
    %1639 = vmatprep.subr.mxu0 %v980
    %1640 = vmatpush1.msra.mxu0 %v979
    %1641 = vmatprep.subr.mxu0 %v988
    %1642 = vmatpush1.msra.mxu0 %v987
    %1643 = vmatprep.subr.mxu0 %v996
    %1644 = vmatpush1.msra.mxu0 %v995
    %1645 = vmatprep.subr.mxu0 %v1004
    %1646 = vmatpush1.msra.mxu0 %v1003
    %1647 = vmatprep.subr.mxu0 %v1012
    %1648 = vmatpush1.msra.mxu0 %v1011
    %1649 = vmatprep.subr.mxu0 %v1020
    %1650 = vmatpush1.msra.mxu0 %v1019
    %1651 = vmatprep.subr.mxu0 %v1028
    %1652 = vmatpush1.msra.mxu0 %v1027
    %1653 = vmatprep.subr.mxu0 %v1036
    %1654 = vmatpush1.msra.mxu0 %v1035
    %1655 = vmatprep.subr.mxu0 %v1044
    %1656 = vmatpush1.msra.mxu0 %v1043
    %1657 = vmatprep.subr.mxu0 %v1052
    %1658 = vmatpush1.msra.mxu0 %v1051
    %1659 = vmatprep.mubr.f32.mxu0 %v726
    %1660 = vmatmul.mubr.f32.gmra.mrb[0].mxu0 %v724
    %v1661 = vpop.f32.mrb[0].mxu0
    %v1662 = vadd.f32 0.0, %v1661
    %v1663 = vpop.f32.mrb[0].mxu0
    %v1664 = vadd.f32 0.0, %v1663
    %1665 = vdwg.mxu0
    %1666 = vmatprep.subr.mxu0 %v1060
    %1667 = vmatpush1.msra.mxu0 %v1059
    %1668 = vmatprep.subr.mxu0 %v1068
    %1669 = vmatpush1.msra.mxu0 %v1067
    %1670 = vmatprep.subr.mxu0 %v1076
    %1671 = vmatpush1.msra.mxu0 %v1075
    %1672 = vmatprep.subr.mxu0 %v1084
    %1673 = vmatpush1.msra.mxu0 %v1083
    %1674 = vmatprep.subr.mxu0 %v1092
    %1675 = vmatpush1.msra.mxu0 %v1091
    %1676 = vmatprep.subr.mxu0 %v1100
    %1677 = vmatpush1.msra.mxu0 %v1099
    %1678 = vmatprep.subr.mxu0 %v1108
    %1679 = vmatpush1.msra.mxu0 %v1107
    %1680 = vmatprep.subr.mxu0 %v1116
    %1681 = vmatpush1.msra.mxu0 %v1115
    %1682 = vmatprep.subr.mxu0 %v1124
    %1683 = vmatpush1.msra.mxu0 %v1123
    %1684 = vmatprep.subr.mxu0 %v1132
    %1685 = vmatpush1.msra.mxu0 %v1131
    %1686 = vmatprep.subr.mxu0 %v1140
    %1687 = vmatpush1.msra.mxu0 %v1139
    %1688 = vmatprep.subr.mxu0 %v1148
    %1689 = vmatpush1.msra.mxu0 %v1147
    %1690 = vmatprep.subr.mxu0 %v1156
    %1691 = vmatpush1.msra.mxu0 %v1155
    %1692 = vmatprep.subr.mxu0 %v1164
    %1693 = vmatpush1.msra.mxu0 %v1163
    %1694 = vmatprep.subr.mxu0 %v1172
    %1695 = vmatpush1.msra.mxu0 %v1171
    %1696 = vmatprep.subr.mxu0 %v1180
    %1697 = vmatpush1.msra.mxu0 %v1179
    %1698 = vmatprep.subr.mxu0 %v1188
    %1699 = vmatpush1.msra.mxu0 %v1187
    %1700 = vmatprep.subr.mxu0 %v1196
    %1701 = vmatpush1.msra.mxu0 %v1195
    %1702 = vmatprep.subr.mxu0 %v1204
    %1703 = vmatpush1.msra.mxu0 %v1203
    %1704 = vmatprep.subr.mxu0 %v1212
    %1705 = vmatpush1.msra.mxu0 %v1211
    %1706 = vmatprep.subr.mxu0 %v1220
    %1707 = vmatpush1.msra.mxu0 %v1219
    %1708 = vmatprep.subr.mxu0 %v1228
    %1709 = vmatpush1.msra.mxu0 %v1227
    %1710 = vmatprep.subr.mxu0 %v1236
    %1711 = vmatpush1.msra.mxu0 %v1235
    %1712 = vmatprep.subr.mxu0 %v1244
    %1713 = vmatpush1.msra.mxu0 %v1243
    %1714 = vmatprep.subr.mxu0 %v1252
    %1715 = vmatpush1.msra.mxu0 %v1251
    %1716 = vmatprep.subr.mxu0 %v1260
    %1717 = vmatpush1.msra.mxu0 %v1259
    %1718 = vmatprep.subr.mxu0 %v1268
    %1719 = vmatpush1.msra.mxu0 %v1267
    %1720 = vmatprep.subr.mxu0 %v1276
    %1721 = vmatpush1.msra.mxu0 %v1275
    %1722 = vmatprep.subr.mxu0 %v1284
    %1723 = vmatpush1.msra.mxu0 %v1283
    %1724 = vmatprep.subr.mxu0 %v1292
    %1725 = vmatpush1.msra.mxu0 %v1291
    %1726 = vmatprep.subr.mxu0 %v1300
    %1727 = vmatpush1.msra.mxu0 %v1299
    %1728 = vmatprep.subr.mxu0 %v1308
    %1729 = vmatpush1.msra.mxu0 %v1307
    %1730 = vmatprep.mubr.f32.mxu0 %v797
    %1731 = vmatmul.mubr.f32.gmra.mrb[0].mxu0 %v795
    %v1732 = vpop.f32.mrb[0].mxu0
    %v1733 = vadd.f32 %v1662, %v1732
    %v1734 = vpop.f32.mrb[0].mxu0
    %v1735 = vadd.f32 %v1664, %v1734
    %1736 = vdwg.mxu0
    %1737 = vmatprep.subr.mxu0 %v806
    %1738 = vmatpush1.msra.mxu0 %v805
    %1739 = vmatprep.subr.mxu0 %v814
    %1740 = vmatpush1.msra.mxu0 %v813
    %1741 = vmatprep.subr.mxu0 %v822
    %1742 = vmatpush1.msra.mxu0 %v821
    %1743 = vmatprep.subr.mxu0 %v830
    %1744 = vmatpush1.msra.mxu0 %v829
    %1745 = vmatprep.subr.mxu0 %v838
    %1746 = vmatpush1.msra.mxu0 %v837
    %1747 = vmatprep.subr.mxu0 %v846
    %1748 = vmatpush1.msra.mxu0 %v845
    %1749 = vmatprep.subr.mxu0 %v854
    %1750 = vmatpush1.msra.mxu0 %v853
    %1751 = vmatprep.subr.mxu0 %v862
    %1752 = vmatpush1.msra.mxu0 %v861
    %1753 = vmatprep.subr.mxu0 %v870
    %1754 = vmatpush1.msra.mxu0 %v869
    %1755 = vmatprep.subr.mxu0 %v878
    %1756 = vmatpush1.msra.mxu0 %v877
    %1757 = vmatprep.subr.mxu0 %v886
    %1758 = vmatpush1.msra.mxu0 %v885
    %1759 = vmatprep.subr.mxu0 %v894
    %1760 = vmatpush1.msra.mxu0 %v893
    %1761 = vmatprep.subr.mxu0 %v902
    %1762 = vmatpush1.msra.mxu0 %v901
    %1763 = vmatprep.subr.mxu0 %v910
    %1764 = vmatpush1.msra.mxu0 %v909
    %1765 = vmatprep.subr.mxu0 %v918
    %1766 = vmatpush1.msra.mxu0 %v917
    %1767 = vmatprep.subr.mxu0 %v926
    %1768 = vmatpush1.msra.mxu0 %v925
    %1769 = vmatprep.subr.mxu0 %v934
    %1770 = vmatpush1.msra.mxu0 %v933
    %1771 = vmatprep.subr.mxu0 %v942
    %1772 = vmatpush1.msra.mxu0 %v941
    %1773 = vmatprep.subr.mxu0 %v950
    %1774 = vmatpush1.msra.mxu0 %v949
    %1775 = vmatprep.subr.mxu0 %v958
    %1776 = vmatpush1.msra.mxu0 %v957
    %1777 = vmatprep.subr.mxu0 %v966
    %1778 = vmatpush1.msra.mxu0 %v965
    %1779 = vmatprep.subr.mxu0 %v974
    %1780 = vmatpush1.msra.mxu0 %v973
    %1781 = vmatprep.subr.mxu0 %v982
    %1782 = vmatpush1.msra.mxu0 %v981
    %1783 = vmatprep.subr.mxu0 %v990
    %1784 = vmatpush1.msra.mxu0 %v989
    %1785 = vmatprep.subr.mxu0 %v998
    %1786 = vmatpush1.msra.mxu0 %v997
    %1787 = vmatprep.subr.mxu0 %v1006
    %1788 = vmatpush1.msra.mxu0 %v1005
    %1789 = vmatprep.subr.mxu0 %v1014
    %1790 = vmatpush1.msra.mxu0 %v1013
    %1791 = vmatprep.subr.mxu0 %v1022
    %1792 = vmatpush1.msra.mxu0 %v1021
    %1793 = vmatprep.subr.mxu0 %v1030
    %1794 = vmatpush1.msra.mxu0 %v1029
    %1795 = vmatprep.subr.mxu0 %v1038
    %1796 = vmatpush1.msra.mxu0 %v1037
    %1797 = vmatprep.subr.mxu0 %v1046
    %1798 = vmatpush1.msra.mxu0 %v1045
    %1799 = vmatprep.subr.mxu0 %v1054
    %1800 = vmatpush1.msra.mxu0 %v1053
    %1801 = vmatprep.mubr.f32.mxu0 %v726
    %1802 = vmatmul.mubr.f32.gmra.mrb[0].mxu0 %v724
    %v1803 = vpop.f32.mrb[0].mxu0
    %v1804 = vadd.f32 0.0, %v1803
    %v1805 = vpop.f32.mrb[0].mxu0
    %v1806 = vadd.f32 0.0, %v1805
    %1807 = vdwg.mxu0
    %1808 = vmatprep.subr.mxu0 %v1062
    %1809 = vmatpush1.msra.mxu0 %v1061
    %1810 = vmatprep.subr.mxu0 %v1070
    %1811 = vmatpush1.msra.mxu0 %v1069
    %1812 = vmatprep.subr.mxu0 %v1078
    %1813 = vmatpush1.msra.mxu0 %v1077
    %1814 = vmatprep.subr.mxu0 %v1086
    %1815 = vmatpush1.msra.mxu0 %v1085
    %1816 = vmatprep.subr.mxu0 %v1094
    %1817 = vmatpush1.msra.mxu0 %v1093
    %1818 = vmatprep.subr.mxu0 %v1102
    %1819 = vmatpush1.msra.mxu0 %v1101
    %1820 = vmatprep.subr.mxu0 %v1110
    %1821 = vmatpush1.msra.mxu0 %v1109
    %1822 = vmatprep.subr.mxu0 %v1118
    %1823 = vmatpush1.msra.mxu0 %v1117
    %1824 = vmatprep.subr.mxu0 %v1126
    %1825 = vmatpush1.msra.mxu0 %v1125
    %1826 = vmatprep.subr.mxu0 %v1134
    %1827 = vmatpush1.msra.mxu0 %v1133
    %1828 = vmatprep.subr.mxu0 %v1142
    %1829 = vmatpush1.msra.mxu0 %v1141
    %1830 = vmatprep.subr.mxu0 %v1150
    %1831 = vmatpush1.msra.mxu0 %v1149
    %1832 = vmatprep.subr.mxu0 %v1158
    %1833 = vmatpush1.msra.mxu0 %v1157
    %1834 = vmatprep.subr.mxu0 %v1166
    %1835 = vmatpush1.msra.mxu0 %v1165
    %1836 = vmatprep.subr.mxu0 %v1174
    %1837 = vmatpush1.msra.mxu0 %v1173
    %1838 = vmatprep.subr.mxu0 %v1182
    %1839 = vmatpush1.msra.mxu0 %v1181
    %1840 = vmatprep.subr.mxu0 %v1190
    %1841 = vmatpush1.msra.mxu0 %v1189
    %1842 = vmatprep.subr.mxu0 %v1198
    %1843 = vmatpush1.msra.mxu0 %v1197
    %1844 = vmatprep.subr.mxu0 %v1206
    %1845 = vmatpush1.msra.mxu0 %v1205
    %1846 = vmatprep.subr.mxu0 %v1214
    %1847 = vmatpush1.msra.mxu0 %v1213
    %1848 = vmatprep.subr.mxu0 %v1222
    %1849 = vmatpush1.msra.mxu0 %v1221
    %1850 = vmatprep.subr.mxu0 %v1230
    %1851 = vmatpush1.msra.mxu0 %v1229
    %1852 = vmatprep.subr.mxu0 %v1238
    %1853 = vmatpush1.msra.mxu0 %v1237
    %1854 = vmatprep.subr.mxu0 %v1246
    %1855 = vmatpush1.msra.mxu0 %v1245
    %1856 = vmatprep.subr.mxu0 %v1254
    %1857 = vmatpush1.msra.mxu0 %v1253
    %1858 = vmatprep.subr.mxu0 %v1262
    %1859 = vmatpush1.msra.mxu0 %v1261
    %1860 = vmatprep.subr.mxu0 %v1270
    %1861 = vmatpush1.msra.mxu0 %v1269
    %1862 = vmatprep.subr.mxu0 %v1278
    %1863 = vmatpush1.msra.mxu0 %v1277
    %1864 = vmatprep.subr.mxu0 %v1286
    %1865 = vmatpush1.msra.mxu0 %v1285
    %1866 = vmatprep.subr.mxu0 %v1294
    %1867 = vmatpush1.msra.mxu0 %v1293
    %1868 = vmatprep.subr.mxu0 %v1302
    %1869 = vmatpush1.msra.mxu0 %v1301
    %1870 = vmatprep.subr.mxu0 %v1310
    %1871 = vmatpush1.msra.mxu0 %v1309
    %1872 = vmatprep.mubr.f32.mxu0 %v797
    %1873 = vmatmul.mubr.f32.gmra.mrb[0].mxu0 %v795
    %v1874 = vpop.f32.mrb[0].mxu0
    %v1875 = vadd.f32 %v1804, %v1874
    %v1876 = vpop.f32.mrb[0].mxu0
    %v1877 = vadd.f32 %v1806, %v1876
    %1878 = vdwg.mxu0
    %1879 = vst [vmem:[%s7] sm:$0x1f] %v1449
    %1880 = vst [vmem:[%s7 + $0x8] sm:$0x1f] %v1451
    %1881 = vst [vmem:[%s7 + $0x10] sm:$0x1f] %v1591
    %1882 = vst [vmem:[%s7 + $0x18] sm:$0x1f] %v1593
    %1883 = vst [vmem:[%s7 + $0x20] sm:$0x1f] %v1733
    %1884 = vst [vmem:[%s7 + $0x28] sm:$0x1f] %v1735
    %1885 = vst [vmem:[%s7 + $0x30] sm:$0x1f] %v1875
    %1886 = vst [vmem:[%s7 + $0x38] sm:$0x1f] %v1877
    %v1887 = vld [vmem:[#allocation6] sm:$0xff]
    %v1888 = vld [vmem:[#allocation6 + $0x8] sm:$0xff]
    %v1889 = vld [vmem:[#allocation6 + $0x10] sm:$0xff]
    %v1890 = vld [vmem:[#allocation6 + $0x18] sm:$0xff]
    %v1891 = vld [vmem:[#allocation6 + $0x20] sm:$0xff]
    %v1892 = vld [vmem:[#allocation6 + $0x28] sm:$0xff]
    %v1893 = vld [vmem:[#allocation6 + $0x30] sm:$0xff]
    %v1894 = vld [vmem:[#allocation6 + $0x38] sm:$0xff]
    %v1895 = vld [vmem:[#allocation6 + $0x40] sm:$0xff]
    %v1896 = vld [vmem:[#allocation6 + $0x48] sm:$0xff]
    %v1897 = vld [vmem:[#allocation6 + $0x50] sm:$0xff]
    %v1898 = vld [vmem:[#allocation6 + $0x58] sm:$0xff]
    %v1899 = vld [vmem:[#allocation6 + $0x60] sm:$0xff]
    %v1900 = vld [vmem:[#allocation6 + $0x68] sm:$0xff]
    %v1901 = vld [vmem:[#allocation6 + $0x70] sm:$0xff]
    %v1902 = vld [vmem:[#allocation6 + $0x78] sm:$0xff]
    %v1903 = vld [vmem:[#allocation6 + $0x80] sm:$0xff]
    %v1904 = vld [vmem:[#allocation6 + $0x88] sm:$0xff]
    %v1905 = vld [vmem:[#allocation6 + $0x90] sm:$0xff]
    %v1906 = vld [vmem:[#allocation6 + $0x98] sm:$0xff]
    %v1907 = vld [vmem:[#allocation6 + $0xa0] sm:$0xff]
    %v1908 = vld [vmem:[#allocation6 + $0xa8] sm:$0xff]
    %v1909 = vld [vmem:[#allocation6 + $0xb0] sm:$0xff]
    %v1910 = vld [vmem:[#allocation6 + $0xb8] sm:$0xff]
    %v1911 = vld [vmem:[#allocation6 + $0xc0] sm:$0xff]
    %v1912 = vld [vmem:[#allocation6 + $0xc8] sm:$0xff]
    %v1913 = vld [vmem:[#allocation6 + $0xd0] sm:$0xff]
    %v1914 = vld [vmem:[#allocation6 + $0xd8] sm:$0xff]
    %v1915 = vld [vmem:[#allocation6 + $0xe0] sm:$0xff]
    %v1916 = vld [vmem:[#allocation6 + $0xe8] sm:$0xff]
    %v1917 = vld [vmem:[#allocation6 + $0xf0] sm:$0xff]
    %v1918 = vld [vmem:[#allocation6 + $0xf8] sm:$0xff]
    %v1919 = vld [vmem:[#allocation6 + $0x100] sm:$0xff]
    %v1920 = vld [vmem:[#allocation6 + $0x108] sm:$0xff]
    %v1921 = vld [vmem:[#allocation6 + $0x110] sm:$0xff]
    %v1922 = vld [vmem:[#allocation6 + $0x118] sm:$0xff]
    %v1923 = vld [vmem:[#allocation6 + $0x120] sm:$0xff]
    %v1924 = vld [vmem:[#allocation6 + $0x128] sm:$0xff]
    %v1925 = vld [vmem:[#allocation6 + $0x130] sm:$0xff]
    %v1926 = vld [vmem:[#allocation6 + $0x138] sm:$0xff]
    %v1927 = vld [vmem:[#allocation6 + $0x140] sm:$0xff]
    %v1928 = vld [vmem:[#allocation6 + $0x148] sm:$0xff]
    %v1929 = vld [vmem:[#allocation6 + $0x150] sm:$0xff]
    %v1930 = vld [vmem:[#allocation6 + $0x158] sm:$0xff]
    %v1931 = vld [vmem:[#allocation6 + $0x160] sm:$0xff]
    %v1932 = vld [vmem:[#allocation6 + $0x168] sm:$0xff]
    %v1933 = vld [vmem:[#allocation6 + $0x170] sm:$0xff]
    %v1934 = vld [vmem:[#allocation6 + $0x178] sm:$0xff]
    %v1935 = vld [vmem:[#allocation6 + $0x180] sm:$0xff]
    %v1936 = vld [vmem:[#allocation6 + $0x188] sm:$0xff]
    %v1937 = vld [vmem:[#allocation6 + $0x190] sm:$0xff]
    %v1938 = vld [vmem:[#allocation6 + $0x198] sm:$0xff]
    %v1939 = vld [vmem:[#allocation6 + $0x1a0] sm:$0xff]
    %v1940 = vld [vmem:[#allocation6 + $0x1a8] sm:$0xff]
    %v1941 = vld [vmem:[#allocation6 + $0x1b0] sm:$0xff]
    %v1942 = vld [vmem:[#allocation6 + $0x1b8] sm:$0xff]
    %v1943 = vld [vmem:[#allocation6 + $0x1c0] sm:$0xff]
    %v1944 = vld [vmem:[#allocation6 + $0x1c8] sm:$0xff]
    %v1945 = vld [vmem:[#allocation6 + $0x1d0] sm:$0xff]
    %v1946 = vld [vmem:[#allocation6 + $0x1d8] sm:$0xff]
    %v1947 = vld [vmem:[#allocation6 + $0x1e0] sm:$0xff]
    %v1948 = vld [vmem:[#allocation6 + $0x1e8] sm:$0xff]
    %v1949 = vld [vmem:[#allocation6 + $0x1f0] sm:$0xff]
    %v1950 = vld [vmem:[#allocation6 + $0x1f8] sm:$0xff]
    %v1951 = vld [vmem:[#allocation6 + $0x200] sm:$0xff]
    %v1952 = vld [vmem:[#allocation6 + $0x208] sm:$0xff]
    %v1953 = vld [vmem:[#allocation6 + $0x210] sm:$0xff]
    %v1954 = vld [vmem:[#allocation6 + $0x218] sm:$0xff]
    %v1955 = vld [vmem:[#allocation6 + $0x220] sm:$0xff]
    %v1956 = vld [vmem:[#allocation6 + $0x228] sm:$0xff]
    %v1957 = vld [vmem:[#allocation6 + $0x230] sm:$0xff]
    %v1958 = vld [vmem:[#allocation6 + $0x238] sm:$0xff]
    %v1959 = vld [vmem:[#allocation6 + $0x240] sm:$0xff]
    %v1960 = vld [vmem:[#allocation6 + $0x248] sm:$0xff]
    %v1961 = vld [vmem:[#allocation6 + $0x250] sm:$0xff]
    %v1962 = vld [vmem:[#allocation6 + $0x258] sm:$0xff]
    %v1963 = vld [vmem:[#allocation6 + $0x260] sm:$0xff]
    %v1964 = vld [vmem:[#allocation6 + $0x268] sm:$0xff]
    %v1965 = vld [vmem:[#allocation6 + $0x270] sm:$0xff]
    %v1966 = vld [vmem:[#allocation6 + $0x278] sm:$0xff]
    %v1967 = vld [vmem:[#allocation6 + $0x280] sm:$0xff]
    %v1968 = vld [vmem:[#allocation6 + $0x288] sm:$0xff]
    %v1969 = vld [vmem:[#allocation6 + $0x290] sm:$0xff]
    %v1970 = vld [vmem:[#allocation6 + $0x298] sm:$0xff]
    %v1971 = vld [vmem:[#allocation6 + $0x2a0] sm:$0xff]
    %v1972 = vld [vmem:[#allocation6 + $0x2a8] sm:$0xff]
    %v1973 = vld [vmem:[#allocation6 + $0x2b0] sm:$0xff]
    %v1974 = vld [vmem:[#allocation6 + $0x2b8] sm:$0xff]
    %v1975 = vld [vmem:[#allocation6 + $0x2c0] sm:$0xff]
    %v1976 = vld [vmem:[#allocation6 + $0x2c8] sm:$0xff]
    %v1977 = vld [vmem:[#allocation6 + $0x2d0] sm:$0xff]
    %v1978 = vld [vmem:[#allocation6 + $0x2d8] sm:$0xff]
    %v1979 = vld [vmem:[#allocation6 + $0x2e0] sm:$0xff]
    %v1980 = vld [vmem:[#allocation6 + $0x2e8] sm:$0xff]
    %v1981 = vld [vmem:[#allocation6 + $0x2f0] sm:$0xff]
    %v1982 = vld [vmem:[#allocation6 + $0x2f8] sm:$0xff]
    %v1983 = vld [vmem:[#allocation6 + $0x300] sm:$0xff]
    %v1984 = vld [vmem:[#allocation6 + $0x308] sm:$0xff]
    %v1985 = vld [vmem:[#allocation6 + $0x310] sm:$0xff]
    %v1986 = vld [vmem:[#allocation6 + $0x318] sm:$0xff]
    %v1987 = vld [vmem:[#allocation6 + $0x320] sm:$0xff]
    %v1988 = vld [vmem:[#allocation6 + $0x328] sm:$0xff]
    %v1989 = vld [vmem:[#allocation6 + $0x330] sm:$0xff]
    %v1990 = vld [vmem:[#allocation6 + $0x338] sm:$0xff]
    %v1991 = vld [vmem:[#allocation6 + $0x340] sm:$0xff]
    %v1992 = vld [vmem:[#allocation6 + $0x348] sm:$0xff]
    %v1993 = vld [vmem:[#allocation6 + $0x350] sm:$0xff]
    %v1994 = vld [vmem:[#allocation6 + $0x358] sm:$0xff]
    %v1995 = vld [vmem:[#allocation6 + $0x360] sm:$0xff]
    %v1996 = vld [vmem:[#allocation6 + $0x368] sm:$0xff]
    %v1997 = vld [vmem:[#allocation6 + $0x370] sm:$0xff]
    %v1998 = vld [vmem:[#allocation6 + $0x378] sm:$0xff]
    %v1999 = vld [vmem:[#allocation6 + $0x380] sm:$0xff]
    %v2000 = vld [vmem:[#allocation6 + $0x388] sm:$0xff]
    %v2001 = vld [vmem:[#allocation6 + $0x390] sm:$0xff]
    %v2002 = vld [vmem:[#allocation6 + $0x398] sm:$0xff]
    %v2003 = vld [vmem:[#allocation6 + $0x3a0] sm:$0xff]
    %v2004 = vld [vmem:[#allocation6 + $0x3a8] sm:$0xff]
    %v2005 = vld [vmem:[#allocation6 + $0x3b0] sm:$0xff]
    %v2006 = vld [vmem:[#allocation6 + $0x3b8] sm:$0xff]
    %v2007 = vld [vmem:[#allocation6 + $0x3c0] sm:$0xff]
    %v2008 = vld [vmem:[#allocation6 + $0x3c8] sm:$0xff]
    %v2009 = vld [vmem:[#allocation6 + $0x3d0] sm:$0xff]
    %v2010 = vld [vmem:[#allocation6 + $0x3d8] sm:$0xff]
    %v2011 = vld [vmem:[#allocation6 + $0x3e0] sm:$0xff]
    %v2012 = vld [vmem:[#allocation6 + $0x3e8] sm:$0xff]
    %v2013 = vld [vmem:[#allocation6 + $0x3f0] sm:$0xff]
    %v2014 = vld [vmem:[#allocation6 + $0x3f8] sm:$0xff]
    %2015 = vmatprep.subr.mxu0 %v1888
    %2016 = vmatpush1.msra.mxu0 %v1887
    %2017 = vmatprep.subr.mxu0 %v1892
    %2018 = vmatpush1.msra.mxu0 %v1891
    %2019 = vmatprep.subr.mxu0 %v1896
    %2020 = vmatpush1.msra.mxu0 %v1895
    %2021 = vmatprep.subr.mxu0 %v1900
    %2022 = vmatpush1.msra.mxu0 %v1899
    %2023 = vmatprep.subr.mxu0 %v1904
    %2024 = vmatpush1.msra.mxu0 %v1903
    %2025 = vmatprep.subr.mxu0 %v1908
    %2026 = vmatpush1.msra.mxu0 %v1907
    %2027 = vmatprep.subr.mxu0 %v1912
    %2028 = vmatpush1.msra.mxu0 %v1911
    %2029 = vmatprep.subr.mxu0 %v1916
    %2030 = vmatpush1.msra.mxu0 %v1915
    %2031 = vmatprep.subr.mxu0 %v1920
    %2032 = vmatpush1.msra.mxu0 %v1919
    %2033 = vmatprep.subr.mxu0 %v1924
    %2034 = vmatpush1.msra.mxu0 %v1923
    %2035 = vmatprep.subr.mxu0 %v1928
    %2036 = vmatpush1.msra.mxu0 %v1927
    %2037 = vmatprep.subr.mxu0 %v1932
    %2038 = vmatpush1.msra.mxu0 %v1931
    %2039 = vmatprep.subr.mxu0 %v1936
    %2040 = vmatpush1.msra.mxu0 %v1935
    %2041 = vmatprep.subr.mxu0 %v1940
    %2042 = vmatpush1.msra.mxu0 %v1939
    %2043 = vmatprep.subr.mxu0 %v1944
    %2044 = vmatpush1.msra.mxu0 %v1943
    %2045 = vmatprep.subr.mxu0 %v1948
    %2046 = vmatpush1.msra.mxu0 %v1947
    %2047 = vmatprep.subr.mxu0 %v1952
    %2048 = vmatpush1.msra.mxu0 %v1951
    %2049 = vmatprep.subr.mxu0 %v1956
    %2050 = vmatpush1.msra.mxu0 %v1955
    %2051 = vmatprep.subr.mxu0 %v1960
    %2052 = vmatpush1.msra.mxu0 %v1959
    %2053 = vmatprep.subr.mxu0 %v1964
    %2054 = vmatpush1.msra.mxu0 %v1963
    %2055 = vmatprep.subr.mxu0 %v1968
    %2056 = vmatpush1.msra.mxu0 %v1967
    %2057 = vmatprep.subr.mxu0 %v1972
    %2058 = vmatpush1.msra.mxu0 %v1971
    %2059 = vmatprep.subr.mxu0 %v1976
    %2060 = vmatpush1.msra.mxu0 %v1975
    %2061 = vmatprep.subr.mxu0 %v1980
    %2062 = vmatpush1.msra.mxu0 %v1979
    %2063 = vmatprep.subr.mxu0 %v1984
    %2064 = vmatpush1.msra.mxu0 %v1983
    %2065 = vmatprep.subr.mxu0 %v1988
    %2066 = vmatpush1.msra.mxu0 %v1987
    %2067 = vmatprep.subr.mxu0 %v1992
    %2068 = vmatpush1.msra.mxu0 %v1991
    %2069 = vmatprep.subr.mxu0 %v1996
    %2070 = vmatpush1.msra.mxu0 %v1995
    %2071 = vmatprep.subr.mxu0 %v2000
    %2072 = vmatpush1.msra.mxu0 %v1999
    %2073 = vmatprep.subr.mxu0 %v2004
    %2074 = vmatpush1.msra.mxu0 %v2003
    %2075 = vmatprep.subr.mxu0 %v2008
    %2076 = vmatpush1.msra.mxu0 %v2007
    %2077 = vmatprep.subr.mxu0 %v2012
    %2078 = vmatpush1.msra.mxu0 %v2011
    %2079 = vmatprep.mubr.f32.mxu0 %v525
    %2080 = vmatmul.mubr.f32.gmra.mrb[0].mxu0 %v523
    %v2081 = vpop.f32.mrb[0].mxu0
    %v2082 = vadd.f32 0.0, %v2081
    %v2083 = vpop.f32.mrb[0].mxu0
    %v2084 = vadd.f32 0.0, %v2083
    %2085 = vdwg.mxu0
    %2086 = vmatprep.subr.mxu0 %v1890
    %2087 = vmatpush1.msra.mxu0 %v1889
    %2088 = vmatprep.subr.mxu0 %v1894
    %2089 = vmatpush1.msra.mxu0 %v1893
    %2090 = vmatprep.subr.mxu0 %v1898
    %2091 = vmatpush1.msra.mxu0 %v1897
    %2092 = vmatprep.subr.mxu0 %v1902
    %2093 = vmatpush1.msra.mxu0 %v1901
    %2094 = vmatprep.subr.mxu0 %v1906
    %2095 = vmatpush1.msra.mxu0 %v1905
    %2096 = vmatprep.subr.mxu0 %v1910
    %2097 = vmatpush1.msra.mxu0 %v1909
    %2098 = vmatprep.subr.mxu0 %v1914
    %2099 = vmatpush1.msra.mxu0 %v1913
    %2100 = vmatprep.subr.mxu0 %v1918
    %2101 = vmatpush1.msra.mxu0 %v1917
    %2102 = vmatprep.subr.mxu0 %v1922
    %2103 = vmatpush1.msra.mxu0 %v1921
    %2104 = vmatprep.subr.mxu0 %v1926
    %2105 = vmatpush1.msra.mxu0 %v1925
    %2106 = vmatprep.subr.mxu0 %v1930
    %2107 = vmatpush1.msra.mxu0 %v1929
    %2108 = vmatprep.subr.mxu0 %v1934
    %2109 = vmatpush1.msra.mxu0 %v1933
    %2110 = vmatprep.subr.mxu0 %v1938
    %2111 = vmatpush1.msra.mxu0 %v1937
    %2112 = vmatprep.subr.mxu0 %v1942
    %2113 = vmatpush1.msra.mxu0 %v1941
    %2114 = vmatprep.subr.mxu0 %v1946
    %2115 = vmatpush1.msra.mxu0 %v1945
    %2116 = vmatprep.subr.mxu0 %v1950
    %2117 = vmatpush1.msra.mxu0 %v1949
    %2118 = vmatprep.subr.mxu0 %v1954
    %2119 = vmatpush1.msra.mxu0 %v1953
    %2120 = vmatprep.subr.mxu0 %v1958
    %2121 = vmatpush1.msra.mxu0 %v1957
    %2122 = vmatprep.subr.mxu0 %v1962
    %2123 = vmatpush1.msra.mxu0 %v1961
    %2124 = vmatprep.subr.mxu0 %v1966
    %2125 = vmatpush1.msra.mxu0 %v1965
    %2126 = vmatprep.subr.mxu0 %v1970
    %2127 = vmatpush1.msra.mxu0 %v1969
    %2128 = vmatprep.subr.mxu0 %v1974
    %2129 = vmatpush1.msra.mxu0 %v1973
    %2130 = vmatprep.subr.mxu0 %v1978
    %2131 = vmatpush1.msra.mxu0 %v1977
    %2132 = vmatprep.subr.mxu0 %v1982
    %2133 = vmatpush1.msra.mxu0 %v1981
    %2134 = vmatprep.subr.mxu0 %v1986
    %2135 = vmatpush1.msra.mxu0 %v1985
    %2136 = vmatprep.subr.mxu0 %v1990
    %2137 = vmatpush1.msra.mxu0 %v1989
    %2138 = vmatprep.subr.mxu0 %v1994
    %2139 = vmatpush1.msra.mxu0 %v1993
    %2140 = vmatprep.subr.mxu0 %v1998
    %2141 = vmatpush1.msra.mxu0 %v1997
    %2142 = vmatprep.subr.mxu0 %v2002
    %2143 = vmatpush1.msra.mxu0 %v2001
    %2144 = vmatprep.subr.mxu0 %v2006
    %2145 = vmatpush1.msra.mxu0 %v2005
    %2146 = vmatprep.subr.mxu0 %v2010
    %2147 = vmatpush1.msra.mxu0 %v2009
    %2148 = vmatprep.subr.mxu0 %v2014
    %2149 = vmatpush1.msra.mxu0 %v2013
    %2150 = vmatprep.mubr.f32.mxu0 %v525
    %2151 = vmatmul.mubr.f32.gmra.mrb[0].mxu0 %v523
    %v2152 = vpop.f32.mrb[0].mxu0
    %v2153 = vadd.f32 0.0, %v2152
    %v2154 = vpop.f32.mrb[0].mxu0
    %v2155 = vadd.f32 0.0, %v2154
    %2156 = vdwg.mxu0
    %v2157 = vld [vmem:[#allocation7] sm:$0xff]
    %v2158 = vld [vmem:[#allocation7 + $0x8] sm:$0xff]
    %v2159 = vld [vmem:[#allocation7 + $0x10] sm:$0xff]
    %v2160 = vld [vmem:[#allocation7 + $0x18] sm:$0xff]
    %v2161 = vld [vmem:[#allocation7 + $0x20] sm:$0xff]
    %v2162 = vld [vmem:[#allocation7 + $0x28] sm:$0xff]
    %v2163 = vld [vmem:[#allocation7 + $0x30] sm:$0xff]
    %v2164 = vld [vmem:[#allocation7 + $0x38] sm:$0xff]
    %v2165 = vld [vmem:[#allocation7 + $0x40] sm:$0xff]
    %v2166 = vld [vmem:[#allocation7 + $0x48] sm:$0xff]
    %v2167 = vld [vmem:[#allocation7 + $0x50] sm:$0xff]
    %v2168 = vld [vmem:[#allocation7 + $0x58] sm:$0xff]
    %v2169 = vld [vmem:[#allocation7 + $0x60] sm:$0xff]
    %v2170 = vld [vmem:[#allocation7 + $0x68] sm:$0xff]
    %v2171 = vld [vmem:[#allocation7 + $0x70] sm:$0xff]
    %v2172 = vld [vmem:[#allocation7 + $0x78] sm:$0xff]
    %v2173 = vld [vmem:[#allocation7 + $0x80] sm:$0xff]
    %v2174 = vld [vmem:[#allocation7 + $0x88] sm:$0xff]
    %v2175 = vld [vmem:[#allocation7 + $0x90] sm:$0xff]
    %v2176 = vld [vmem:[#allocation7 + $0x98] sm:$0xff]
    %v2177 = vld [vmem:[#allocation7 + $0xa0] sm:$0xff]
    %v2178 = vld [vmem:[#allocation7 + $0xa8] sm:$0xff]
    %v2179 = vld [vmem:[#allocation7 + $0xb0] sm:$0xff]
    %v2180 = vld [vmem:[#allocation7 + $0xb8] sm:$0xff]
    %v2181 = vld [vmem:[#allocation7 + $0xc0] sm:$0xff]
    %v2182 = vld [vmem:[#allocation7 + $0xc8] sm:$0xff]
    %v2183 = vld [vmem:[#allocation7 + $0xd0] sm:$0xff]
    %v2184 = vld [vmem:[#allocation7 + $0xd8] sm:$0xff]
    %v2185 = vld [vmem:[#allocation7 + $0xe0] sm:$0xff]
    %v2186 = vld [vmem:[#allocation7 + $0xe8] sm:$0xff]
    %v2187 = vld [vmem:[#allocation7 + $0xf0] sm:$0xff]
    %v2188 = vld [vmem:[#allocation7 + $0xf8] sm:$0xff]
    %v2189 = vld [vmem:[#allocation7 + $0x100] sm:$0xff]
    %v2190 = vld [vmem:[#allocation7 + $0x108] sm:$0xff]
    %v2191 = vld [vmem:[#allocation7 + $0x110] sm:$0xff]
    %v2192 = vld [vmem:[#allocation7 + $0x118] sm:$0xff]
    %v2193 = vld [vmem:[#allocation7 + $0x120] sm:$0xff]
    %v2194 = vld [vmem:[#allocation7 + $0x128] sm:$0xff]
    %v2195 = vld [vmem:[#allocation7 + $0x130] sm:$0xff]
    %v2196 = vld [vmem:[#allocation7 + $0x138] sm:$0xff]
    %v2197 = vld [vmem:[#allocation7 + $0x140] sm:$0xff]
    %v2198 = vld [vmem:[#allocation7 + $0x148] sm:$0xff]
    %v2199 = vld [vmem:[#allocation7 + $0x150] sm:$0xff]
    %v2200 = vld [vmem:[#allocation7 + $0x158] sm:$0xff]
    %v2201 = vld [vmem:[#allocation7 + $0x160] sm:$0xff]
    %v2202 = vld [vmem:[#allocation7 + $0x168] sm:$0xff]
    %v2203 = vld [vmem:[#allocation7 + $0x170] sm:$0xff]
    %v2204 = vld [vmem:[#allocation7 + $0x178] sm:$0xff]
    %v2205 = vld [vmem:[#allocation7 + $0x180] sm:$0xff]
    %v2206 = vld [vmem:[#allocation7 + $0x188] sm:$0xff]
    %v2207 = vld [vmem:[#allocation7 + $0x190] sm:$0xff]
    %v2208 = vld [vmem:[#allocation7 + $0x198] sm:$0xff]
    %v2209 = vld [vmem:[#allocation7 + $0x1a0] sm:$0xff]
    %v2210 = vld [vmem:[#allocation7 + $0x1a8] sm:$0xff]
    %v2211 = vld [vmem:[#allocation7 + $0x1b0] sm:$0xff]
    %v2212 = vld [vmem:[#allocation7 + $0x1b8] sm:$0xff]
    %v2213 = vld [vmem:[#allocation7 + $0x1c0] sm:$0xff]
    %v2214 = vld [vmem:[#allocation7 + $0x1c8] sm:$0xff]
    %v2215 = vld [vmem:[#allocation7 + $0x1d0] sm:$0xff]
    %v2216 = vld [vmem:[#allocation7 + $0x1d8] sm:$0xff]
    %v2217 = vld [vmem:[#allocation7 + $0x1e0] sm:$0xff]
    %v2218 = vld [vmem:[#allocation7 + $0x1e8] sm:$0xff]
    %v2219 = vld [vmem:[#allocation7 + $0x1f0] sm:$0xff]
    %v2220 = vld [vmem:[#allocation7 + $0x1f8] sm:$0xff]
    %v2221 = vld [vmem:[#allocation7 + $0x200] sm:$0xff]
    %v2222 = vld [vmem:[#allocation7 + $0x208] sm:$0xff]
    %v2223 = vld [vmem:[#allocation7 + $0x210] sm:$0xff]
    %v2224 = vld [vmem:[#allocation7 + $0x218] sm:$0xff]
    %v2225 = vld [vmem:[#allocation7 + $0x220] sm:$0xff]
    %v2226 = vld [vmem:[#allocation7 + $0x228] sm:$0xff]
    %v2227 = vld [vmem:[#allocation7 + $0x230] sm:$0xff]
    %v2228 = vld [vmem:[#allocation7 + $0x238] sm:$0xff]
    %v2229 = vld [vmem:[#allocation7 + $0x240] sm:$0xff]
    %v2230 = vld [vmem:[#allocation7 + $0x248] sm:$0xff]
    %v2231 = vld [vmem:[#allocation7 + $0x250] sm:$0xff]
    %v2232 = vld [vmem:[#allocation7 + $0x258] sm:$0xff]
    %v2233 = vld [vmem:[#allocation7 + $0x260] sm:$0xff]
    %v2234 = vld [vmem:[#allocation7 + $0x268] sm:$0xff]
    %v2235 = vld [vmem:[#allocation7 + $0x270] sm:$0xff]
    %v2236 = vld [vmem:[#allocation7 + $0x278] sm:$0xff]
    %v2237 = vld [vmem:[#allocation7 + $0x280] sm:$0xff]
    %v2238 = vld [vmem:[#allocation7 + $0x288] sm:$0xff]
    %v2239 = vld [vmem:[#allocation7 + $0x290] sm:$0xff]
    %v2240 = vld [vmem:[#allocation7 + $0x298] sm:$0xff]
    %v2241 = vld [vmem:[#allocation7 + $0x2a0] sm:$0xff]
    %v2242 = vld [vmem:[#allocation7 + $0x2a8] sm:$0xff]
    %v2243 = vld [vmem:[#allocation7 + $0x2b0] sm:$0xff]
    %v2244 = vld [vmem:[#allocation7 + $0x2b8] sm:$0xff]
    %v2245 = vld [vmem:[#allocation7 + $0x2c0] sm:$0xff]
    %v2246 = vld [vmem:[#allocation7 + $0x2c8] sm:$0xff]
    %v2247 = vld [vmem:[#allocation7 + $0x2d0] sm:$0xff]
    %v2248 = vld [vmem:[#allocation7 + $0x2d8] sm:$0xff]
    %v2249 = vld [vmem:[#allocation7 + $0x2e0] sm:$0xff]
    %v2250 = vld [vmem:[#allocation7 + $0x2e8] sm:$0xff]
    %v2251 = vld [vmem:[#allocation7 + $0x2f0] sm:$0xff]
    %v2252 = vld [vmem:[#allocation7 + $0x2f8] sm:$0xff]
    %v2253 = vld [vmem:[#allocation7 + $0x300] sm:$0xff]
    %v2254 = vld [vmem:[#allocation7 + $0x308] sm:$0xff]
    %v2255 = vld [vmem:[#allocation7 + $0x310] sm:$0xff]
    %v2256 = vld [vmem:[#allocation7 + $0x318] sm:$0xff]
    %v2257 = vld [vmem:[#allocation7 + $0x320] sm:$0xff]
    %v2258 = vld [vmem:[#allocation7 + $0x328] sm:$0xff]
    %v2259 = vld [vmem:[#allocation7 + $0x330] sm:$0xff]
    %v2260 = vld [vmem:[#allocation7 + $0x338] sm:$0xff]
    %v2261 = vld [vmem:[#allocation7 + $0x340] sm:$0xff]
    %v2262 = vld [vmem:[#allocation7 + $0x348] sm:$0xff]
    %v2263 = vld [vmem:[#allocation7 + $0x350] sm:$0xff]
    %v2264 = vld [vmem:[#allocation7 + $0x358] sm:$0xff]
    %v2265 = vld [vmem:[#allocation7 + $0x360] sm:$0xff]
    %v2266 = vld [vmem:[#allocation7 + $0x368] sm:$0xff]
    %v2267 = vld [vmem:[#allocation7 + $0x370] sm:$0xff]
    %v2268 = vld [vmem:[#allocation7 + $0x378] sm:$0xff]
    %v2269 = vld [vmem:[#allocation7 + $0x380] sm:$0xff]
    %v2270 = vld [vmem:[#allocation7 + $0x388] sm:$0xff]
    %v2271 = vld [vmem:[#allocation7 + $0x390] sm:$0xff]
    %v2272 = vld [vmem:[#allocation7 + $0x398] sm:$0xff]
    %v2273 = vld [vmem:[#allocation7 + $0x3a0] sm:$0xff]
    %v2274 = vld [vmem:[#allocation7 + $0x3a8] sm:$0xff]
    %v2275 = vld [vmem:[#allocation7 + $0x3b0] sm:$0xff]
    %v2276 = vld [vmem:[#allocation7 + $0x3b8] sm:$0xff]
    %v2277 = vld [vmem:[#allocation7 + $0x3c0] sm:$0xff]
    %v2278 = vld [vmem:[#allocation7 + $0x3c8] sm:$0xff]
    %v2279 = vld [vmem:[#allocation7 + $0x3d0] sm:$0xff]
    %v2280 = vld [vmem:[#allocation7 + $0x3d8] sm:$0xff]
    %v2281 = vld [vmem:[#allocation7 + $0x3e0] sm:$0xff]
    %v2282 = vld [vmem:[#allocation7 + $0x3e8] sm:$0xff]
    %v2283 = vld [vmem:[#allocation7 + $0x3f0] sm:$0xff]
    %v2284 = vld [vmem:[#allocation7 + $0x3f8] sm:$0xff]
    %v2285 = vld [vmem:[#allocation7 + $0x400] sm:$0xff]
    %v2286 = vld [vmem:[#allocation7 + $0x408] sm:$0xff]
    %v2287 = vld [vmem:[#allocation7 + $0x410] sm:$0xff]
    %v2288 = vld [vmem:[#allocation7 + $0x418] sm:$0xff]
    %v2289 = vld [vmem:[#allocation7 + $0x420] sm:$0xff]
    %v2290 = vld [vmem:[#allocation7 + $0x428] sm:$0xff]
    %v2291 = vld [vmem:[#allocation7 + $0x430] sm:$0xff]
    %v2292 = vld [vmem:[#allocation7 + $0x438] sm:$0xff]
    %v2293 = vld [vmem:[#allocation7 + $0x440] sm:$0xff]
    %v2294 = vld [vmem:[#allocation7 + $0x448] sm:$0xff]
    %v2295 = vld [vmem:[#allocation7 + $0x450] sm:$0xff]
    %v2296 = vld [vmem:[#allocation7 + $0x458] sm:$0xff]
    %v2297 = vld [vmem:[#allocation7 + $0x460] sm:$0xff]
    %v2298 = vld [vmem:[#allocation7 + $0x468] sm:$0xff]
    %v2299 = vld [vmem:[#allocation7 + $0x470] sm:$0xff]
    %v2300 = vld [vmem:[#allocation7 + $0x478] sm:$0xff]
    %v2301 = vld [vmem:[#allocation7 + $0x480] sm:$0xff]
    %v2302 = vld [vmem:[#allocation7 + $0x488] sm:$0xff]
    %v2303 = vld [vmem:[#allocation7 + $0x490] sm:$0xff]
    %v2304 = vld [vmem:[#allocation7 + $0x498] sm:$0xff]
    %v2305 = vld [vmem:[#allocation7 + $0x4a0] sm:$0xff]
    %v2306 = vld [vmem:[#allocation7 + $0x4a8] sm:$0xff]
    %v2307 = vld [vmem:[#allocation7 + $0x4b0] sm:$0xff]
    %v2308 = vld [vmem:[#allocation7 + $0x4b8] sm:$0xff]
    %v2309 = vld [vmem:[#allocation7 + $0x4c0] sm:$0xff]
    %v2310 = vld [vmem:[#allocation7 + $0x4c8] sm:$0xff]
    %v2311 = vld [vmem:[#allocation7 + $0x4d0] sm:$0xff]
    %v2312 = vld [vmem:[#allocation7 + $0x4d8] sm:$0xff]
    %v2313 = vld [vmem:[#allocation7 + $0x4e0] sm:$0xff]
    %v2314 = vld [vmem:[#allocation7 + $0x4e8] sm:$0xff]
    %v2315 = vld [vmem:[#allocation7 + $0x4f0] sm:$0xff]
    %v2316 = vld [vmem:[#allocation7 + $0x4f8] sm:$0xff]
    %v2317 = vld [vmem:[#allocation7 + $0x500] sm:$0xff]
    %v2318 = vld [vmem:[#allocation7 + $0x508] sm:$0xff]
    %v2319 = vld [vmem:[#allocation7 + $0x510] sm:$0xff]
    %v2320 = vld [vmem:[#allocation7 + $0x518] sm:$0xff]
    %v2321 = vld [vmem:[#allocation7 + $0x520] sm:$0xff]
    %v2322 = vld [vmem:[#allocation7 + $0x528] sm:$0xff]
    %v2323 = vld [vmem:[#allocation7 + $0x530] sm:$0xff]
    %v2324 = vld [vmem:[#allocation7 + $0x538] sm:$0xff]
    %v2325 = vld [vmem:[#allocation7 + $0x540] sm:$0xff]
    %v2326 = vld [vmem:[#allocation7 + $0x548] sm:$0xff]
    %v2327 = vld [vmem:[#allocation7 + $0x550] sm:$0xff]
    %v2328 = vld [vmem:[#allocation7 + $0x558] sm:$0xff]
    %v2329 = vld [vmem:[#allocation7 + $0x560] sm:$0xff]
    %v2330 = vld [vmem:[#allocation7 + $0x568] sm:$0xff]
    %v2331 = vld [vmem:[#allocation7 + $0x570] sm:$0xff]
    %v2332 = vld [vmem:[#allocation7 + $0x578] sm:$0xff]
    %v2333 = vld [vmem:[#allocation7 + $0x580] sm:$0xff]
    %v2334 = vld [vmem:[#allocation7 + $0x588] sm:$0xff]
    %v2335 = vld [vmem:[#allocation7 + $0x590] sm:$0xff]
    %v2336 = vld [vmem:[#allocation7 + $0x598] sm:$0xff]
    %v2337 = vld [vmem:[#allocation7 + $0x5a0] sm:$0xff]
    %v2338 = vld [vmem:[#allocation7 + $0x5a8] sm:$0xff]
    %v2339 = vld [vmem:[#allocation7 + $0x5b0] sm:$0xff]
    %v2340 = vld [vmem:[#allocation7 + $0x5b8] sm:$0xff]
    %v2341 = vld [vmem:[#allocation7 + $0x5c0] sm:$0xff]
    %v2342 = vld [vmem:[#allocation7 + $0x5c8] sm:$0xff]
    %v2343 = vld [vmem:[#allocation7 + $0x5d0] sm:$0xff]
    %v2344 = vld [vmem:[#allocation7 + $0x5d8] sm:$0xff]
    %v2345 = vld [vmem:[#allocation7 + $0x5e0] sm:$0xff]
    %v2346 = vld [vmem:[#allocation7 + $0x5e8] sm:$0xff]
    %v2347 = vld [vmem:[#allocation7 + $0x5f0] sm:$0xff]
    %v2348 = vld [vmem:[#allocation7 + $0x5f8] sm:$0xff]
    %v2349 = vld [vmem:[#allocation7 + $0x600] sm:$0xff]
    %v2350 = vld [vmem:[#allocation7 + $0x608] sm:$0xff]
    %v2351 = vld [vmem:[#allocation7 + $0x610] sm:$0xff]
    %v2352 = vld [vmem:[#allocation7 + $0x618] sm:$0xff]
    %v2353 = vld [vmem:[#allocation7 + $0x620] sm:$0xff]
    %v2354 = vld [vmem:[#allocation7 + $0x628] sm:$0xff]
    %v2355 = vld [vmem:[#allocation7 + $0x630] sm:$0xff]
    %v2356 = vld [vmem:[#allocation7 + $0x638] sm:$0xff]
    %v2357 = vld [vmem:[#allocation7 + $0x640] sm:$0xff]
    %v2358 = vld [vmem:[#allocation7 + $0x648] sm:$0xff]
    %v2359 = vld [vmem:[#allocation7 + $0x650] sm:$0xff]
    %v2360 = vld [vmem:[#allocation7 + $0x658] sm:$0xff]
    %v2361 = vld [vmem:[#allocation7 + $0x660] sm:$0xff]
    %v2362 = vld [vmem:[#allocation7 + $0x668] sm:$0xff]
    %v2363 = vld [vmem:[#allocation7 + $0x670] sm:$0xff]
    %v2364 = vld [vmem:[#allocation7 + $0x678] sm:$0xff]
    %v2365 = vld [vmem:[#allocation7 + $0x680] sm:$0xff]
    %v2366 = vld [vmem:[#allocation7 + $0x688] sm:$0xff]
    %v2367 = vld [vmem:[#allocation7 + $0x690] sm:$0xff]
    %v2368 = vld [vmem:[#allocation7 + $0x698] sm:$0xff]
    %v2369 = vld [vmem:[#allocation7 + $0x6a0] sm:$0xff]
    %v2370 = vld [vmem:[#allocation7 + $0x6a8] sm:$0xff]
    %v2371 = vld [vmem:[#allocation7 + $0x6b0] sm:$0xff]
    %v2372 = vld [vmem:[#allocation7 + $0x6b8] sm:$0xff]
    %v2373 = vld [vmem:[#allocation7 + $0x6c0] sm:$0xff]
    %v2374 = vld [vmem:[#allocation7 + $0x6c8] sm:$0xff]
    %v2375 = vld [vmem:[#allocation7 + $0x6d0] sm:$0xff]
    %v2376 = vld [vmem:[#allocation7 + $0x6d8] sm:$0xff]
    %v2377 = vld [vmem:[#allocation7 + $0x6e0] sm:$0xff]
    %v2378 = vld [vmem:[#allocation7 + $0x6e8] sm:$0xff]
    %v2379 = vld [vmem:[#allocation7 + $0x6f0] sm:$0xff]
    %v2380 = vld [vmem:[#allocation7 + $0x6f8] sm:$0xff]
    %v2381 = vld [vmem:[#allocation7 + $0x700] sm:$0xff]
    %v2382 = vld [vmem:[#allocation7 + $0x708] sm:$0xff]
    %v2383 = vld [vmem:[#allocation7 + $0x710] sm:$0xff]
    %v2384 = vld [vmem:[#allocation7 + $0x718] sm:$0xff]
    %v2385 = vld [vmem:[#allocation7 + $0x720] sm:$0xff]
    %v2386 = vld [vmem:[#allocation7 + $0x728] sm:$0xff]
    %v2387 = vld [vmem:[#allocation7 + $0x730] sm:$0xff]
    %v2388 = vld [vmem:[#allocation7 + $0x738] sm:$0xff]
    %v2389 = vld [vmem:[#allocation7 + $0x740] sm:$0xff]
    %v2390 = vld [vmem:[#allocation7 + $0x748] sm:$0xff]
    %v2391 = vld [vmem:[#allocation7 + $0x750] sm:$0xff]
    %v2392 = vld [vmem:[#allocation7 + $0x758] sm:$0xff]
    %v2393 = vld [vmem:[#allocation7 + $0x760] sm:$0xff]
    %v2394 = vld [vmem:[#allocation7 + $0x768] sm:$0xff]
    %v2395 = vld [vmem:[#allocation7 + $0x770] sm:$0xff]
    %v2396 = vld [vmem:[#allocation7 + $0x778] sm:$0xff]
    %v2397 = vld [vmem:[#allocation7 + $0x780] sm:$0xff]
    %v2398 = vld [vmem:[#allocation7 + $0x788] sm:$0xff]
    %v2399 = vld [vmem:[#allocation7 + $0x790] sm:$0xff]
    %v2400 = vld [vmem:[#allocation7 + $0x798] sm:$0xff]
    %v2401 = vld [vmem:[#allocation7 + $0x7a0] sm:$0xff]
    %v2402 = vld [vmem:[#allocation7 + $0x7a8] sm:$0xff]
    %v2403 = vld [vmem:[#allocation7 + $0x7b0] sm:$0xff]
    %v2404 = vld [vmem:[#allocation7 + $0x7b8] sm:$0xff]
    %v2405 = vld [vmem:[#allocation7 + $0x7c0] sm:$0xff]
    %v2406 = vld [vmem:[#allocation7 + $0x7c8] sm:$0xff]
    %v2407 = vld [vmem:[#allocation7 + $0x7d0] sm:$0xff]
    %v2408 = vld [vmem:[#allocation7 + $0x7d8] sm:$0xff]
    %v2409 = vld [vmem:[#allocation7 + $0x7e0] sm:$0xff]
    %v2410 = vld [vmem:[#allocation7 + $0x7e8] sm:$0xff]
    %v2411 = vld [vmem:[#allocation7 + $0x7f0] sm:$0xff]
    %v2412 = vld [vmem:[#allocation7 + $0x7f8] sm:$0xff]
    %v2413 = vld [vmem:[#allocation7 + $0x800] sm:$0xff]
    %v2414 = vld [vmem:[#allocation7 + $0x808] sm:$0xff]
    %v2415 = vld [vmem:[#allocation7 + $0x810] sm:$0xff]
    %v2416 = vld [vmem:[#allocation7 + $0x818] sm:$0xff]
    %v2417 = vld [vmem:[#allocation7 + $0x820] sm:$0xff]
    %v2418 = vld [vmem:[#allocation7 + $0x828] sm:$0xff]
    %v2419 = vld [vmem:[#allocation7 + $0x830] sm:$0xff]
    %v2420 = vld [vmem:[#allocation7 + $0x838] sm:$0xff]
    %v2421 = vld [vmem:[#allocation7 + $0x840] sm:$0xff]
    %v2422 = vld [vmem:[#allocation7 + $0x848] sm:$0xff]
    %v2423 = vld [vmem:[#allocation7 + $0x850] sm:$0xff]
    %v2424 = vld [vmem:[#allocation7 + $0x858] sm:$0xff]
    %v2425 = vld [vmem:[#allocation7 + $0x860] sm:$0xff]
    %v2426 = vld [vmem:[#allocation7 + $0x868] sm:$0xff]
    %v2427 = vld [vmem:[#allocation7 + $0x870] sm:$0xff]
    %v2428 = vld [vmem:[#allocation7 + $0x878] sm:$0xff]
    %v2429 = vld [vmem:[#allocation7 + $0x880] sm:$0xff]
    %v2430 = vld [vmem:[#allocation7 + $0x888] sm:$0xff]
    %v2431 = vld [vmem:[#allocation7 + $0x890] sm:$0xff]
    %v2432 = vld [vmem:[#allocation7 + $0x898] sm:$0xff]
    %v2433 = vld [vmem:[#allocation7 + $0x8a0] sm:$0xff]
    %v2434 = vld [vmem:[#allocation7 + $0x8a8] sm:$0xff]
    %v2435 = vld [vmem:[#allocation7 + $0x8b0] sm:$0xff]
    %v2436 = vld [vmem:[#allocation7 + $0x8b8] sm:$0xff]
    %v2437 = vld [vmem:[#allocation7 + $0x8c0] sm:$0xff]
    %v2438 = vld [vmem:[#allocation7 + $0x8c8] sm:$0xff]
    %v2439 = vld [vmem:[#allocation7 + $0x8d0] sm:$0xff]
    %v2440 = vld [vmem:[#allocation7 + $0x8d8] sm:$0xff]
    %v2441 = vld [vmem:[#allocation7 + $0x8e0] sm:$0xff]
    %v2442 = vld [vmem:[#allocation7 + $0x8e8] sm:$0xff]
    %v2443 = vld [vmem:[#allocation7 + $0x8f0] sm:$0xff]
    %v2444 = vld [vmem:[#allocation7 + $0x8f8] sm:$0xff]
    %v2445 = vld [vmem:[#allocation7 + $0x900] sm:$0xff]
    %v2446 = vld [vmem:[#allocation7 + $0x908] sm:$0xff]
    %v2447 = vld [vmem:[#allocation7 + $0x910] sm:$0xff]
    %v2448 = vld [vmem:[#allocation7 + $0x918] sm:$0xff]
    %v2449 = vld [vmem:[#allocation7 + $0x920] sm:$0xff]
    %v2450 = vld [vmem:[#allocation7 + $0x928] sm:$0xff]
    %v2451 = vld [vmem:[#allocation7 + $0x930] sm:$0xff]
    %v2452 = vld [vmem:[#allocation7 + $0x938] sm:$0xff]
    %v2453 = vld [vmem:[#allocation7 + $0x940] sm:$0xff]
    %v2454 = vld [vmem:[#allocation7 + $0x948] sm:$0xff]
    %v2455 = vld [vmem:[#allocation7 + $0x950] sm:$0xff]
    %v2456 = vld [vmem:[#allocation7 + $0x958] sm:$0xff]
    %v2457 = vld [vmem:[#allocation7 + $0x960] sm:$0xff]
    %v2458 = vld [vmem:[#allocation7 + $0x968] sm:$0xff]
    %v2459 = vld [vmem:[#allocation7 + $0x970] sm:$0xff]
    %v2460 = vld [vmem:[#allocation7 + $0x978] sm:$0xff]
    %v2461 = vld [vmem:[#allocation7 + $0x980] sm:$0xff]
    %v2462 = vld [vmem:[#allocation7 + $0x988] sm:$0xff]
    %v2463 = vld [vmem:[#allocation7 + $0x990] sm:$0xff]
    %v2464 = vld [vmem:[#allocation7 + $0x998] sm:$0xff]
    %v2465 = vld [vmem:[#allocation7 + $0x9a0] sm:$0xff]
    %v2466 = vld [vmem:[#allocation7 + $0x9a8] sm:$0xff]
    %v2467 = vld [vmem:[#allocation7 + $0x9b0] sm:$0xff]
    %v2468 = vld [vmem:[#allocation7 + $0x9b8] sm:$0xff]
    %v2469 = vld [vmem:[#allocation7 + $0x9c0] sm:$0xff]
    %v2470 = vld [vmem:[#allocation7 + $0x9c8] sm:$0xff]
    %v2471 = vld [vmem:[#allocation7 + $0x9d0] sm:$0xff]
    %v2472 = vld [vmem:[#allocation7 + $0x9d8] sm:$0xff]
    %v2473 = vld [vmem:[#allocation7 + $0x9e0] sm:$0xff]
    %v2474 = vld [vmem:[#allocation7 + $0x9e8] sm:$0xff]
    %v2475 = vld [vmem:[#allocation7 + $0x9f0] sm:$0xff]
    %v2476 = vld [vmem:[#allocation7 + $0x9f8] sm:$0xff]
    %v2477 = vld [vmem:[#allocation7 + $0xa00] sm:$0xff]
    %v2478 = vld [vmem:[#allocation7 + $0xa08] sm:$0xff]
    %v2479 = vld [vmem:[#allocation7 + $0xa10] sm:$0xff]
    %v2480 = vld [vmem:[#allocation7 + $0xa18] sm:$0xff]
    %v2481 = vld [vmem:[#allocation7 + $0xa20] sm:$0xff]
    %v2482 = vld [vmem:[#allocation7 + $0xa28] sm:$0xff]
    %v2483 = vld [vmem:[#allocation7 + $0xa30] sm:$0xff]
    %v2484 = vld [vmem:[#allocation7 + $0xa38] sm:$0xff]
    %v2485 = vld [vmem:[#allocation7 + $0xa40] sm:$0xff]
    %v2486 = vld [vmem:[#allocation7 + $0xa48] sm:$0xff]
    %v2487 = vld [vmem:[#allocation7 + $0xa50] sm:$0xff]
    %v2488 = vld [vmem:[#allocation7 + $0xa58] sm:$0xff]
    %v2489 = vld [vmem:[#allocation7 + $0xa60] sm:$0xff]
    %v2490 = vld [vmem:[#allocation7 + $0xa68] sm:$0xff]
    %v2491 = vld [vmem:[#allocation7 + $0xa70] sm:$0xff]
    %v2492 = vld [vmem:[#allocation7 + $0xa78] sm:$0xff]
    %v2493 = vld [vmem:[#allocation7 + $0xa80] sm:$0xff]
    %v2494 = vld [vmem:[#allocation7 + $0xa88] sm:$0xff]
    %v2495 = vld [vmem:[#allocation7 + $0xa90] sm:$0xff]
    %v2496 = vld [vmem:[#allocation7 + $0xa98] sm:$0xff]
    %v2497 = vld [vmem:[#allocation7 + $0xaa0] sm:$0xff]
    %v2498 = vld [vmem:[#allocation7 + $0xaa8] sm:$0xff]
    %v2499 = vld [vmem:[#allocation7 + $0xab0] sm:$0xff]
    %v2500 = vld [vmem:[#allocation7 + $0xab8] sm:$0xff]
    %v2501 = vld [vmem:[#allocation7 + $0xac0] sm:$0xff]
    %v2502 = vld [vmem:[#allocation7 + $0xac8] sm:$0xff]
    %v2503 = vld [vmem:[#allocation7 + $0xad0] sm:$0xff]
    %v2504 = vld [vmem:[#allocation7 + $0xad8] sm:$0xff]
    %v2505 = vld [vmem:[#allocation7 + $0xae0] sm:$0xff]
    %v2506 = vld [vmem:[#allocation7 + $0xae8] sm:$0xff]
    %v2507 = vld [vmem:[#allocation7 + $0xaf0] sm:$0xff]
    %v2508 = vld [vmem:[#allocation7 + $0xaf8] sm:$0xff]
    %v2509 = vld [vmem:[#allocation7 + $0xb00] sm:$0xff]
    %v2510 = vld [vmem:[#allocation7 + $0xb08] sm:$0xff]
    %v2511 = vld [vmem:[#allocation7 + $0xb10] sm:$0xff]
    %v2512 = vld [vmem:[#allocation7 + $0xb18] sm:$0xff]
    %v2513 = vld [vmem:[#allocation7 + $0xb20] sm:$0xff]
    %v2514 = vld [vmem:[#allocation7 + $0xb28] sm:$0xff]
    %v2515 = vld [vmem:[#allocation7 + $0xb30] sm:$0xff]
    %v2516 = vld [vmem:[#allocation7 + $0xb38] sm:$0xff]
    %v2517 = vld [vmem:[#allocation7 + $0xb40] sm:$0xff]
    %v2518 = vld [vmem:[#allocation7 + $0xb48] sm:$0xff]
    %v2519 = vld [vmem:[#allocation7 + $0xb50] sm:$0xff]
    %v2520 = vld [vmem:[#allocation7 + $0xb58] sm:$0xff]
    %v2521 = vld [vmem:[#allocation7 + $0xb60] sm:$0xff]
    %v2522 = vld [vmem:[#allocation7 + $0xb68] sm:$0xff]
    %v2523 = vld [vmem:[#allocation7 + $0xb70] sm:$0xff]
    %v2524 = vld [vmem:[#allocation7 + $0xb78] sm:$0xff]
    %v2525 = vld [vmem:[#allocation7 + $0xb80] sm:$0xff]
    %v2526 = vld [vmem:[#allocation7 + $0xb88] sm:$0xff]
    %v2527 = vld [vmem:[#allocation7 + $0xb90] sm:$0xff]
    %v2528 = vld [vmem:[#allocation7 + $0xb98] sm:$0xff]
    %v2529 = vld [vmem:[#allocation7 + $0xba0] sm:$0xff]
    %v2530 = vld [vmem:[#allocation7 + $0xba8] sm:$0xff]
    %v2531 = vld [vmem:[#allocation7 + $0xbb0] sm:$0xff]
    %v2532 = vld [vmem:[#allocation7 + $0xbb8] sm:$0xff]
    %v2533 = vld [vmem:[#allocation7 + $0xbc0] sm:$0xff]
    %v2534 = vld [vmem:[#allocation7 + $0xbc8] sm:$0xff]
    %v2535 = vld [vmem:[#allocation7 + $0xbd0] sm:$0xff]
    %v2536 = vld [vmem:[#allocation7 + $0xbd8] sm:$0xff]
    %v2537 = vld [vmem:[#allocation7 + $0xbe0] sm:$0xff]
    %v2538 = vld [vmem:[#allocation7 + $0xbe8] sm:$0xff]
    %v2539 = vld [vmem:[#allocation7 + $0xbf0] sm:$0xff]
    %v2540 = vld [vmem:[#allocation7 + $0xbf8] sm:$0xff]
    %v2541 = vld [vmem:[#allocation7 + $0xc00] sm:$0xff]
    %v2542 = vld [vmem:[#allocation7 + $0xc08] sm:$0xff]
    %v2543 = vld [vmem:[#allocation7 + $0xc10] sm:$0xff]
    %v2544 = vld [vmem:[#allocation7 + $0xc18] sm:$0xff]
    %v2545 = vld [vmem:[#allocation7 + $0xc20] sm:$0xff]
    %v2546 = vld [vmem:[#allocation7 + $0xc28] sm:$0xff]
    %v2547 = vld [vmem:[#allocation7 + $0xc30] sm:$0xff]
    %v2548 = vld [vmem:[#allocation7 + $0xc38] sm:$0xff]
    %v2549 = vld [vmem:[#allocation7 + $0xc40] sm:$0xff]
    %v2550 = vld [vmem:[#allocation7 + $0xc48] sm:$0xff]
    %v2551 = vld [vmem:[#allocation7 + $0xc50] sm:$0xff]
    %v2552 = vld [vmem:[#allocation7 + $0xc58] sm:$0xff]
    %v2553 = vld [vmem:[#allocation7 + $0xc60] sm:$0xff]
    %v2554 = vld [vmem:[#allocation7 + $0xc68] sm:$0xff]
    %v2555 = vld [vmem:[#allocation7 + $0xc70] sm:$0xff]
    %v2556 = vld [vmem:[#allocation7 + $0xc78] sm:$0xff]
    %v2557 = vld [vmem:[#allocation7 + $0xc80] sm:$0xff]
    %v2558 = vld [vmem:[#allocation7 + $0xc88] sm:$0xff]
    %v2559 = vld [vmem:[#allocation7 + $0xc90] sm:$0xff]
    %v2560 = vld [vmem:[#allocation7 + $0xc98] sm:$0xff]
    %v2561 = vld [vmem:[#allocation7 + $0xca0] sm:$0xff]
    %v2562 = vld [vmem:[#allocation7 + $0xca8] sm:$0xff]
    %v2563 = vld [vmem:[#allocation7 + $0xcb0] sm:$0xff]
    %v2564 = vld [vmem:[#allocation7 + $0xcb8] sm:$0xff]
    %v2565 = vld [vmem:[#allocation7 + $0xcc0] sm:$0xff]
    %v2566 = vld [vmem:[#allocation7 + $0xcc8] sm:$0xff]
    %v2567 = vld [vmem:[#allocation7 + $0xcd0] sm:$0xff]
    %v2568 = vld [vmem:[#allocation7 + $0xcd8] sm:$0xff]
    %v2569 = vld [vmem:[#allocation7 + $0xce0] sm:$0xff]
    %v2570 = vld [vmem:[#allocation7 + $0xce8] sm:$0xff]
    %v2571 = vld [vmem:[#allocation7 + $0xcf0] sm:$0xff]
    %v2572 = vld [vmem:[#allocation7 + $0xcf8] sm:$0xff]
    %v2573 = vld [vmem:[#allocation7 + $0xd00] sm:$0xff]
    %v2574 = vld [vmem:[#allocation7 + $0xd08] sm:$0xff]
    %v2575 = vld [vmem:[#allocation7 + $0xd10] sm:$0xff]
    %v2576 = vld [vmem:[#allocation7 + $0xd18] sm:$0xff]
    %v2577 = vld [vmem:[#allocation7 + $0xd20] sm:$0xff]
    %v2578 = vld [vmem:[#allocation7 + $0xd28] sm:$0xff]
    %v2579 = vld [vmem:[#allocation7 + $0xd30] sm:$0xff]
    %v2580 = vld [vmem:[#allocation7 + $0xd38] sm:$0xff]
    %v2581 = vld [vmem:[#allocation7 + $0xd40] sm:$0xff]
    %v2582 = vld [vmem:[#allocation7 + $0xd48] sm:$0xff]
    %v2583 = vld [vmem:[#allocation7 + $0xd50] sm:$0xff]
    %v2584 = vld [vmem:[#allocation7 + $0xd58] sm:$0xff]
    %v2585 = vld [vmem:[#allocation7 + $0xd60] sm:$0xff]
    %v2586 = vld [vmem:[#allocation7 + $0xd68] sm:$0xff]
    %v2587 = vld [vmem:[#allocation7 + $0xd70] sm:$0xff]
    %v2588 = vld [vmem:[#allocation7 + $0xd78] sm:$0xff]
    %v2589 = vld [vmem:[#allocation7 + $0xd80] sm:$0xff]
    %v2590 = vld [vmem:[#allocation7 + $0xd88] sm:$0xff]
    %v2591 = vld [vmem:[#allocation7 + $0xd90] sm:$0xff]
    %v2592 = vld [vmem:[#allocation7 + $0xd98] sm:$0xff]
    %v2593 = vld [vmem:[#allocation7 + $0xda0] sm:$0xff]
    %v2594 = vld [vmem:[#allocation7 + $0xda8] sm:$0xff]
    %v2595 = vld [vmem:[#allocation7 + $0xdb0] sm:$0xff]
    %v2596 = vld [vmem:[#allocation7 + $0xdb8] sm:$0xff]
    %v2597 = vld [vmem:[#allocation7 + $0xdc0] sm:$0xff]
    %v2598 = vld [vmem:[#allocation7 + $0xdc8] sm:$0xff]
    %v2599 = vld [vmem:[#allocation7 + $0xdd0] sm:$0xff]
    %v2600 = vld [vmem:[#allocation7 + $0xdd8] sm:$0xff]
    %v2601 = vld [vmem:[#allocation7 + $0xde0] sm:$0xff]
    %v2602 = vld [vmem:[#allocation7 + $0xde8] sm:$0xff]
    %v2603 = vld [vmem:[#allocation7 + $0xdf0] sm:$0xff]
    %v2604 = vld [vmem:[#allocation7 + $0xdf8] sm:$0xff]
    %v2605 = vld [vmem:[#allocation7 + $0xe00] sm:$0xff]
    %v2606 = vld [vmem:[#allocation7 + $0xe08] sm:$0xff]
    %v2607 = vld [vmem:[#allocation7 + $0xe10] sm:$0xff]
    %v2608 = vld [vmem:[#allocation7 + $0xe18] sm:$0xff]
    %v2609 = vld [vmem:[#allocation7 + $0xe20] sm:$0xff]
    %v2610 = vld [vmem:[#allocation7 + $0xe28] sm:$0xff]
    %v2611 = vld [vmem:[#allocation7 + $0xe30] sm:$0xff]
    %v2612 = vld [vmem:[#allocation7 + $0xe38] sm:$0xff]
    %v2613 = vld [vmem:[#allocation7 + $0xe40] sm:$0xff]
    %v2614 = vld [vmem:[#allocation7 + $0xe48] sm:$0xff]
    %v2615 = vld [vmem:[#allocation7 + $0xe50] sm:$0xff]
    %v2616 = vld [vmem:[#allocation7 + $0xe58] sm:$0xff]
    %v2617 = vld [vmem:[#allocation7 + $0xe60] sm:$0xff]
    %v2618 = vld [vmem:[#allocation7 + $0xe68] sm:$0xff]
    %v2619 = vld [vmem:[#allocation7 + $0xe70] sm:$0xff]
    %v2620 = vld [vmem:[#allocation7 + $0xe78] sm:$0xff]
    %v2621 = vld [vmem:[#allocation7 + $0xe80] sm:$0xff]
    %v2622 = vld [vmem:[#allocation7 + $0xe88] sm:$0xff]
    %v2623 = vld [vmem:[#allocation7 + $0xe90] sm:$0xff]
    %v2624 = vld [vmem:[#allocation7 + $0xe98] sm:$0xff]
    %v2625 = vld [vmem:[#allocation7 + $0xea0] sm:$0xff]
    %v2626 = vld [vmem:[#allocation7 + $0xea8] sm:$0xff]
    %v2627 = vld [vmem:[#allocation7 + $0xeb0] sm:$0xff]
    %v2628 = vld [vmem:[#allocation7 + $0xeb8] sm:$0xff]
    %v2629 = vld [vmem:[#allocation7 + $0xec0] sm:$0xff]
    %v2630 = vld [vmem:[#allocation7 + $0xec8] sm:$0xff]
    %v2631 = vld [vmem:[#allocation7 + $0xed0] sm:$0xff]
    %v2632 = vld [vmem:[#allocation7 + $0xed8] sm:$0xff]
    %v2633 = vld [vmem:[#allocation7 + $0xee0] sm:$0xff]
    %v2634 = vld [vmem:[#allocation7 + $0xee8] sm:$0xff]
    %v2635 = vld [vmem:[#allocation7 + $0xef0] sm:$0xff]
    %v2636 = vld [vmem:[#allocation7 + $0xef8] sm:$0xff]
    %v2637 = vld [vmem:[#allocation7 + $0xf00] sm:$0xff]
    %v2638 = vld [vmem:[#allocation7 + $0xf08] sm:$0xff]
    %v2639 = vld [vmem:[#allocation7 + $0xf10] sm:$0xff]
    %v2640 = vld [vmem:[#allocation7 + $0xf18] sm:$0xff]
    %v2641 = vld [vmem:[#allocation7 + $0xf20] sm:$0xff]
    %v2642 = vld [vmem:[#allocation7 + $0xf28] sm:$0xff]
    %v2643 = vld [vmem:[#allocation7 + $0xf30] sm:$0xff]
    %v2644 = vld [vmem:[#allocation7 + $0xf38] sm:$0xff]
    %v2645 = vld [vmem:[#allocation7 + $0xf40] sm:$0xff]
    %v2646 = vld [vmem:[#allocation7 + $0xf48] sm:$0xff]
    %v2647 = vld [vmem:[#allocation7 + $0xf50] sm:$0xff]
    %v2648 = vld [vmem:[#allocation7 + $0xf58] sm:$0xff]
    %v2649 = vld [vmem:[#allocation7 + $0xf60] sm:$0xff]
    %v2650 = vld [vmem:[#allocation7 + $0xf68] sm:$0xff]
    %v2651 = vld [vmem:[#allocation7 + $0xf70] sm:$0xff]
    %v2652 = vld [vmem:[#allocation7 + $0xf78] sm:$0xff]
    %v2653 = vld [vmem:[#allocation7 + $0xf80] sm:$0xff]
    %v2654 = vld [vmem:[#allocation7 + $0xf88] sm:$0xff]
    %v2655 = vld [vmem:[#allocation7 + $0xf90] sm:$0xff]
    %v2656 = vld [vmem:[#allocation7 + $0xf98] sm:$0xff]
    %v2657 = vld [vmem:[#allocation7 + $0xfa0] sm:$0xff]
    %v2658 = vld [vmem:[#allocation7 + $0xfa8] sm:$0xff]
    %v2659 = vld [vmem:[#allocation7 + $0xfb0] sm:$0xff]
    %v2660 = vld [vmem:[#allocation7 + $0xfb8] sm:$0xff]
    %v2661 = vld [vmem:[#allocation7 + $0xfc0] sm:$0xff]
    %v2662 = vld [vmem:[#allocation7 + $0xfc8] sm:$0xff]
    %v2663 = vld [vmem:[#allocation7 + $0xfd0] sm:$0xff]
    %v2664 = vld [vmem:[#allocation7 + $0xfd8] sm:$0xff]
    %v2665 = vld [vmem:[#allocation7 + $0xfe0] sm:$0xff]
    %v2666 = vld [vmem:[#allocation7 + $0xfe8] sm:$0xff]
    %v2667 = vld [vmem:[#allocation7 + $0xff0] sm:$0xff]
    %v2668 = vld [vmem:[#allocation7 + $0xff8] sm:$0xff]
    %2669 = vmatprep.subr.mxu0 %v2158
    %2670 = vmatpush1.msra.mxu0 %v2157
    %2671 = vmatprep.subr.mxu0 %v2166
    %2672 = vmatpush1.msra.mxu0 %v2165
    %2673 = vmatprep.subr.mxu0 %v2174
    %2674 = vmatpush1.msra.mxu0 %v2173
    %2675 = vmatprep.subr.mxu0 %v2182
    %2676 = vmatpush1.msra.mxu0 %v2181
    %2677 = vmatprep.subr.mxu0 %v2190
    %2678 = vmatpush1.msra.mxu0 %v2189
    %2679 = vmatprep.subr.mxu0 %v2198
    %2680 = vmatpush1.msra.mxu0 %v2197
    %2681 = vmatprep.subr.mxu0 %v2206
    %2682 = vmatpush1.msra.mxu0 %v2205
    %2683 = vmatprep.subr.mxu0 %v2214
    %2684 = vmatpush1.msra.mxu0 %v2213
    %2685 = vmatprep.subr.mxu0 %v2222
    %2686 = vmatpush1.msra.mxu0 %v2221
    %2687 = vmatprep.subr.mxu0 %v2230
    %2688 = vmatpush1.msra.mxu0 %v2229
    %2689 = vmatprep.subr.mxu0 %v2238
    %2690 = vmatpush1.msra.mxu0 %v2237
    %2691 = vmatprep.subr.mxu0 %v2246
    %2692 = vmatpush1.msra.mxu0 %v2245
    %2693 = vmatprep.subr.mxu0 %v2254
    %2694 = vmatpush1.msra.mxu0 %v2253
    %2695 = vmatprep.subr.mxu0 %v2262
    %2696 = vmatpush1.msra.mxu0 %v2261
    %2697 = vmatprep.subr.mxu0 %v2270
    %2698 = vmatpush1.msra.mxu0 %v2269
    %2699 = vmatprep.subr.mxu0 %v2278
    %2700 = vmatpush1.msra.mxu0 %v2277
    %2701 = vmatprep.subr.mxu0 %v2286
    %2702 = vmatpush1.msra.mxu0 %v2285
    %2703 = vmatprep.subr.mxu0 %v2294
    %2704 = vmatpush1.msra.mxu0 %v2293
    %2705 = vmatprep.subr.mxu0 %v2302
    %2706 = vmatpush1.msra.mxu0 %v2301
    %2707 = vmatprep.subr.mxu0 %v2310
    %2708 = vmatpush1.msra.mxu0 %v2309
    %2709 = vmatprep.subr.mxu0 %v2318
    %2710 = vmatpush1.msra.mxu0 %v2317
    %2711 = vmatprep.subr.mxu0 %v2326
    %2712 = vmatpush1.msra.mxu0 %v2325
    %2713 = vmatprep.subr.mxu0 %v2334
    %2714 = vmatpush1.msra.mxu0 %v2333
    %2715 = vmatprep.subr.mxu0 %v2342
    %2716 = vmatpush1.msra.mxu0 %v2341
    %2717 = vmatprep.subr.mxu0 %v2350
    %2718 = vmatpush1.msra.mxu0 %v2349
    %2719 = vmatprep.subr.mxu0 %v2358
    %2720 = vmatpush1.msra.mxu0 %v2357
    %2721 = vmatprep.subr.mxu0 %v2366
    %2722 = vmatpush1.msra.mxu0 %v2365
    %2723 = vmatprep.subr.mxu0 %v2374
    %2724 = vmatpush1.msra.mxu0 %v2373
    %2725 = vmatprep.subr.mxu0 %v2382
    %2726 = vmatpush1.msra.mxu0 %v2381
    %2727 = vmatprep.subr.mxu0 %v2390
    %2728 = vmatpush1.msra.mxu0 %v2389
    %2729 = vmatprep.subr.mxu0 %v2398
    %2730 = vmatpush1.msra.mxu0 %v2397
    %2731 = vmatprep.subr.mxu0 %v2406
    %2732 = vmatpush1.msra.mxu0 %v2405
    %2733 = vmatprep.mubr.f32.mxu0 %v2084
    %2734 = vmatmul.mubr.f32.gmra.mrb[0].mxu0 %v2082
    %v2735 = vpop.f32.mrb[0].mxu0
    %v2736 = vadd.f32 0.0, %v2735
    %v2737 = vpop.f32.mrb[0].mxu0
    %v2738 = vadd.f32 0.0, %v2737
    %2739 = vdwg.mxu0
    %2740 = vmatprep.subr.mxu0 %v2414
    %2741 = vmatpush1.msra.mxu0 %v2413
    %2742 = vmatprep.subr.mxu0 %v2422
    %2743 = vmatpush1.msra.mxu0 %v2421
    %2744 = vmatprep.subr.mxu0 %v2430
    %2745 = vmatpush1.msra.mxu0 %v2429
    %2746 = vmatprep.subr.mxu0 %v2438
    %2747 = vmatpush1.msra.mxu0 %v2437
    %2748 = vmatprep.subr.mxu0 %v2446
    %2749 = vmatpush1.msra.mxu0 %v2445
    %2750 = vmatprep.subr.mxu0 %v2454
    %2751 = vmatpush1.msra.mxu0 %v2453
    %2752 = vmatprep.subr.mxu0 %v2462
    %2753 = vmatpush1.msra.mxu0 %v2461
    %2754 = vmatprep.subr.mxu0 %v2470
    %2755 = vmatpush1.msra.mxu0 %v2469
    %2756 = vmatprep.subr.mxu0 %v2478
    %2757 = vmatpush1.msra.mxu0 %v2477
    %2758 = vmatprep.subr.mxu0 %v2486
    %2759 = vmatpush1.msra.mxu0 %v2485
    %2760 = vmatprep.subr.mxu0 %v2494
    %2761 = vmatpush1.msra.mxu0 %v2493
    %2762 = vmatprep.subr.mxu0 %v2502
    %2763 = vmatpush1.msra.mxu0 %v2501
    %2764 = vmatprep.subr.mxu0 %v2510
    %2765 = vmatpush1.msra.mxu0 %v2509
    %2766 = vmatprep.subr.mxu0 %v2518
    %2767 = vmatpush1.msra.mxu0 %v2517
    %2768 = vmatprep.subr.mxu0 %v2526
    %2769 = vmatpush1.msra.mxu0 %v2525
    %2770 = vmatprep.subr.mxu0 %v2534
    %2771 = vmatpush1.msra.mxu0 %v2533
    %2772 = vmatprep.subr.mxu0 %v2542
    %2773 = vmatpush1.msra.mxu0 %v2541
    %2774 = vmatprep.subr.mxu0 %v2550
    %2775 = vmatpush1.msra.mxu0 %v2549
    %2776 = vmatprep.subr.mxu0 %v2558
    %2777 = vmatpush1.msra.mxu0 %v2557
    %2778 = vmatprep.subr.mxu0 %v2566
    %2779 = vmatpush1.msra.mxu0 %v2565
    %2780 = vmatprep.subr.mxu0 %v2574
    %2781 = vmatpush1.msra.mxu0 %v2573
    %2782 = vmatprep.subr.mxu0 %v2582
    %2783 = vmatpush1.msra.mxu0 %v2581
    %2784 = vmatprep.subr.mxu0 %v2590
    %2785 = vmatpush1.msra.mxu0 %v2589
    %2786 = vmatprep.subr.mxu0 %v2598
    %2787 = vmatpush1.msra.mxu0 %v2597
    %2788 = vmatprep.subr.mxu0 %v2606
    %2789 = vmatpush1.msra.mxu0 %v2605
    %2790 = vmatprep.subr.mxu0 %v2614
    %2791 = vmatpush1.msra.mxu0 %v2613
    %2792 = vmatprep.subr.mxu0 %v2622
    %2793 = vmatpush1.msra.mxu0 %v2621
    %2794 = vmatprep.subr.mxu0 %v2630
    %2795 = vmatpush1.msra.mxu0 %v2629
    %2796 = vmatprep.subr.mxu0 %v2638
    %2797 = vmatpush1.msra.mxu0 %v2637
    %2798 = vmatprep.subr.mxu0 %v2646
    %2799 = vmatpush1.msra.mxu0 %v2645
    %2800 = vmatprep.subr.mxu0 %v2654
    %2801 = vmatpush1.msra.mxu0 %v2653
    %2802 = vmatprep.subr.mxu0 %v2662
    %2803 = vmatpush1.msra.mxu0 %v2661
    %2804 = vmatprep.mubr.f32.mxu0 %v2155
    %2805 = vmatmul.mubr.f32.gmra.mrb[0].mxu0 %v2153
    %v2806 = vpop.f32.mrb[0].mxu0
    %v2807 = vadd.f32 %v2736, %v2806
    %v2808 = vpop.f32.mrb[0].mxu0
    %v2809 = vadd.f32 %v2738, %v2808
    %2810 = vdwg.mxu0
    %2811 = vmatprep.subr.mxu0 %v2160
    %2812 = vmatpush1.msra.mxu0 %v2159
    %2813 = vmatprep.subr.mxu0 %v2168
    %2814 = vmatpush1.msra.mxu0 %v2167
    %2815 = vmatprep.subr.mxu0 %v2176
    %2816 = vmatpush1.msra.mxu0 %v2175
    %2817 = vmatprep.subr.mxu0 %v2184
    %2818 = vmatpush1.msra.mxu0 %v2183
    %2819 = vmatprep.subr.mxu0 %v2192
    %2820 = vmatpush1.msra.mxu0 %v2191
    %2821 = vmatprep.subr.mxu0 %v2200
    %2822 = vmatpush1.msra.mxu0 %v2199
    %2823 = vmatprep.subr.mxu0 %v2208
    %2824 = vmatpush1.msra.mxu0 %v2207
    %2825 = vmatprep.subr.mxu0 %v2216
    %2826 = vmatpush1.msra.mxu0 %v2215
    %2827 = vmatprep.subr.mxu0 %v2224
    %2828 = vmatpush1.msra.mxu0 %v2223
    %2829 = vmatprep.subr.mxu0 %v2232
    %2830 = vmatpush1.msra.mxu0 %v2231
    %2831 = vmatprep.subr.mxu0 %v2240
    %2832 = vmatpush1.msra.mxu0 %v2239
    %2833 = vmatprep.subr.mxu0 %v2248
    %2834 = vmatpush1.msra.mxu0 %v2247
    %2835 = vmatprep.subr.mxu0 %v2256
    %2836 = vmatpush1.msra.mxu0 %v2255
    %2837 = vmatprep.subr.mxu0 %v2264
    %2838 = vmatpush1.msra.mxu0 %v2263
    %2839 = vmatprep.subr.mxu0 %v2272
    %2840 = vmatpush1.msra.mxu0 %v2271
    %2841 = vmatprep.subr.mxu0 %v2280
    %2842 = vmatpush1.msra.mxu0 %v2279
    %2843 = vmatprep.subr.mxu0 %v2288
    %2844 = vmatpush1.msra.mxu0 %v2287
    %2845 = vmatprep.subr.mxu0 %v2296
    %2846 = vmatpush1.msra.mxu0 %v2295
    %2847 = vmatprep.subr.mxu0 %v2304
    %2848 = vmatpush1.msra.mxu0 %v2303
    %2849 = vmatprep.subr.mxu0 %v2312
    %2850 = vmatpush1.msra.mxu0 %v2311
    %2851 = vmatprep.subr.mxu0 %v2320
    %2852 = vmatpush1.msra.mxu0 %v2319
    %2853 = vmatprep.subr.mxu0 %v2328
    %2854 = vmatpush1.msra.mxu0 %v2327
    %2855 = vmatprep.subr.mxu0 %v2336
    %2856 = vmatpush1.msra.mxu0 %v2335
    %2857 = vmatprep.subr.mxu0 %v2344
    %2858 = vmatpush1.msra.mxu0 %v2343
    %2859 = vmatprep.subr.mxu0 %v2352
    %2860 = vmatpush1.msra.mxu0 %v2351
    %2861 = vmatprep.subr.mxu0 %v2360
    %2862 = vmatpush1.msra.mxu0 %v2359
    %2863 = vmatprep.subr.mxu0 %v2368
    %2864 = vmatpush1.msra.mxu0 %v2367
    %2865 = vmatprep.subr.mxu0 %v2376
    %2866 = vmatpush1.msra.mxu0 %v2375
    %2867 = vmatprep.subr.mxu0 %v2384
    %2868 = vmatpush1.msra.mxu0 %v2383
    %2869 = vmatprep.subr.mxu0 %v2392
    %2870 = vmatpush1.msra.mxu0 %v2391
    %2871 = vmatprep.subr.mxu0 %v2400
    %2872 = vmatpush1.msra.mxu0 %v2399
    %2873 = vmatprep.subr.mxu0 %v2408
    %2874 = vmatpush1.msra.mxu0 %v2407
    %2875 = vmatprep.mubr.f32.mxu0 %v2084
    %2876 = vmatmul.mubr.f32.gmra.mrb[0].mxu0 %v2082
    %v2877 = vpop.f32.mrb[0].mxu0
    %v2878 = vadd.f32 0.0, %v2877
    %v2879 = vpop.f32.mrb[0].mxu0
    %v2880 = vadd.f32 0.0, %v2879
    %2881 = vdwg.mxu0
    %2882 = vmatprep.subr.mxu0 %v2416
    %2883 = vmatpush1.msra.mxu0 %v2415
    %2884 = vmatprep.subr.mxu0 %v2424
    %2885 = vmatpush1.msra.mxu0 %v2423
    %2886 = vmatprep.subr.mxu0 %v2432
    %2887 = vmatpush1.msra.mxu0 %v2431
    %2888 = vmatprep.subr.mxu0 %v2440
    %2889 = vmatpush1.msra.mxu0 %v2439
    %2890 = vmatprep.subr.mxu0 %v2448
    %2891 = vmatpush1.msra.mxu0 %v2447
    %2892 = vmatprep.subr.mxu0 %v2456
    %2893 = vmatpush1.msra.mxu0 %v2455
    %2894 = vmatprep.subr.mxu0 %v2464
    %2895 = vmatpush1.msra.mxu0 %v2463
    %2896 = vmatprep.subr.mxu0 %v2472
    %2897 = vmatpush1.msra.mxu0 %v2471
    %2898 = vmatprep.subr.mxu0 %v2480
    %2899 = vmatpush1.msra.mxu0 %v2479
    %2900 = vmatprep.subr.mxu0 %v2488
    %2901 = vmatpush1.msra.mxu0 %v2487
    %2902 = vmatprep.subr.mxu0 %v2496
    %2903 = vmatpush1.msra.mxu0 %v2495
    %2904 = vmatprep.subr.mxu0 %v2504
    %2905 = vmatpush1.msra.mxu0 %v2503
    %2906 = vmatprep.subr.mxu0 %v2512
    %2907 = vmatpush1.msra.mxu0 %v2511
    %2908 = vmatprep.subr.mxu0 %v2520
    %2909 = vmatpush1.msra.mxu0 %v2519
    %2910 = vmatprep.subr.mxu0 %v2528
    %2911 = vmatpush1.msra.mxu0 %v2527
    %2912 = vmatprep.subr.mxu0 %v2536
    %2913 = vmatpush1.msra.mxu0 %v2535
    %2914 = vmatprep.subr.mxu0 %v2544
    %2915 = vmatpush1.msra.mxu0 %v2543
    %2916 = vmatprep.subr.mxu0 %v2552
    %2917 = vmatpush1.msra.mxu0 %v2551
    %2918 = vmatprep.subr.mxu0 %v2560
    %2919 = vmatpush1.msra.mxu0 %v2559
    %2920 = vmatprep.subr.mxu0 %v2568
    %2921 = vmatpush1.msra.mxu0 %v2567
    %2922 = vmatprep.subr.mxu0 %v2576
    %2923 = vmatpush1.msra.mxu0 %v2575
    %2924 = vmatprep.subr.mxu0 %v2584
    %2925 = vmatpush1.msra.mxu0 %v2583
    %2926 = vmatprep.subr.mxu0 %v2592
    %2927 = vmatpush1.msra.mxu0 %v2591
    %2928 = vmatprep.subr.mxu0 %v2600
    %2929 = vmatpush1.msra.mxu0 %v2599
    %2930 = vmatprep.subr.mxu0 %v2608
    %2931 = vmatpush1.msra.mxu0 %v2607
    %2932 = vmatprep.subr.mxu0 %v2616
    %2933 = vmatpush1.msra.mxu0 %v2615
    %2934 = vmatprep.subr.mxu0 %v2624
    %2935 = vmatpush1.msra.mxu0 %v2623
    %2936 = vmatprep.subr.mxu0 %v2632
    %2937 = vmatpush1.msra.mxu0 %v2631
    %2938 = vmatprep.subr.mxu0 %v2640
    %2939 = vmatpush1.msra.mxu0 %v2639
    %2940 = vmatprep.subr.mxu0 %v2648
    %2941 = vmatpush1.msra.mxu0 %v2647
    %2942 = vmatprep.subr.mxu0 %v2656
    %2943 = vmatpush1.msra.mxu0 %v2655
    %2944 = vmatprep.subr.mxu0 %v2664
    %2945 = vmatpush1.msra.mxu0 %v2663
    %2946 = vmatprep.mubr.f32.mxu0 %v2155
    %2947 = vmatmul.mubr.f32.gmra.mrb[0].mxu0 %v2153
    %v2948 = vpop.f32.mrb[0].mxu0
    %v2949 = vadd.f32 %v2878, %v2948
    %v2950 = vpop.f32.mrb[0].mxu0
    %v2951 = vadd.f32 %v2880, %v2950
    %2952 = vdwg.mxu0
    %2953 = vmatprep.subr.mxu0 %v2162
    %2954 = vmatpush1.msra.mxu0 %v2161
    %2955 = vmatprep.subr.mxu0 %v2170
    %2956 = vmatpush1.msra.mxu0 %v2169
    %2957 = vmatprep.subr.mxu0 %v2178
    %2958 = vmatpush1.msra.mxu0 %v2177
    %2959 = vmatprep.subr.mxu0 %v2186
    %2960 = vmatpush1.msra.mxu0 %v2185
    %2961 = vmatprep.subr.mxu0 %v2194
    %2962 = vmatpush1.msra.mxu0 %v2193
    %2963 = vmatprep.subr.mxu0 %v2202
    %2964 = vmatpush1.msra.mxu0 %v2201
    %2965 = vmatprep.subr.mxu0 %v2210
    %2966 = vmatpush1.msra.mxu0 %v2209
    %2967 = vmatprep.subr.mxu0 %v2218
    %2968 = vmatpush1.msra.mxu0 %v2217
    %2969 = vmatprep.subr.mxu0 %v2226
    %2970 = vmatpush1.msra.mxu0 %v2225
    %2971 = vmatprep.subr.mxu0 %v2234
    %2972 = vmatpush1.msra.mxu0 %v2233
    %2973 = vmatprep.subr.mxu0 %v2242
    %2974 = vmatpush1.msra.mxu0 %v2241
    %2975 = vmatprep.subr.mxu0 %v2250
    %2976 = vmatpush1.msra.mxu0 %v2249
    %2977 = vmatprep.subr.mxu0 %v2258
    %2978 = vmatpush1.msra.mxu0 %v2257
    %2979 = vmatprep.subr.mxu0 %v2266
    %2980 = vmatpush1.msra.mxu0 %v2265
    %2981 = vmatprep.subr.mxu0 %v2274
    %2982 = vmatpush1.msra.mxu0 %v2273
    %2983 = vmatprep.subr.mxu0 %v2282
    %2984 = vmatpush1.msra.mxu0 %v2281
    %2985 = vmatprep.subr.mxu0 %v2290
    %2986 = vmatpush1.msra.mxu0 %v2289
    %2987 = vmatprep.subr.mxu0 %v2298
    %2988 = vmatpush1.msra.mxu0 %v2297
    %2989 = vmatprep.subr.mxu0 %v2306
    %2990 = vmatpush1.msra.mxu0 %v2305
    %2991 = vmatprep.subr.mxu0 %v2314
    %2992 = vmatpush1.msra.mxu0 %v2313
    %2993 = vmatprep.subr.mxu0 %v2322
    %2994 = vmatpush1.msra.mxu0 %v2321
    %2995 = vmatprep.subr.mxu0 %v2330
    %2996 = vmatpush1.msra.mxu0 %v2329
    %2997 = vmatprep.subr.mxu0 %v2338
    %2998 = vmatpush1.msra.mxu0 %v2337
    %2999 = vmatprep.subr.mxu0 %v2346
    %3000 = vmatpush1.msra.mxu0 %v2345
    %3001 = vmatprep.subr.mxu0 %v2354
    %3002 = vmatpush1.msra.mxu0 %v2353
    %3003 = vmatprep.subr.mxu0 %v2362
    %3004 = vmatpush1.msra.mxu0 %v2361
    %3005 = vmatprep.subr.mxu0 %v2370
    %3006 = vmatpush1.msra.mxu0 %v2369
    %3007 = vmatprep.subr.mxu0 %v2378
    %3008 = vmatpush1.msra.mxu0 %v2377
    %3009 = vmatprep.subr.mxu0 %v2386
    %3010 = vmatpush1.msra.mxu0 %v2385
    %3011 = vmatprep.subr.mxu0 %v2394
    %3012 = vmatpush1.msra.mxu0 %v2393
    %3013 = vmatprep.subr.mxu0 %v2402
    %3014 = vmatpush1.msra.mxu0 %v2401
    %3015 = vmatprep.subr.mxu0 %v2410
    %3016 = vmatpush1.msra.mxu0 %v2409
    %3017 = vmatprep.mubr.f32.mxu0 %v2084
    %3018 = vmatmul.mubr.f32.gmra.mrb[0].mxu0 %v2082
    %v3019 = vpop.f32.mrb[0].mxu0
    %v3020 = vadd.f32 0.0, %v3019
    %v3021 = vpop.f32.mrb[0].mxu0
    %v3022 = vadd.f32 0.0, %v3021
    %3023 = vdwg.mxu0
    %3024 = vmatprep.subr.mxu0 %v2418
    %3025 = vmatpush1.msra.mxu0 %v2417
    %3026 = vmatprep.subr.mxu0 %v2426
    %3027 = vmatpush1.msra.mxu0 %v2425
    %3028 = vmatprep.subr.mxu0 %v2434
    %3029 = vmatpush1.msra.mxu0 %v2433
    %3030 = vmatprep.subr.mxu0 %v2442
    %3031 = vmatpush1.msra.mxu0 %v2441
    %3032 = vmatprep.subr.mxu0 %v2450
    %3033 = vmatpush1.msra.mxu0 %v2449
    %3034 = vmatprep.subr.mxu0 %v2458
    %3035 = vmatpush1.msra.mxu0 %v2457
    %3036 = vmatprep.subr.mxu0 %v2466
    %3037 = vmatpush1.msra.mxu0 %v2465
    %3038 = vmatprep.subr.mxu0 %v2474
    %3039 = vmatpush1.msra.mxu0 %v2473
    %3040 = vmatprep.subr.mxu0 %v2482
    %3041 = vmatpush1.msra.mxu0 %v2481
    %3042 = vmatprep.subr.mxu0 %v2490
    %3043 = vmatpush1.msra.mxu0 %v2489
    %3044 = vmatprep.subr.mxu0 %v2498
    %3045 = vmatpush1.msra.mxu0 %v2497
    %3046 = vmatprep.subr.mxu0 %v2506
    %3047 = vmatpush1.msra.mxu0 %v2505
    %3048 = vmatprep.subr.mxu0 %v2514
    %3049 = vmatpush1.msra.mxu0 %v2513
    %3050 = vmatprep.subr.mxu0 %v2522
    %3051 = vmatpush1.msra.mxu0 %v2521
    %3052 = vmatprep.subr.mxu0 %v2530
    %3053 = vmatpush1.msra.mxu0 %v2529
    %3054 = vmatprep.subr.mxu0 %v2538
    %3055 = vmatpush1.msra.mxu0 %v2537
    %3056 = vmatprep.subr.mxu0 %v2546
    %3057 = vmatpush1.msra.mxu0 %v2545
    %3058 = vmatprep.subr.mxu0 %v2554
    %3059 = vmatpush1.msra.mxu0 %v2553
    %3060 = vmatprep.subr.mxu0 %v2562
    %3061 = vmatpush1.msra.mxu0 %v2561
    %3062 = vmatprep.subr.mxu0 %v2570
    %3063 = vmatpush1.msra.mxu0 %v2569
    %3064 = vmatprep.subr.mxu0 %v2578
    %3065 = vmatpush1.msra.mxu0 %v2577
    %3066 = vmatprep.subr.mxu0 %v2586
    %3067 = vmatpush1.msra.mxu0 %v2585
    %3068 = vmatprep.subr.mxu0 %v2594
    %3069 = vmatpush1.msra.mxu0 %v2593
    %3070 = vmatprep.subr.mxu0 %v2602
    %3071 = vmatpush1.msra.mxu0 %v2601
    %3072 = vmatprep.subr.mxu0 %v2610
    %3073 = vmatpush1.msra.mxu0 %v2609
    %3074 = vmatprep.subr.mxu0 %v2618
    %3075 = vmatpush1.msra.mxu0 %v2617
    %3076 = vmatprep.subr.mxu0 %v2626
    %3077 = vmatpush1.msra.mxu0 %v2625
    %3078 = vmatprep.subr.mxu0 %v2634
    %3079 = vmatpush1.msra.mxu0 %v2633
    %3080 = vmatprep.subr.mxu0 %v2642
    %3081 = vmatpush1.msra.mxu0 %v2641
    %3082 = vmatprep.subr.mxu0 %v2650
    %3083 = vmatpush1.msra.mxu0 %v2649
    %3084 = vmatprep.subr.mxu0 %v2658
    %3085 = vmatpush1.msra.mxu0 %v2657
    %3086 = vmatprep.subr.mxu0 %v2666
    %3087 = vmatpush1.msra.mxu0 %v2665
    %3088 = vmatprep.mubr.f32.mxu0 %v2155
    %3089 = vmatmul.mubr.f32.gmra.mrb[0].mxu0 %v2153
    %v3090 = vpop.f32.mrb[0].mxu0
    %v3091 = vadd.f32 %v3020, %v3090
    %v3092 = vpop.f32.mrb[0].mxu0
    %v3093 = vadd.f32 %v3022, %v3092
    %3094 = vdwg.mxu0
    %3095 = vmatprep.subr.mxu0 %v2164
    %3096 = vmatpush1.msra.mxu0 %v2163
    %3097 = vmatprep.subr.mxu0 %v2172
    %3098 = vmatpush1.msra.mxu0 %v2171
    %3099 = vmatprep.subr.mxu0 %v2180
    %3100 = vmatpush1.msra.mxu0 %v2179
    %3101 = vmatprep.subr.mxu0 %v2188
    %3102 = vmatpush1.msra.mxu0 %v2187
    %3103 = vmatprep.subr.mxu0 %v2196
    %3104 = vmatpush1.msra.mxu0 %v2195
    %3105 = vmatprep.subr.mxu0 %v2204
    %3106 = vmatpush1.msra.mxu0 %v2203
    %3107 = vmatprep.subr.mxu0 %v2212
    %3108 = vmatpush1.msra.mxu0 %v2211
    %3109 = vmatprep.subr.mxu0 %v2220
    %3110 = vmatpush1.msra.mxu0 %v2219
    %3111 = vmatprep.subr.mxu0 %v2228
    %3112 = vmatpush1.msra.mxu0 %v2227
    %3113 = vmatprep.subr.mxu0 %v2236
    %3114 = vmatpush1.msra.mxu0 %v2235
    %3115 = vmatprep.subr.mxu0 %v2244
    %3116 = vmatpush1.msra.mxu0 %v2243
    %3117 = vmatprep.subr.mxu0 %v2252
    %3118 = vmatpush1.msra.mxu0 %v2251
    %3119 = vmatprep.subr.mxu0 %v2260
    %3120 = vmatpush1.msra.mxu0 %v2259
    %3121 = vmatprep.subr.mxu0 %v2268
    %3122 = vmatpush1.msra.mxu0 %v2267
    %3123 = vmatprep.subr.mxu0 %v2276
    %3124 = vmatpush1.msra.mxu0 %v2275
    %3125 = vmatprep.subr.mxu0 %v2284
    %3126 = vmatpush1.msra.mxu0 %v2283
    %3127 = vmatprep.subr.mxu0 %v2292
    %3128 = vmatpush1.msra.mxu0 %v2291
    %3129 = vmatprep.subr.mxu0 %v2300
    %3130 = vmatpush1.msra.mxu0 %v2299
    %3131 = vmatprep.subr.mxu0 %v2308
    %3132 = vmatpush1.msra.mxu0 %v2307
    %3133 = vmatprep.subr.mxu0 %v2316
    %3134 = vmatpush1.msra.mxu0 %v2315
    %3135 = vmatprep.subr.mxu0 %v2324
    %3136 = vmatpush1.msra.mxu0 %v2323
    %3137 = vmatprep.subr.mxu0 %v2332
    %3138 = vmatpush1.msra.mxu0 %v2331
    %3139 = vmatprep.subr.mxu0 %v2340
    %3140 = vmatpush1.msra.mxu0 %v2339
    %3141 = vmatprep.subr.mxu0 %v2348
    %3142 = vmatpush1.msra.mxu0 %v2347
    %3143 = vmatprep.subr.mxu0 %v2356
    %3144 = vmatpush1.msra.mxu0 %v2355
    %3145 = vmatprep.subr.mxu0 %v2364
    %3146 = vmatpush1.msra.mxu0 %v2363
    %3147 = vmatprep.subr.mxu0 %v2372
    %3148 = vmatpush1.msra.mxu0 %v2371
    %3149 = vmatprep.subr.mxu0 %v2380
    %3150 = vmatpush1.msra.mxu0 %v2379
    %3151 = vmatprep.subr.mxu0 %v2388
    %3152 = vmatpush1.msra.mxu0 %v2387
    %3153 = vmatprep.subr.mxu0 %v2396
    %3154 = vmatpush1.msra.mxu0 %v2395
    %3155 = vmatprep.subr.mxu0 %v2404
    %3156 = vmatpush1.msra.mxu0 %v2403
    %3157 = vmatprep.subr.mxu0 %v2412
    %3158 = vmatpush1.msra.mxu0 %v2411
    %3159 = vmatprep.mubr.f32.mxu0 %v2084
    %3160 = vmatmul.mubr.f32.gmra.mrb[0].mxu0 %v2082
    %v3161 = vpop.f32.mrb[0].mxu0
    %v3162 = vadd.f32 0.0, %v3161
    %v3163 = vpop.f32.mrb[0].mxu0
    %v3164 = vadd.f32 0.0, %v3163
    %3165 = vdwg.mxu0
    %3166 = vmatprep.subr.mxu0 %v2420
    %3167 = vmatpush1.msra.mxu0 %v2419
    %3168 = vmatprep.subr.mxu0 %v2428
    %3169 = vmatpush1.msra.mxu0 %v2427
    %3170 = vmatprep.subr.mxu0 %v2436
    %3171 = vmatpush1.msra.mxu0 %v2435
    %3172 = vmatprep.subr.mxu0 %v2444
    %3173 = vmatpush1.msra.mxu0 %v2443
    %3174 = vmatprep.subr.mxu0 %v2452
    %3175 = vmatpush1.msra.mxu0 %v2451
    %3176 = vmatprep.subr.mxu0 %v2460
    %3177 = vmatpush1.msra.mxu0 %v2459
    %3178 = vmatprep.subr.mxu0 %v2468
    %3179 = vmatpush1.msra.mxu0 %v2467
    %3180 = vmatprep.subr.mxu0 %v2476
    %3181 = vmatpush1.msra.mxu0 %v2475
    %3182 = vmatprep.subr.mxu0 %v2484
    %3183 = vmatpush1.msra.mxu0 %v2483
    %3184 = vmatprep.subr.mxu0 %v2492
    %3185 = vmatpush1.msra.mxu0 %v2491
    %3186 = vmatprep.subr.mxu0 %v2500
    %3187 = vmatpush1.msra.mxu0 %v2499
    %3188 = vmatprep.subr.mxu0 %v2508
    %3189 = vmatpush1.msra.mxu0 %v2507
    %3190 = vmatprep.subr.mxu0 %v2516
    %3191 = vmatpush1.msra.mxu0 %v2515
    %3192 = vmatprep.subr.mxu0 %v2524
    %3193 = vmatpush1.msra.mxu0 %v2523
    %3194 = vmatprep.subr.mxu0 %v2532
    %3195 = vmatpush1.msra.mxu0 %v2531
    %3196 = vmatprep.subr.mxu0 %v2540
    %3197 = vmatpush1.msra.mxu0 %v2539
    %3198 = vmatprep.subr.mxu0 %v2548
    %3199 = vmatpush1.msra.mxu0 %v2547
    %3200 = vmatprep.subr.mxu0 %v2556
    %3201 = vmatpush1.msra.mxu0 %v2555
    %3202 = vmatprep.subr.mxu0 %v2564
    %3203 = vmatpush1.msra.mxu0 %v2563
    %3204 = vmatprep.subr.mxu0 %v2572
    %3205 = vmatpush1.msra.mxu0 %v2571
    %3206 = vmatprep.subr.mxu0 %v2580
    %3207 = vmatpush1.msra.mxu0 %v2579
    %3208 = vmatprep.subr.mxu0 %v2588
    %3209 = vmatpush1.msra.mxu0 %v2587
    %3210 = vmatprep.subr.mxu0 %v2596
    %3211 = vmatpush1.msra.mxu0 %v2595
    %3212 = vmatprep.subr.mxu0 %v2604
    %3213 = vmatpush1.msra.mxu0 %v2603
    %3214 = vmatprep.subr.mxu0 %v2612
    %3215 = vmatpush1.msra.mxu0 %v2611
    %3216 = vmatprep.subr.mxu0 %v2620
    %3217 = vmatpush1.msra.mxu0 %v2619
    %3218 = vmatprep.subr.mxu0 %v2628
    %3219 = vmatpush1.msra.mxu0 %v2627
    %3220 = vmatprep.subr.mxu0 %v2636
    %3221 = vmatpush1.msra.mxu0 %v2635
    %3222 = vmatprep.subr.mxu0 %v2644
    %3223 = vmatpush1.msra.mxu0 %v2643
    %3224 = vmatprep.subr.mxu0 %v2652
    %3225 = vmatpush1.msra.mxu0 %v2651
    %3226 = vmatprep.subr.mxu0 %v2660
    %3227 = vmatpush1.msra.mxu0 %v2659
    %3228 = vmatprep.subr.mxu0 %v2668
    %3229 = vmatpush1.msra.mxu0 %v2667
    %3230 = vmatprep.mubr.f32.mxu0 %v2155
    %3231 = vmatmul.mubr.f32.gmra.mrb[0].mxu0 %v2153
    %v3232 = vpop.f32.mrb[0].mxu0
    %v3233 = vadd.f32 %v3162, %v3232
    %v3234 = vpop.f32.mrb[0].mxu0
    %v3235 = vadd.f32 %v3164, %v3234
    %3236 = vdwg.mxu0
    %s3237 = scalar_lea.vmem %s7, 64
    %3238 = vst [vmem:[%s3237] sm:$0x1f] %v2807
    %3239 = vst [vmem:[%s3237 + $0x8] sm:$0x1f] %v2809
    %3240 = vst [vmem:[%s3237 + $0x10] sm:$0x1f] %v2949
    %3241 = vst [vmem:[%s3237 + $0x18] sm:$0x1f] %v2951
    %3242 = vst [vmem:[%s3237 + $0x20] sm:$0x1f] %v3091
    %3243 = vst [vmem:[%s3237 + $0x28] sm:$0x1f] %v3093
    %3244 = vst [vmem:[%s3237 + $0x30] sm:$0x1f] %v3233
    %3245 = vst [vmem:[%s3237 + $0x38] sm:$0x1f] %v3235
    // Predicated region
    $region46: #{tpu_custom_call.1} parent=1 // pred_check
      _
    $region47: #{tpu_custom_call.1} parent=1 // pred_check_branch
      %3247 = sbr.rel (0) target = $region49
    $region48: #{tpu_custom_call.1} parent=1 // pred_region
      _
    $region49: #{tpu_custom_call.1} parent=1 // pred_fallthru
      _
    // Predicated region
    $region50: #{tpu_custom_call.1} parent=1 // pred_check
      _
    $region51: #{tpu_custom_call.1} parent=1 // pred_check_branch
      %3249 = sbr.rel (0) target = $region53
    $region52: #{tpu_custom_call.1} parent=1 // pred_region
      _
    $region53: #{tpu_custom_call.1} parent=1 // pred_fallthru
      _
    %3250 = vsyncpa [#allocation3], 1
    %3251 = vsyncpa [#allocation5], 1
    %3252 = vsyncpa [#allocation8], 1

</llo_original>
